<compile_context>
chip_gen: v5e
topology: v5e:2x2
jax: 0.10.0
libtpu: 0.0.40
codegen_flags: <defaults>
</compile_context>

<pallas_src>
import jax
import jax.numpy as jnp
import numpy as np
from jax import lax
from jax.experimental import pallas as pl
from jax.experimental.pallas import tpu as pltpu


# ----------------------------------------------------------------------------
# Fused kernel: conv1(5x5,1->c1) -> conv2(3x3,c1->c2) -> conv3(3x3,c2->c3)
#               -> conv4(3x3,c3->c4), ReLU after conv1..3.  Channel-major:
#               every activation is (C, H*W) with H*W on lanes.
# ----------------------------------------------------------------------------
def _make_fused_kernel(H, W, c1, c2, c3, c4):
    HW = H * W

    def kernel(x_ref, masks_ref, w1_ref, b1_ref, w2_ref, b2_ref,
               w3_ref, b3_ref, w4_ref, b4_ref, o_ref, col_ref):
        f32 = jnp.float32

        def shifted(act, dh, dw):
            # act[:, q + dh*W + dw] with out-of-image positions zeroed.
            # Shift = lane rotation (XLU); edge validity = precomputed 0/1 mask.
            d = dh * W + dw
            if d == 0:
                return act
            rolled = pltpu.roll(act, shift=(-d) % HW, axis=1)
            m = (dh + 2) * 5 + (dw + 2)
            return rolled * masks_ref[m:m + 1, :]

        # ---- conv1: 5x5, 1 -> c1 ; im2col rows 0..24 of the shared col buf ----
        x_row = x_ref[0]                                        # (1, HW)
        for kh in range(5):
            for kw in range(5):
                t = kh * 5 + kw
                col_ref[t:t + 1, :] = shifted(x_row, kh - 2, kw - 2)
        a = jnp.dot(w1_ref[...], col_ref[0:25, :], preferred_element_type=f32)
        a = jnp.maximum(a + b1_ref[...], 0.0)                   # (c1, HW)

        def conv3x3(act, cin, w_ref, b_ref, relu):
            # Build (9*cin, HW) im2col in the shared scratch: each tap is one
            # roll + mask, stored as a full-lane, sublane-aligned slab.
            for kh in range(3):
                for kw in range(3):
                    t = kh * 3 + kw
                    col_ref[t * cin:(t + 1) * cin, :] = shifted(act, kh - 1, kw - 1)
            out = jnp.dot(w_ref[...], col_ref[0:9 * cin, :],
                          preferred_element_type=f32)
            out = out + b_ref[...]
            return jnp.maximum(out, 0.0) if relu else out

        a = conv3x3(a, c1, w2_ref, b2_ref, True)                # (c2, HW)
        a = conv3x3(a, c2, w3_ref, b3_ref, True)                # (c3, HW)
        a = conv3x3(a, c3, w4_ref, b4_ref, False)               # (c4, HW)

        o_ref[...] = a.reshape(1, c4, HW)                       # lane-dense

    return kernel


def super_resolution_forward(x_nchw, params, r):
    N, Cin, H, W = x_nchw.shape
    assert Cin == 1
    HW = H * W
    assert HW % 128 == 0, "H*W must be a multiple of the 128-lane width"
    r2 = r * r
    c1, c2, c3 = 64, 64, 32

    # Raw flat image per sample (no wrapper im2col / no HBM inflation).
    x_flat = x_nchw.reshape(N, 1, HW)

    # Precomputed 0/1 edge-validity masks for every (dh, dw) in [-2, 2]^2.
    q = np.arange(HW)
    hrow, wcol = q // W, q % W
    masks_np = np.zeros((25, HW), np.float32)
    for dh in range(-2, 3):
        for dw in range(-2, 3):
            ok = ((hrow + dh >= 0) & (hrow + dh < H) &
                  (wcol + dw >= 0) & (wcol + dw < W))
            masks_np[(dh + 2) * 5 + (dw + 2)] = ok
    masks = jnp.asarray(masks_np)

    def as_mat(w_hwio):  # (KH,KW,Cin,Cout) -> (Cout, KH*KW*Cin), tap-major K
        kh, kw, ci, co = w_hwio.shape
        return w_hwio.reshape(kh * kw * ci, co).T

    w1, b1 = params["conv1"]
    w2, b2 = params["conv2"]
    w3, b3 = params["conv3"]
    w4, b4 = params["conv4"]

    kernel = _make_fused_kernel(H, W, c1, c2, c3, r2)

    def full(shape):  # whole-array block, resident across grid steps
        return pl.BlockSpec(shape, lambda n: (0,) * len(shape))

    flops = 2 * N * HW * (25 * c1 + 9 * c1 * c2 + 9 * c2 * c3 + 9 * c3 * r2)
    bytes_accessed = 4 * (x_flat.size + masks.size + N * r2 * HW
                          + 25 * c1 + 9 * c1 * c2 + 9 * c2 * c3 + 9 * c3 * r2
                          + c1 + c2 + c3 + r2)

    y = pl.pallas_call(
        kernel,
        out_shape=jax.ShapeDtypeStruct((N, r2, HW), jnp.float32),
        grid=(N,),
        in_specs=[
            pl.BlockSpec((1, 1, HW), lambda n: (n, 0, 0)),      # image
            full((25, HW)),                                     # edge masks
            full((c1, 25)), full((c1, 1)),                      # conv1
            full((c2, 9 * c1)), full((c2, 1)),                  # conv2
            full((c3, 9 * c2)), full((c3, 1)),                  # conv3
            full((r2, 9 * c3)), full((r2, 1)),                  # conv4
        ],
        out_specs=pl.BlockSpec((1, r2, HW), lambda n: (n, 0, 0)),
        scratch_shapes=[pltpu.VMEM((9 * c1, HW), jnp.float32)],  # shared im2col
        compiler_params=pltpu.CompilerParams(
            dimension_semantics=("parallel",)),                 # batch across TCs
        cost_estimate=pl.CostEstimate(
            flops=flops, transcendentals=0, bytes_accessed=bytes_accessed),
    )(x_flat, masks,
      as_mat(w1), b1.reshape(-1, 1),
      as_mat(w2), b2.reshape(-1, 1),
      as_mat(w3), b3.reshape(-1, 1),
      as_mat(w4), b4.reshape(-1, 1))

    # PixelShuffle (pure layout op, left to XLA): (N, r^2, HW) -> (N,1,H*r,W*r)
    y = y.reshape(N, r, r, H, W)
    y = jnp.transpose(y, (0, 3, 1, 4, 2))
    return y.reshape(N, 1, H * r, W * r)


# ----------------------------------------------------------------------------
# Parameter initialization (deterministic, mimics orthogonal_ with relu gain)
# ----------------------------------------------------------------------------
def _orthogonal(key, rows, cols, gain):
    big, small = max(rows, cols), min(rows, cols)
    a = jax.random.normal(key, (big, small), jnp.float32)
    q, r = jnp.linalg.qr(a)
    q = q * jnp.sign(jnp.diag(r))[None, :]
    if rows < cols:
        q = q.T
    return (gain * q).astype(jnp.float32)


def _conv_params(key, cin, cout, k, gain):
    kw_key, kb_key = jax.random.split(key)
    w = _orthogonal(kw_key, cout, cin * k * k, gain).reshape(cout, cin, k, k)
    w_hwio = jnp.transpose(w, (2, 3, 1, 0))  # OIHW -> HWIO
    bound = 1.0 / np.sqrt(cin * k * k)
    b = jax.random.uniform(kb_key, (cout,), jnp.float32, -bound, bound)
    return w_hwio, b


def init_params(key, upscale_factor):
    relu_gain = float(np.sqrt(2.0))  # init.calculate_gain('relu')
    k1, k2, k3, k4 = jax.random.split(key, 4)
    return {
        "conv1": _conv_params(k1, 1, 64, 5, relu_gain),
        "conv2": _conv_params(k2, 64, 64, 3, relu_gain),
        "conv3": _conv_params(k3, 64, 32, 3, relu_gain),
        "conv4": _conv_params(k4, 32, upscale_factor ** 2, 3, 1.0),
    }


# ----------------------------------------------------------------------------
# Pure-JAX reference (lax conv) for correctness checking
# ----------------------------------------------------------------------------
def reference_forward(x_nchw, params, r):
    x = x_nchw
    for name, relu in [("conv1", True), ("conv2", True),
                       ("conv3", True), ("conv4", False)]:
        w, b = params[name]
        x = lax.conv_general_dilated(
            x, w, window_strides=(1, 1), padding="SAME",
            dimension_numbers=("NCHW", "HWIO", "NCHW"))
        x = x + b.reshape(1, -1, 1, 1)
        if relu:
            x = jnp.maximum(x, 0.0)
    N, C, H, W = x.shape  # C == r*r
    x = x.reshape(N, r, r, H, W)
    x = jnp.transpose(x, (0, 3, 1, 4, 2))   # (N, H, i, W, j)
    return x.reshape(N, 1, H * r, W * r)


# ----------------------------------------------------------------------------
if __name__ == "__main__":
    upscale_factor = 3
    N, C, H, W = 2, 1, 16, 16  # small shapes; module implies (N, 1, H, W) input

    x = jax.random.normal(jax.random.PRNGKey(0), (N, C, H, W), jnp.float32)
    params = init_params(jax.random.PRNGKey(1), upscale_factor)

    fwd = jax.jit(lambda xx, pp: super_resolution_forward(xx, pp, upscale_factor))
    out = jax.block_until_ready(fwd(x, params))
    assert out.shape == (N, 1, H * upscale_factor, W * upscale_factor), out.shape

    ref = reference_forward(x, params, upscale_factor)
    np.testing.assert_allclose(np.asarray(out), np.asarray(ref), rtol=1e-4, atol=5e-4)

    print("KERNEL_OK")
</pallas_src>

<mosaic_0001>
module attributes {stable_mosaic.version = 11 : i64} {
  func.func @kernel(%arg0: i32, %arg1: memref<1x1x256xf32, #tpu.memory_space<vmem>>, %arg2: memref<25x256xf32, #tpu.memory_space<vmem>>, %arg3: memref<64x25xf32, #tpu.memory_space<vmem>>, %arg4: memref<64x1xf32, #tpu.memory_space<vmem>>, %arg5: memref<64x576xf32, #tpu.memory_space<vmem>>, %arg6: memref<64x1xf32, #tpu.memory_space<vmem>>, %arg7: memref<32x576xf32, #tpu.memory_space<vmem>>, %arg8: memref<32x1xf32, #tpu.memory_space<vmem>>, %arg9: memref<9x288xf32, #tpu.memory_space<vmem>>, %arg10: memref<9x1xf32, #tpu.memory_space<vmem>>, %arg11: memref<1x9x256xf32, #tpu.memory_space<vmem>>, %arg12: memref<576x256xf32, #tpu.memory_space<vmem>>) attributes {dimension_semantics = [#tpu.dimension_semantics<parallel>], iteration_bounds = array<i64: 2>, scalar_prefetch = 0 : i64, scratch_operands = 1 : i64, tpu.core_type = #tpu.core_type<tc>, window_params = [{transform_indices = @transform_0, window_bounds = array<i64: 1, 1, 256>}, {pipeline_mode = #tpu.pipeline_mode<synchronous>, transform_indices = @transform_1, window_bounds = array<i64: 25, 256>}, {pipeline_mode = #tpu.pipeline_mode<synchronous>, transform_indices = @transform_2, window_bounds = array<i64: 64, 25>}, {pipeline_mode = #tpu.pipeline_mode<synchronous>, transform_indices = @transform_3, window_bounds = array<i64: 64, 1>}, {pipeline_mode = #tpu.pipeline_mode<synchronous>, transform_indices = @transform_4, window_bounds = array<i64: 64, 576>}, {pipeline_mode = #tpu.pipeline_mode<synchronous>, transform_indices = @transform_5, window_bounds = array<i64: 64, 1>}, {pipeline_mode = #tpu.pipeline_mode<synchronous>, transform_indices = @transform_6, window_bounds = array<i64: 32, 576>}, {pipeline_mode = #tpu.pipeline_mode<synchronous>, transform_indices = @transform_7, window_bounds = array<i64: 32, 1>}, {pipeline_mode = #tpu.pipeline_mode<synchronous>, transform_indices = @transform_8, window_bounds = array<i64: 9, 288>}, {pipeline_mode = #tpu.pipeline_mode<synchronous>, transform_indices = @transform_9, window_bounds = array<i64: 9, 1>}, {transform_indices = @transform_10, window_bounds = array<i64: 1, 9, 256>}]} {
    %c0 = arith.constant 0 : index
    %c0_0 = arith.constant 0 : index
    %c0_1 = arith.constant 0 : index
    %0 = vector.load %arg1[%c0, %c0_0, %c0_1] : memref<1x1x256xf32, #tpu.memory_space<vmem>>, vector<1x1x256xf32>
    %1 = vector.shape_cast %0 : vector<1x1x256xf32> to vector<1x256xf32>
    %c34_i32 = arith.constant 34 : i32
    %2 = tpu.dynamic_rotate %1 by %c34_i32 dim 1 : vector<1x256xf32>, i32 -> vector<1x256xf32>
    %c0_2 = arith.constant 0 : index
    %c0_3 = arith.constant 0 : index
    %3 = vector.load %arg2[%c0_2, %c0_3] : memref<25x256xf32, #tpu.memory_space<vmem>>, vector<1x256xf32>
    %4 = arith.mulf %2, %3 : vector<1x256xf32>
    %c0_4 = arith.constant 0 : index
    %c0_5 = arith.constant 0 : index
    %5 = vector.load %arg12[%c0_4, %c0_5] : memref<576x256xf32, #tpu.memory_space<vmem>>, vector<1x256xf32>
    tpu.vector_store %arg12[%c0_4, %c0_5], %4 {strides = array<i32>} : memref<576x256xf32, #tpu.memory_space<vmem>>, vector<1x256xf32>,
    %c33_i32 = arith.constant 33 : i32
    %6 = tpu.dynamic_rotate %1 by %c33_i32 dim 1 : vector<1x256xf32>, i32 -> vector<1x256xf32>
    %c1 = arith.constant 1 : index
    %c0_6 = arith.constant 0 : index
    %7 = vector.load %arg2[%c1, %c0_6] : memref<25x256xf32, #tpu.memory_space<vmem>>, vector<1x256xf32>
    %8 = arith.mulf %6, %7 : vector<1x256xf32>
    %c1_7 = arith.constant 1 : index
    %c0_8 = arith.constant 0 : index
    %9 = vector.load %arg12[%c1_7, %c0_8] : memref<576x256xf32, #tpu.memory_space<vmem>>, vector<1x256xf32>
    tpu.vector_store %arg12[%c1_7, %c0_8], %8 {strides = array<i32>} : memref<576x256xf32, #tpu.memory_space<vmem>>, vector<1x256xf32>,
    %c32_i32 = arith.constant 32 : i32
    %10 = tpu.dynamic_rotate %1 by %c32_i32 dim 1 : vector<1x256xf32>, i32 -> vector<1x256xf32>
    %c2 = arith.constant 2 : index
    %c0_9 = arith.constant 0 : index
    %11 = vector.load %arg2[%c2, %c0_9] : memref<25x256xf32, #tpu.memory_space<vmem>>, vector<1x256xf32>
    %12 = arith.mulf %10, %11 : vector<1x256xf32>
    %c2_10 = arith.constant 2 : index
    %c0_11 = arith.constant 0 : index
    %13 = vector.load %arg12[%c2_10, %c0_11] : memref<576x256xf32, #tpu.memory_space<vmem>>, vector<1x256xf32>
    tpu.vector_store %arg12[%c2_10, %c0_11], %12 {strides = array<i32>} : memref<576x256xf32, #tpu.memory_space<vmem>>, vector<1x256xf32>,
    %c31_i32 = arith.constant 31 : i32
    %14 = tpu.dynamic_rotate %1 by %c31_i32 dim 1 : vector<1x256xf32>, i32 -> vector<1x256xf32>
    %c3 = arith.constant 3 : index
    %c0_12 = arith.constant 0 : index
    %15 = vector.load %arg2[%c3, %c0_12] : memref<25x256xf32, #tpu.memory_space<vmem>>, vector<1x256xf32>
    %16 = arith.mulf %14, %15 : vector<1x256xf32>
    %c3_13 = arith.constant 3 : index
    %c0_14 = arith.constant 0 : index
    %17 = vector.load %arg12[%c3_13, %c0_14] : memref<576x256xf32, #tpu.memory_space<vmem>>, vector<1x256xf32>
    tpu.vector_store %arg12[%c3_13, %c0_14], %16 {strides = array<i32>} : memref<576x256xf32, #tpu.memory_space<vmem>>, vector<1x256xf32>,
    %c30_i32 = arith.constant 30 : i32
    %18 = tpu.dynamic_rotate %1 by %c30_i32 dim 1 : vector<1x256xf32>, i32 -> vector<1x256xf32>
    %c4 = arith.constant 4 : index
    %c0_15 = arith.constant 0 : index
    %19 = vector.load %arg2[%c4, %c0_15] : memref<25x256xf32, #tpu.memory_space<vmem>>, vector<1x256xf32>
    %20 = arith.mulf %18, %19 : vector<1x256xf32>
    %c4_16 = arith.constant 4 : index
    %c0_17 = arith.constant 0 : index
    %21 = vector.load %arg12[%c4_16, %c0_17] : memref<576x256xf32, #tpu.memory_space<vmem>>, vector<1x256xf32>
    tpu.vector_store %arg12[%c4_16, %c0_17], %20 {strides = array<i32>} : memref<576x256xf32, #tpu.memory_space<vmem>>, vector<1x256xf32>,
    %c18_i32 = arith.constant 18 : i32
    %22 = tpu.dynamic_rotate %1 by %c18_i32 dim 1 : vector<1x256xf32>, i32 -> vector<1x256xf32>
    %c5 = arith.constant 5 : index
    %c0_18 = arith.constant 0 : index
    %23 = vector.load %arg2[%c5, %c0_18] : memref<25x256xf32, #tpu.memory_space<vmem>>, vector<1x256xf32>
    %24 = arith.mulf %22, %23 : vector<1x256xf32>
    %c5_19 = arith.constant 5 : index
    %c0_20 = arith.constant 0 : index
    %25 = vector.load %arg12[%c5_19, %c0_20] : memref<576x256xf32, #tpu.memory_space<vmem>>, vector<1x256xf32>
    tpu.vector_store %arg12[%c5_19, %c0_20], %24 {strides = array<i32>} : memref<576x256xf32, #tpu.memory_space<vmem>>, vector<1x256xf32>,
    %c17_i32 = arith.constant 17 : i32
    %26 = tpu.dynamic_rotate %1 by %c17_i32 dim 1 : vector<1x256xf32>, i32 -> vector<1x256xf32>
    %c6 = arith.constant 6 : index
    %c0_21 = arith.constant 0 : index
    %27 = vector.load %arg2[%c6, %c0_21] : memref<25x256xf32, #tpu.memory_space<vmem>>, vector<1x256xf32>
    %28 = arith.mulf %26, %27 : vector<1x256xf32>
    %c6_22 = arith.constant 6 : index
    %c0_23 = arith.constant 0 : index
    %29 = vector.load %arg12[%c6_22, %c0_23] : memref<576x256xf32, #tpu.memory_space<vmem>>, vector<1x256xf32>
    tpu.vector_store %arg12[%c6_22, %c0_23], %28 {strides = array<i32>} : memref<576x256xf32, #tpu.memory_space<vmem>>, vector<1x256xf32>,
    %c16_i32 = arith.constant 16 : i32
    %30 = tpu.dynamic_rotate %1 by %c16_i32 dim 1 : vector<1x256xf32>, i32 -> vector<1x256xf32>
    %c7 = arith.constant 7 : index
    %c0_24 = arith.constant 0 : index
    %31 = vector.load %arg2[%c7, %c0_24] : memref<25x256xf32, #tpu.memory_space<vmem>>, vector<1x256xf32>
    %32 = arith.mulf %30, %31 : vector<1x256xf32>
    %c7_25 = arith.constant 7 : index
    %c0_26 = arith.constant 0 : index
    %33 = vector.load %arg12[%c7_25, %c0_26] : memref<576x256xf32, #tpu.memory_space<vmem>>, vector<1x256xf32>
    tpu.vector_store %arg12[%c7_25, %c0_26], %32 {strides = array<i32>} : memref<576x256xf32, #tpu.memory_space<vmem>>, vector<1x256xf32>,
    %c15_i32 = arith.constant 15 : i32
    %34 = tpu.dynamic_rotate %1 by %c15_i32 dim 1 : vector<1x256xf32>, i32 -> vector<1x256xf32>
    %c8 = arith.constant 8 : index
    %c0_27 = arith.constant 0 : index
    %35 = vector.load %arg2[%c8, %c0_27] : memref<25x256xf32, #tpu.memory_space<vmem>>, vector<1x256xf32>
    %36 = arith.mulf %34, %35 : vector<1x256xf32>
    %c8_28 = arith.constant 8 : index
    %c0_29 = arith.constant 0 : index
    %37 = vector.load %arg12[%c8_28, %c0_29] : memref<576x256xf32, #tpu.memory_space<vmem>>, vector<1x256xf32>
    tpu.vector_store %arg12[%c8_28, %c0_29], %36 {strides = array<i32>} : memref<576x256xf32, #tpu.memory_space<vmem>>, vector<1x256xf32>,
    %c14_i32 = arith.constant 14 : i32
    %38 = tpu.dynamic_rotate %1 by %c14_i32 dim 1 : vector<1x256xf32>, i32 -> vector<1x256xf32>
    %c9 = arith.constant 9 : index
    %c0_30 = arith.constant 0 : index
    %39 = vector.load %arg2[%c9, %c0_30] : memref<25x256xf32, #tpu.memory_space<vmem>>, vector<1x256xf32>
    %40 = arith.mulf %38, %39 : vector<1x256xf32>
    %c9_31 = arith.constant 9 : index
    %c0_32 = arith.constant 0 : index
    %41 = vector.load %arg12[%c9_31, %c0_32] : memref<576x256xf32, #tpu.memory_space<vmem>>, vector<1x256xf32>
    tpu.vector_store %arg12[%c9_31, %c0_32], %40 {strides = array<i32>} : memref<576x256xf32, #tpu.memory_space<vmem>>, vector<1x256xf32>,
    %c2_i32 = arith.constant 2 : i32
    %42 = tpu.dynamic_rotate %1 by %c2_i32 dim 1 : vector<1x256xf32>, i32 -> vector<1x256xf32>
    %c10 = arith.constant 10 : index
    %c0_33 = arith.constant 0 : index
    %43 = vector.load %arg2[%c10, %c0_33] : memref<25x256xf32, #tpu.memory_space<vmem>>, vector<1x256xf32>
    %44 = arith.mulf %42, %43 : vector<1x256xf32>
    %c10_34 = arith.constant 10 : index
    %c0_35 = arith.constant 0 : index
    %45 = vector.load %arg12[%c10_34, %c0_35] : memref<576x256xf32, #tpu.memory_space<vmem>>, vector<1x256xf32>
    tpu.vector_store %arg12[%c10_34, %c0_35], %44 {strides = array<i32>} : memref<576x256xf32, #tpu.memory_space<vmem>>, vector<1x256xf32>,
    %c1_i32 = arith.constant 1 : i32
    %46 = tpu.dynamic_rotate %1 by %c1_i32 dim 1 : vector<1x256xf32>, i32 -> vector<1x256xf32>
    %c11 = arith.constant 11 : index
    %c0_36 = arith.constant 0 : index
    %47 = vector.load %arg2[%c11, %c0_36] : memref<25x256xf32, #tpu.memory_space<vmem>>, vector<1x256xf32>
    %48 = arith.mulf %46, %47 : vector<1x256xf32>
    %c11_37 = arith.constant 11 : index
    %c0_38 = arith.constant 0 : index
    %49 = vector.load %arg12[%c11_37, %c0_38] : memref<576x256xf32, #tpu.memory_space<vmem>>, vector<1x256xf32>
    tpu.vector_store %arg12[%c11_37, %c0_38], %48 {strides = array<i32>} : memref<576x256xf32, #tpu.memory_space<vmem>>, vector<1x256xf32>,
    %c12 = arith.constant 12 : index
    %c0_39 = arith.constant 0 : index
    %50 = vector.load %arg12[%c12, %c0_39] : memref<576x256xf32, #tpu.memory_space<vmem>>, vector<1x256xf32>
    tpu.vector_store %arg12[%c12, %c0_39], %1 {strides = array<i32>} : memref<576x256xf32, #tpu.memory_space<vmem>>, vector<1x256xf32>,
    %c255_i32 = arith.constant 255 : i32
    %51 = tpu.dynamic_rotate %1 by %c255_i32 dim 1 : vector<1x256xf32>, i32 -> vector<1x256xf32>
    %c13 = arith.constant 13 : index
    %c0_40 = arith.constant 0 : index
    %52 = vector.load %arg2[%c13, %c0_40] : memref<25x256xf32, #tpu.memory_space<vmem>>, vector<1x256xf32>
    %53 = arith.mulf %51, %52 : vector<1x256xf32>
    %c13_41 = arith.constant 13 : index
    %c0_42 = arith.constant 0 : index
    %54 = vector.load %arg12[%c13_41, %c0_42] : memref<576x256xf32, #tpu.memory_space<vmem>>, vector<1x256xf32>
    tpu.vector_store %arg12[%c13_41, %c0_42], %53 {strides = array<i32>} : memref<576x256xf32, #tpu.memory_space<vmem>>, vector<1x256xf32>,
    %c254_i32 = arith.constant 254 : i32
    %55 = tpu.dynamic_rotate %1 by %c254_i32 dim 1 : vector<1x256xf32>, i32 -> vector<1x256xf32>
    %c14 = arith.constant 14 : index
    %c0_43 = arith.constant 0 : index
    %56 = vector.load %arg2[%c14, %c0_43] : memref<25x256xf32, #tpu.memory_space<vmem>>, vector<1x256xf32>
    %57 = arith.mulf %55, %56 : vector<1x256xf32>
    %c14_44 = arith.constant 14 : index
    %c0_45 = arith.constant 0 : index
    %58 = vector.load %arg12[%c14_44, %c0_45] : memref<576x256xf32, #tpu.memory_space<vmem>>, vector<1x256xf32>
    tpu.vector_store %arg12[%c14_44, %c0_45], %57 {strides = array<i32>} : memref<576x256xf32, #tpu.memory_space<vmem>>, vector<1x256xf32>,
    %c242_i32 = arith.constant 242 : i32
    %59 = tpu.dynamic_rotate %1 by %c242_i32 dim 1 : vector<1x256xf32>, i32 -> vector<1x256xf32>
    %c15 = arith.constant 15 : index
    %c0_46 = arith.constant 0 : index
    %60 = vector.load %arg2[%c15, %c0_46] : memref<25x256xf32, #tpu.memory_space<vmem>>, vector<1x256xf32>
    %61 = arith.mulf %59, %60 : vector<1x256xf32>
    %c15_47 = arith.constant 15 : index
    %c0_48 = arith.constant 0 : index
    %62 = vector.load %arg12[%c15_47, %c0_48] : memref<576x256xf32, #tpu.memory_space<vmem>>, vector<1x256xf32>
    tpu.vector_store %arg12[%c15_47, %c0_48], %61 {strides = array<i32>} : memref<576x256xf32, #tpu.memory_space<vmem>>, vector<1x256xf32>,
    %c241_i32 = arith.constant 241 : i32
    %63 = tpu.dynamic_rotate %1 by %c241_i32 dim 1 : vector<1x256xf32>, i32 -> vector<1x256xf32>
    %c16 = arith.constant 16 : index
    %c0_49 = arith.constant 0 : index
    %64 = vector.load %arg2[%c16, %c0_49] : memref<25x256xf32, #tpu.memory_space<vmem>>, vector<1x256xf32>
    %65 = arith.mulf %63, %64 : vector<1x256xf32>
    %c16_50 = arith.constant 16 : index
    %c0_51 = arith.constant 0 : index
    %66 = vector.load %arg12[%c16_50, %c0_51] : memref<576x256xf32, #tpu.memory_space<vmem>>, vector<1x256xf32>
    tpu.vector_store %arg12[%c16_50, %c0_51], %65 {strides = array<i32>} : memref<576x256xf32, #tpu.memory_space<vmem>>, vector<1x256xf32>,
    %c240_i32 = arith.constant 240 : i32
    %67 = tpu.dynamic_rotate %1 by %c240_i32 dim 1 : vector<1x256xf32>, i32 -> vector<1x256xf32>
    %c17 = arith.constant 17 : index
    %c0_52 = arith.constant 0 : index
    %68 = vector.load %arg2[%c17, %c0_52] : memref<25x256xf32, #tpu.memory_space<vmem>>, vector<1x256xf32>
    %69 = arith.mulf %67, %68 : vector<1x256xf32>
    %c17_53 = arith.constant 17 : index
    %c0_54 = arith.constant 0 : index
    %70 = vector.load %arg12[%c17_53, %c0_54] : memref<576x256xf32, #tpu.memory_space<vmem>>, vector<1x256xf32>
    tpu.vector_store %arg12[%c17_53, %c0_54], %69 {strides = array<i32>} : memref<576x256xf32, #tpu.memory_space<vmem>>, vector<1x256xf32>,
    %c239_i32 = arith.constant 239 : i32
    %71 = tpu.dynamic_rotate %1 by %c239_i32 dim 1 : vector<1x256xf32>, i32 -> vector<1x256xf32>
    %c18 = arith.constant 18 : index
    %c0_55 = arith.constant 0 : index
    %72 = vector.load %arg2[%c18, %c0_55] : memref<25x256xf32, #tpu.memory_space<vmem>>, vector<1x256xf32>
    %73 = arith.mulf %71, %72 : vector<1x256xf32>
    %c18_56 = arith.constant 18 : index
    %c0_57 = arith.constant 0 : index
    %74 = vector.load %arg12[%c18_56, %c0_57] : memref<576x256xf32, #tpu.memory_space<vmem>>, vector<1x256xf32>
    tpu.vector_store %arg12[%c18_56, %c0_57], %73 {strides = array<i32>} : memref<576x256xf32, #tpu.memory_space<vmem>>, vector<1x256xf32>,
    %c238_i32 = arith.constant 238 : i32
    %75 = tpu.dynamic_rotate %1 by %c238_i32 dim 1 : vector<1x256xf32>, i32 -> vector<1x256xf32>
    %c19 = arith.constant 19 : index
    %c0_58 = arith.constant 0 : index
    %76 = vector.load %arg2[%c19, %c0_58] : memref<25x256xf32, #tpu.memory_space<vmem>>, vector<1x256xf32>
    %77 = arith.mulf %75, %76 : vector<1x256xf32>
    %c19_59 = arith.constant 19 : index
    %c0_60 = arith.constant 0 : index
    %78 = vector.load %arg12[%c19_59, %c0_60] : memref<576x256xf32, #tpu.memory_space<vmem>>, vector<1x256xf32>
    tpu.vector_store %arg12[%c19_59, %c0_60], %77 {strides = array<i32>} : memref<576x256xf32, #tpu.memory_space<vmem>>, vector<1x256xf32>,
    %c226_i32 = arith.constant 226 : i32
    %79 = tpu.dynamic_rotate %1 by %c226_i32 dim 1 : vector<1x256xf32>, i32 -> vector<1x256xf32>
    %c20 = arith.constant 20 : index
    %c0_61 = arith.constant 0 : index
    %80 = vector.load %arg2[%c20, %c0_61] : memref<25x256xf32, #tpu.memory_space<vmem>>, vector<1x256xf32>
    %81 = arith.mulf %79, %80 : vector<1x256xf32>
    %c20_62 = arith.constant 20 : index
    %c0_63 = arith.constant 0 : index
    %82 = vector.load %arg12[%c20_62, %c0_63] : memref<576x256xf32, #tpu.memory_space<vmem>>, vector<1x256xf32>
    tpu.vector_store %arg12[%c20_62, %c0_63], %81 {strides = array<i32>} : memref<576x256xf32, #tpu.memory_space<vmem>>, vector<1x256xf32>,
    %c225_i32 = arith.constant 225 : i32
    %83 = tpu.dynamic_rotate %1 by %c225_i32 dim 1 : vector<1x256xf32>, i32 -> vector<1x256xf32>
    %c21 = arith.constant 21 : index
    %c0_64 = arith.constant 0 : index
    %84 = vector.load %arg2[%c21, %c0_64] : memref<25x256xf32, #tpu.memory_space<vmem>>, vector<1x256xf32>
    %85 = arith.mulf %83, %84 : vector<1x256xf32>
    %c21_65 = arith.constant 21 : index
    %c0_66 = arith.constant 0 : index
    %86 = vector.load %arg12[%c21_65, %c0_66] : memref<576x256xf32, #tpu.memory_space<vmem>>, vector<1x256xf32>
    tpu.vector_store %arg12[%c21_65, %c0_66], %85 {strides = array<i32>} : memref<576x256xf32, #tpu.memory_space<vmem>>, vector<1x256xf32>,
    %c224_i32 = arith.constant 224 : i32
    %87 = tpu.dynamic_rotate %1 by %c224_i32 dim 1 : vector<1x256xf32>, i32 -> vector<1x256xf32>
    %c22 = arith.constant 22 : index
    %c0_67 = arith.constant 0 : index
    %88 = vector.load %arg2[%c22, %c0_67] : memref<25x256xf32, #tpu.memory_space<vmem>>, vector<1x256xf32>
    %89 = arith.mulf %87, %88 : vector<1x256xf32>
    %c22_68 = arith.constant 22 : index
    %c0_69 = arith.constant 0 : index
    %90 = vector.load %arg12[%c22_68, %c0_69] : memref<576x256xf32, #tpu.memory_space<vmem>>, vector<1x256xf32>
    tpu.vector_store %arg12[%c22_68, %c0_69], %89 {strides = array<i32>} : memref<576x256xf32, #tpu.memory_space<vmem>>, vector<1x256xf32>,
    %c223_i32 = arith.constant 223 : i32
    %91 = tpu.dynamic_rotate %1 by %c223_i32 dim 1 : vector<1x256xf32>, i32 -> vector<1x256xf32>
    %c23 = arith.constant 23 : index
    %c0_70 = arith.constant 0 : index
    %92 = vector.load %arg2[%c23, %c0_70] : memref<25x256xf32, #tpu.memory_space<vmem>>, vector<1x256xf32>
    %93 = arith.mulf %91, %92 : vector<1x256xf32>
    %c23_71 = arith.constant 23 : index
    %c0_72 = arith.constant 0 : index
    %94 = vector.load %arg12[%c23_71, %c0_72] : memref<576x256xf32, #tpu.memory_space<vmem>>, vector<1x256xf32>
    tpu.vector_store %arg12[%c23_71, %c0_72], %93 {strides = array<i32>} : memref<576x256xf32, #tpu.memory_space<vmem>>, vector<1x256xf32>,
    %c222_i32 = arith.constant 222 : i32
    %95 = tpu.dynamic_rotate %1 by %c222_i32 dim 1 : vector<1x256xf32>, i32 -> vector<1x256xf32>
    %c24 = arith.constant 24 : index
    %c0_73 = arith.constant 0 : index
    %96 = vector.load %arg2[%c24, %c0_73] : memref<25x256xf32, #tpu.memory_space<vmem>>, vector<1x256xf32>
    %97 = arith.mulf %95, %96 : vector<1x256xf32>
    %c24_74 = arith.constant 24 : index
    %c0_75 = arith.constant 0 : index
    %98 = vector.load %arg12[%c24_74, %c0_75] : memref<576x256xf32, #tpu.memory_space<vmem>>, vector<1x256xf32>
    tpu.vector_store %arg12[%c24_74, %c0_75], %97 {strides = array<i32>} : memref<576x256xf32, #tpu.memory_space<vmem>>, vector<1x256xf32>,
    %c0_76 = arith.constant 0 : index
    %c0_77 = arith.constant 0 : index
    %99 = vector.load %arg3[%c0_76, %c0_77] : memref<64x25xf32, #tpu.memory_space<vmem>>, vector<64x25xf32>
    %c0_78 = arith.constant 0 : index
    %c0_79 = arith.constant 0 : index
    %100 = vector.load %arg12[%c0_78, %c0_79] : memref<576x256xf32, #tpu.memory_space<vmem>>, vector<25x256xf32>
    %cst = arith.constant dense<0.000000e+00> : vector<64x256xf32>
    %101 = tpu.matmul %99, %100, %cst {dimension_numbers = #tpu.dot_dimension_numbers<[1], [0], [0], [1], [0, 0, 1, 1], [], []>} : vector<64x25xf32>, vector<25x256xf32>, vector<64x256xf32> -> vector<64x256xf32>
    %c0_80 = arith.constant 0 : index
    %c0_81 = arith.constant 0 : index
    %102 = vector.load %arg4[%c0_80, %c0_81] : memref<64x1xf32, #tpu.memory_space<vmem>>, vector<64x1xf32>
    %103 = vector.broadcast %102 : vector<64x1xf32> to vector<64x256xf32>
    %104 = arith.addf %101, %103 : vector<64x256xf32>
    %cst_82 = arith.constant 0.000000e+00 : f32
    %105 = vector.broadcast %cst_82 : f32 to vector<64x256xf32>
    %106 = arith.maximumf %104, %105 : vector<64x256xf32>
    %c17_i32_83 = arith.constant 17 : i32
    %107 = tpu.dynamic_rotate %106 by %c17_i32_83 dim 1 : vector<64x256xf32>, i32 -> vector<64x256xf32>
    %c6_84 = arith.constant 6 : index
    %c0_85 = arith.constant 0 : index
    %108 = vector.load %arg2[%c6_84, %c0_85] : memref<25x256xf32, #tpu.memory_space<vmem>>, vector<1x256xf32>
    %109 = vector.broadcast %108 : vector<1x256xf32> to vector<64x256xf32>
    %110 = arith.mulf %107, %109 : vector<64x256xf32>
    %c0_86 = arith.constant 0 : index
    %c0_87 = arith.constant 0 : index
    %111 = vector.load %arg12[%c0_86, %c0_87] : memref<576x256xf32, #tpu.memory_space<vmem>>, vector<64x256xf32>
    tpu.vector_store %arg12[%c0_86, %c0_87], %110 {strides = array<i32>} : memref<576x256xf32, #tpu.memory_space<vmem>>, vector<64x256xf32>,
    %c16_i32_88 = arith.constant 16 : i32
    %112 = tpu.dynamic_rotate %106 by %c16_i32_88 dim 1 : vector<64x256xf32>, i32 -> vector<64x256xf32>
    %c7_89 = arith.constant 7 : index
    %c0_90 = arith.constant 0 : index
    %113 = vector.load %arg2[%c7_89, %c0_90] : memref<25x256xf32, #tpu.memory_space<vmem>>, vector<1x256xf32>
    %114 = vector.broadcast %113 : vector<1x256xf32> to vector<64x256xf32>
    %115 = arith.mulf %112, %114 : vector<64x256xf32>
    %c64 = arith.constant 64 : index
    %c0_91 = arith.constant 0 : index
    %116 = vector.load %arg12[%c64, %c0_91] : memref<576x256xf32, #tpu.memory_space<vmem>>, vector<64x256xf32>
    tpu.vector_store %arg12[%c64, %c0_91], %115 {strides = array<i32>} : memref<576x256xf32, #tpu.memory_space<vmem>>, vector<64x256xf32>,
    %c15_i32_92 = arith.constant 15 : i32
    %117 = tpu.dynamic_rotate %106 by %c15_i32_92 dim 1 : vector<64x256xf32>, i32 -> vector<64x256xf32>
    %c8_93 = arith.constant 8 : index
    %c0_94 = arith.constant 0 : index
    %118 = vector.load %arg2[%c8_93, %c0_94] : memref<25x256xf32, #tpu.memory_space<vmem>>, vector<1x256xf32>
    %119 = vector.broadcast %118 : vector<1x256xf32> to vector<64x256xf32>
    %120 = arith.mulf %117, %119 : vector<64x256xf32>
    %c128 = arith.constant 128 : index
    %c0_95 = arith.constant 0 : index
    %121 = vector.load %arg12[%c128, %c0_95] : memref<576x256xf32, #tpu.memory_space<vmem>>, vector<64x256xf32>
    tpu.vector_store %arg12[%c128, %c0_95], %120 {strides = array<i32>} : memref<576x256xf32, #tpu.memory_space<vmem>>, vector<64x256xf32>,
    %c1_i32_96 = arith.constant 1 : i32
    %122 = tpu.dynamic_rotate %106 by %c1_i32_96 dim 1 : vector<64x256xf32>, i32 -> vector<64x256xf32>
    %c11_97 = arith.constant 11 : index
    %c0_98 = arith.constant 0 : index
    %123 = vector.load %arg2[%c11_97, %c0_98] : memref<25x256xf32, #tpu.memory_space<vmem>>, vector<1x256xf32>
    %124 = vector.broadcast %123 : vector<1x256xf32> to vector<64x256xf32>
    %125 = arith.mulf %122, %124 : vector<64x256xf32>
    %c192 = arith.constant 192 : index
    %c0_99 = arith.constant 0 : index
    %126 = vector.load %arg12[%c192, %c0_99] : memref<576x256xf32, #tpu.memory_space<vmem>>, vector<64x256xf32>
    tpu.vector_store %arg12[%c192, %c0_99], %125 {strides = array<i32>} : memref<576x256xf32, #tpu.memory_space<vmem>>, vector<64x256xf32>,
    %c256 = arith.constant 256 : index
    %c0_100 = arith.constant 0 : index
    %127 = vector.load %arg12[%c256, %c0_100] : memref<576x256xf32, #tpu.memory_space<vmem>>, vector<64x256xf32>
    tpu.vector_store %arg12[%c256, %c0_100], %106 {strides = array<i32>} : memref<576x256xf32, #tpu.memory_space<vmem>>, vector<64x256xf32>,
    %c255_i32_101 = arith.constant 255 : i32
    %128 = tpu.dynamic_rotate %106 by %c255_i32_101 dim 1 : vector<64x256xf32>, i32 -> vector<64x256xf32>
    %c13_102 = arith.constant 13 : index
    %c0_103 = arith.constant 0 : index
    %129 = vector.load %arg2[%c13_102, %c0_103] : memref<25x256xf32, #tpu.memory_space<vmem>>, vector<1x256xf32>
    %130 = vector.broadcast %129 : vector<1x256xf32> to vector<64x256xf32>
    %131 = arith.mulf %128, %130 : vector<64x256xf32>
    %c320 = arith.constant 320 : index
    %c0_104 = arith.constant 0 : index
    %132 = vector.load %arg12[%c320, %c0_104] : memref<576x256xf32, #tpu.memory_space<vmem>>, vector<64x256xf32>
    tpu.vector_store %arg12[%c320, %c0_104], %131 {strides = array<i32>} : memref<576x256xf32, #tpu.memory_space<vmem>>, vector<64x256xf32>,
    %c241_i32_105 = arith.constant 241 : i32
    %133 = tpu.dynamic_rotate %106 by %c241_i32_105 dim 1 : vector<64x256xf32>, i32 -> vector<64x256xf32>
    %c16_106 = arith.constant 16 : index
    %c0_107 = arith.constant 0 : index
    %134 = vector.load %arg2[%c16_106, %c0_107] : memref<25x256xf32, #tpu.memory_space<vmem>>, vector<1x256xf32>
    %135 = vector.broadcast %134 : vector<1x256xf32> to vector<64x256xf32>
    %136 = arith.mulf %133, %135 : vector<64x256xf32>
    %c384 = arith.constant 384 : index
    %c0_108 = arith.constant 0 : index
    %137 = vector.load %arg12[%c384, %c0_108] : memref<576x256xf32, #tpu.memory_space<vmem>>, vector<64x256xf32>
    tpu.vector_store %arg12[%c384, %c0_108], %136 {strides = array<i32>} : memref<576x256xf32, #tpu.memory_space<vmem>>, vector<64x256xf32>,
    %c240_i32_109 = arith.constant 240 : i32
    %138 = tpu.dynamic_rotate %106 by %c240_i32_109 dim 1 : vector<64x256xf32>, i32 -> vector<64x256xf32>
    %c17_110 = arith.constant 17 : index
    %c0_111 = arith.constant 0 : index
    %139 = vector.load %arg2[%c17_110, %c0_111] : memref<25x256xf32, #tpu.memory_space<vmem>>, vector<1x256xf32>
    %140 = vector.broadcast %139 : vector<1x256xf32> to vector<64x256xf32>
    %141 = arith.mulf %138, %140 : vector<64x256xf32>
    %c448 = arith.constant 448 : index
    %c0_112 = arith.constant 0 : index
    %142 = vector.load %arg12[%c448, %c0_112] : memref<576x256xf32, #tpu.memory_space<vmem>>, vector<64x256xf32>
    tpu.vector_store %arg12[%c448, %c0_112], %141 {strides = array<i32>} : memref<576x256xf32, #tpu.memory_space<vmem>>, vector<64x256xf32>,
    %c239_i32_113 = arith.constant 239 : i32
    %143 = tpu.dynamic_rotate %106 by %c239_i32_113 dim 1 : vector<64x256xf32>, i32 -> vector<64x256xf32>
    %c18_114 = arith.constant 18 : index
    %c0_115 = arith.constant 0 : index
    %144 = vector.load %arg2[%c18_114, %c0_115] : memref<25x256xf32, #tpu.memory_space<vmem>>, vector<1x256xf32>
    %145 = vector.broadcast %144 : vector<1x256xf32> to vector<64x256xf32>
    %146 = arith.mulf %143, %145 : vector<64x256xf32>
    %c512 = arith.constant 512 : index
    %c0_116 = arith.constant 0 : index
    %147 = vector.load %arg12[%c512, %c0_116] : memref<576x256xf32, #tpu.memory_space<vmem>>, vector<64x256xf32>
    tpu.vector_store %arg12[%c512, %c0_116], %146 {strides = array<i32>} : memref<576x256xf32, #tpu.memory_space<vmem>>, vector<64x256xf32>,
    %c0_117 = arith.constant 0 : index
    %c0_118 = arith.constant 0 : index
    %148 = vector.load %arg5[%c0_117, %c0_118] : memref<64x576xf32, #tpu.memory_space<vmem>>, vector<64x576xf32>
    %c0_119 = arith.constant 0 : index
    %c0_120 = arith.constant 0 : index
    %149 = vector.load %arg12[%c0_119, %c0_120] : memref<576x256xf32, #tpu.memory_space<vmem>>, vector<576x256xf32>
    %cst_121 = arith.constant dense<0.000000e+00> : vector<64x256xf32>
    %150 = tpu.matmul %148, %149, %cst_121 {dimension_numbers = #tpu.dot_dimension_numbers<[1], [0], [0], [1], [0, 0, 1, 1], [], []>} : vector<64x576xf32>, vector<576x256xf32>, vector<64x256xf32> -> vector<64x256xf32>
    %c0_122 = arith.constant 0 : index
    %c0_123 = arith.constant 0 : index
    %151 = vector.load %arg6[%c0_122, %c0_123] : memref<64x1xf32, #tpu.memory_space<vmem>>, vector<64x1xf32>
    %152 = vector.broadcast %151 : vector<64x1xf32> to vector<64x256xf32>
    %153 = arith.addf %150, %152 : vector<64x256xf32>
    %cst_124 = arith.constant 0.000000e+00 : f32
    %154 = vector.broadcast %cst_124 : f32 to vector<64x256xf32>
    %155 = arith.maximumf %153, %154 : vector<64x256xf32>
    %c17_i32_125 = arith.constant 17 : i32
    %156 = tpu.dynamic_rotate %155 by %c17_i32_125 dim 1 : vector<64x256xf32>, i32 -> vector<64x256xf32>
    %c6_126 = arith.constant 6 : index
    %c0_127 = arith.constant 0 : index
    %157 = vector.load %arg2[%c6_126, %c0_127] : memref<25x256xf32, #tpu.memory_space<vmem>>, vector<1x256xf32>
    %158 = vector.broadcast %157 : vector<1x256xf32> to vector<64x256xf32>
    %159 = arith.mulf %156, %158 : vector<64x256xf32>
    %c0_128 = arith.constant 0 : index
    %c0_129 = arith.constant 0 : index
    %160 = vector.load %arg12[%c0_128, %c0_129] : memref<576x256xf32, #tpu.memory_space<vmem>>, vector<64x256xf32>
    tpu.vector_store %arg12[%c0_128, %c0_129], %159 {strides = array<i32>} : memref<576x256xf32, #tpu.memory_space<vmem>>, vector<64x256xf32>,
    %c16_i32_130 = arith.constant 16 : i32
    %161 = tpu.dynamic_rotate %155 by %c16_i32_130 dim 1 : vector<64x256xf32>, i32 -> vector<64x256xf32>
    %c7_131 = arith.constant 7 : index
    %c0_132 = arith.constant 0 : index
    %162 = vector.load %arg2[%c7_131, %c0_132] : memref<25x256xf32, #tpu.memory_space<vmem>>, vector<1x256xf32>
    %163 = vector.broadcast %162 : vector<1x256xf32> to vector<64x256xf32>
    %164 = arith.mulf %161, %163 : vector<64x256xf32>
    %c64_133 = arith.constant 64 : index
    %c0_134 = arith.constant 0 : index
    %165 = vector.load %arg12[%c64_133, %c0_134] : memref<576x256xf32, #tpu.memory_space<vmem>>, vector<64x256xf32>
    tpu.vector_store %arg12[%c64_133, %c0_134], %164 {strides = array<i32>} : memref<576x256xf32, #tpu.memory_space<vmem>>, vector<64x256xf32>,
    %c15_i32_135 = arith.constant 15 : i32
    %166 = tpu.dynamic_rotate %155 by %c15_i32_135 dim 1 : vector<64x256xf32>, i32 -> vector<64x256xf32>
    %c8_136 = arith.constant 8 : index
    %c0_137 = arith.constant 0 : index
    %167 = vector.load %arg2[%c8_136, %c0_137] : memref<25x256xf32, #tpu.memory_space<vmem>>, vector<1x256xf32>
    %168 = vector.broadcast %167 : vector<1x256xf32> to vector<64x256xf32>
    %169 = arith.mulf %166, %168 : vector<64x256xf32>
    %c128_138 = arith.constant 128 : index
    %c0_139 = arith.constant 0 : index
    %170 = vector.load %arg12[%c128_138, %c0_139] : memref<576x256xf32, #tpu.memory_space<vmem>>, vector<64x256xf32>
    tpu.vector_store %arg12[%c128_138, %c0_139], %169 {strides = array<i32>} : memref<576x256xf32, #tpu.memory_space<vmem>>, vector<64x256xf32>,
    %c1_i32_140 = arith.constant 1 : i32
    %171 = tpu.dynamic_rotate %155 by %c1_i32_140 dim 1 : vector<64x256xf32>, i32 -> vector<64x256xf32>
    %c11_141 = arith.constant 11 : index
    %c0_142 = arith.constant 0 : index
    %172 = vector.load %arg2[%c11_141, %c0_142] : memref<25x256xf32, #tpu.memory_space<vmem>>, vector<1x256xf32>
    %173 = vector.broadcast %172 : vector<1x256xf32> to vector<64x256xf32>
    %174 = arith.mulf %171, %173 : vector<64x256xf32>
    %c192_143 = arith.constant 192 : index
    %c0_144 = arith.constant 0 : index
    %175 = vector.load %arg12[%c192_143, %c0_144] : memref<576x256xf32, #tpu.memory_space<vmem>>, vector<64x256xf32>
    tpu.vector_store %arg12[%c192_143, %c0_144], %174 {strides = array<i32>} : memref<576x256xf32, #tpu.memory_space<vmem>>, vector<64x256xf32>,
    %c256_145 = arith.constant 256 : index
    %c0_146 = arith.constant 0 : index
    %176 = vector.load %arg12[%c256_145, %c0_146] : memref<576x256xf32, #tpu.memory_space<vmem>>, vector<64x256xf32>
    tpu.vector_store %arg12[%c256_145, %c0_146], %155 {strides = array<i32>} : memref<576x256xf32, #tpu.memory_space<vmem>>, vector<64x256xf32>,
    %c255_i32_147 = arith.constant 255 : i32
    %177 = tpu.dynamic_rotate %155 by %c255_i32_147 dim 1 : vector<64x256xf32>, i32 -> vector<64x256xf32>
    %c13_148 = arith.constant 13 : index
    %c0_149 = arith.constant 0 : index
    %178 = vector.load %arg2[%c13_148, %c0_149] : memref<25x256xf32, #tpu.memory_space<vmem>>, vector<1x256xf32>
    %179 = vector.broadcast %178 : vector<1x256xf32> to vector<64x256xf32>
    %180 = arith.mulf %177, %179 : vector<64x256xf32>
    %c320_150 = arith.constant 320 : index
    %c0_151 = arith.constant 0 : index
    %181 = vector.load %arg12[%c320_150, %c0_151] : memref<576x256xf32, #tpu.memory_space<vmem>>, vector<64x256xf32>
    tpu.vector_store %arg12[%c320_150, %c0_151], %180 {strides = array<i32>} : memref<576x256xf32, #tpu.memory_space<vmem>>, vector<64x256xf32>,
    %c241_i32_152 = arith.constant 241 : i32
    %182 = tpu.dynamic_rotate %155 by %c241_i32_152 dim 1 : vector<64x256xf32>, i32 -> vector<64x256xf32>
    %c16_153 = arith.constant 16 : index
    %c0_154 = arith.constant 0 : index
    %183 = vector.load %arg2[%c16_153, %c0_154] : memref<25x256xf32, #tpu.memory_space<vmem>>, vector<1x256xf32>
    %184 = vector.broadcast %183 : vector<1x256xf32> to vector<64x256xf32>
    %185 = arith.mulf %182, %184 : vector<64x256xf32>
    %c384_155 = arith.constant 384 : index
    %c0_156 = arith.constant 0 : index
    %186 = vector.load %arg12[%c384_155, %c0_156] : memref<576x256xf32, #tpu.memory_space<vmem>>, vector<64x256xf32>
    tpu.vector_store %arg12[%c384_155, %c0_156], %185 {strides = array<i32>} : memref<576x256xf32, #tpu.memory_space<vmem>>, vector<64x256xf32>,
    %c240_i32_157 = arith.constant 240 : i32
    %187 = tpu.dynamic_rotate %155 by %c240_i32_157 dim 1 : vector<64x256xf32>, i32 -> vector<64x256xf32>
    %c17_158 = arith.constant 17 : index
    %c0_159 = arith.constant 0 : index
    %188 = vector.load %arg2[%c17_158, %c0_159] : memref<25x256xf32, #tpu.memory_space<vmem>>, vector<1x256xf32>
    %189 = vector.broadcast %188 : vector<1x256xf32> to vector<64x256xf32>
    %190 = arith.mulf %187, %189 : vector<64x256xf32>
    %c448_160 = arith.constant 448 : index
    %c0_161 = arith.constant 0 : index
    %191 = vector.load %arg12[%c448_160, %c0_161] : memref<576x256xf32, #tpu.memory_space<vmem>>, vector<64x256xf32>
    tpu.vector_store %arg12[%c448_160, %c0_161], %190 {strides = array<i32>} : memref<576x256xf32, #tpu.memory_space<vmem>>, vector<64x256xf32>,
    %c239_i32_162 = arith.constant 239 : i32
    %192 = tpu.dynamic_rotate %155 by %c239_i32_162 dim 1 : vector<64x256xf32>, i32 -> vector<64x256xf32>
    %c18_163 = arith.constant 18 : index
    %c0_164 = arith.constant 0 : index
    %193 = vector.load %arg2[%c18_163, %c0_164] : memref<25x256xf32, #tpu.memory_space<vmem>>, vector<1x256xf32>
    %194 = vector.broadcast %193 : vector<1x256xf32> to vector<64x256xf32>
    %195 = arith.mulf %192, %194 : vector<64x256xf32>
    %c512_165 = arith.constant 512 : index
    %c0_166 = arith.constant 0 : index
    %196 = vector.load %arg12[%c512_165, %c0_166] : memref<576x256xf32, #tpu.memory_space<vmem>>, vector<64x256xf32>
    tpu.vector_store %arg12[%c512_165, %c0_166], %195 {strides = array<i32>} : memref<576x256xf32, #tpu.memory_space<vmem>>, vector<64x256xf32>,
    %c0_167 = arith.constant 0 : index
    %c0_168 = arith.constant 0 : index
    %197 = vector.load %arg7[%c0_167, %c0_168] : memref<32x576xf32, #tpu.memory_space<vmem>>, vector<32x576xf32>
    %c0_169 = arith.constant 0 : index
    %c0_170 = arith.constant 0 : index
    %198 = vector.load %arg12[%c0_169, %c0_170] : memref<576x256xf32, #tpu.memory_space<vmem>>, vector<576x256xf32>
    %cst_171 = arith.constant dense<0.000000e+00> : vector<32x256xf32>
    %199 = tpu.matmul %197, %198, %cst_171 {dimension_numbers = #tpu.dot_dimension_numbers<[1], [0], [0], [1], [0, 0, 1, 1], [], []>} : vector<32x576xf32>, vector<576x256xf32>, vector<32x256xf32> -> vector<32x256xf32>
    %c0_172 = arith.constant 0 : index
    %c0_173 = arith.constant 0 : index
    %200 = vector.load %arg8[%c0_172, %c0_173] : memref<32x1xf32, #tpu.memory_space<vmem>>, vector<32x1xf32>
    %201 = vector.broadcast %200 : vector<32x1xf32> to vector<32x256xf32>
    %202 = arith.addf %199, %201 : vector<32x256xf32>
    %cst_174 = arith.constant 0.000000e+00 : f32
    %203 = vector.broadcast %cst_174 : f32 to vector<32x256xf32>
    %204 = arith.maximumf %202, %203 : vector<32x256xf32>
    %c17_i32_175 = arith.constant 17 : i32
    %205 = tpu.dynamic_rotate %204 by %c17_i32_175 dim 1 : vector<32x256xf32>, i32 -> vector<32x256xf32>
    %c6_176 = arith.constant 6 : index
    %c0_177 = arith.constant 0 : index
    %206 = vector.load %arg2[%c6_176, %c0_177] : memref<25x256xf32, #tpu.memory_space<vmem>>, vector<1x256xf32>
    %207 = vector.broadcast %206 : vector<1x256xf32> to vector<32x256xf32>
    %208 = arith.mulf %205, %207 : vector<32x256xf32>
    %c0_178 = arith.constant 0 : index
    %c0_179 = arith.constant 0 : index
    %209 = vector.load %arg12[%c0_178, %c0_179] : memref<576x256xf32, #tpu.memory_space<vmem>>, vector<32x256xf32>
    tpu.vector_store %arg12[%c0_178, %c0_179], %208 {strides = array<i32>} : memref<576x256xf32, #tpu.memory_space<vmem>>, vector<32x256xf32>,
    %c16_i32_180 = arith.constant 16 : i32
    %210 = tpu.dynamic_rotate %204 by %c16_i32_180 dim 1 : vector<32x256xf32>, i32 -> vector<32x256xf32>
    %c7_181 = arith.constant 7 : index
    %c0_182 = arith.constant 0 : index
    %211 = vector.load %arg2[%c7_181, %c0_182] : memref<25x256xf32, #tpu.memory_space<vmem>>, vector<1x256xf32>
    %212 = vector.broadcast %211 : vector<1x256xf32> to vector<32x256xf32>
    %213 = arith.mulf %210, %212 : vector<32x256xf32>
    %c32 = arith.constant 32 : index
    %c0_183 = arith.constant 0 : index
    %214 = vector.load %arg12[%c32, %c0_183] : memref<576x256xf32, #tpu.memory_space<vmem>>, vector<32x256xf32>
    tpu.vector_store %arg12[%c32, %c0_183], %213 {strides = array<i32>} : memref<576x256xf32, #tpu.memory_space<vmem>>, vector<32x256xf32>,
    %c15_i32_184 = arith.constant 15 : i32
    %215 = tpu.dynamic_rotate %204 by %c15_i32_184 dim 1 : vector<32x256xf32>, i32 -> vector<32x256xf32>
    %c8_185 = arith.constant 8 : index
    %c0_186 = arith.constant 0 : index
    %216 = vector.load %arg2[%c8_185, %c0_186] : memref<25x256xf32, #tpu.memory_space<vmem>>, vector<1x256xf32>
    %217 = vector.broadcast %216 : vector<1x256xf32> to vector<32x256xf32>
    %218 = arith.mulf %215, %217 : vector<32x256xf32>
    %c64_187 = arith.constant 64 : index
    %c0_188 = arith.constant 0 : index
    %219 = vector.load %arg12[%c64_187, %c0_188] : memref<576x256xf32, #tpu.memory_space<vmem>>, vector<32x256xf32>
    tpu.vector_store %arg12[%c64_187, %c0_188], %218 {strides = array<i32>} : memref<576x256xf32, #tpu.memory_space<vmem>>, vector<32x256xf32>,
    %c1_i32_189 = arith.constant 1 : i32
    %220 = tpu.dynamic_rotate %204 by %c1_i32_189 dim 1 : vector<32x256xf32>, i32 -> vector<32x256xf32>
    %c11_190 = arith.constant 11 : index
    %c0_191 = arith.constant 0 : index
    %221 = vector.load %arg2[%c11_190, %c0_191] : memref<25x256xf32, #tpu.memory_space<vmem>>, vector<1x256xf32>
    %222 = vector.broadcast %221 : vector<1x256xf32> to vector<32x256xf32>
    %223 = arith.mulf %220, %222 : vector<32x256xf32>
    %c96 = arith.constant 96 : index
    %c0_192 = arith.constant 0 : index
    %224 = vector.load %arg12[%c96, %c0_192] : memref<576x256xf32, #tpu.memory_space<vmem>>, vector<32x256xf32>
    tpu.vector_store %arg12[%c96, %c0_192], %223 {strides = array<i32>} : memref<576x256xf32, #tpu.memory_space<vmem>>, vector<32x256xf32>,
    %c128_193 = arith.constant 128 : index
    %c0_194 = arith.constant 0 : index
    %225 = vector.load %arg12[%c128_193, %c0_194] : memref<576x256xf32, #tpu.memory_space<vmem>>, vector<32x256xf32>
    tpu.vector_store %arg12[%c128_193, %c0_194], %204 {strides = array<i32>} : memref<576x256xf32, #tpu.memory_space<vmem>>, vector<32x256xf32>,
    %c255_i32_195 = arith.constant 255 : i32
    %226 = tpu.dynamic_rotate %204 by %c255_i32_195 dim 1 : vector<32x256xf32>, i32 -> vector<32x256xf32>
    %c13_196 = arith.constant 13 : index
    %c0_197 = arith.constant 0 : index
    %227 = vector.load %arg2[%c13_196, %c0_197] : memref<25x256xf32, #tpu.memory_space<vmem>>, vector<1x256xf32>
    %228 = vector.broadcast %227 : vector<1x256xf32> to vector<32x256xf32>
    %229 = arith.mulf %226, %228 : vector<32x256xf32>
    %c160 = arith.constant 160 : index
    %c0_198 = arith.constant 0 : index
    %230 = vector.load %arg12[%c160, %c0_198] : memref<576x256xf32, #tpu.memory_space<vmem>>, vector<32x256xf32>
    tpu.vector_store %arg12[%c160, %c0_198], %229 {strides = array<i32>} : memref<576x256xf32, #tpu.memory_space<vmem>>, vector<32x256xf32>,
    %c241_i32_199 = arith.constant 241 : i32
    %231 = tpu.dynamic_rotate %204 by %c241_i32_199 dim 1 : vector<32x256xf32>, i32 -> vector<32x256xf32>
    %c16_200 = arith.constant 16 : index
    %c0_201 = arith.constant 0 : index
    %232 = vector.load %arg2[%c16_200, %c0_201] : memref<25x256xf32, #tpu.memory_space<vmem>>, vector<1x256xf32>
    %233 = vector.broadcast %232 : vector<1x256xf32> to vector<32x256xf32>
    %234 = arith.mulf %231, %233 : vector<32x256xf32>
    %c192_202 = arith.constant 192 : index
    %c0_203 = arith.constant 0 : index
    %235 = vector.load %arg12[%c192_202, %c0_203] : memref<576x256xf32, #tpu.memory_space<vmem>>, vector<32x256xf32>
    tpu.vector_store %arg12[%c192_202, %c0_203], %234 {strides = array<i32>} : memref<576x256xf32, #tpu.memory_space<vmem>>, vector<32x256xf32>,
    %c240_i32_204 = arith.constant 240 : i32
    %236 = tpu.dynamic_rotate %204 by %c240_i32_204 dim 1 : vector<32x256xf32>, i32 -> vector<32x256xf32>
    %c17_205 = arith.constant 17 : index
    %c0_206 = arith.constant 0 : index
    %237 = vector.load %arg2[%c17_205, %c0_206] : memref<25x256xf32, #tpu.memory_space<vmem>>, vector<1x256xf32>
    %238 = vector.broadcast %237 : vector<1x256xf32> to vector<32x256xf32>
    %239 = arith.mulf %236, %238 : vector<32x256xf32>
    %c224 = arith.constant 224 : index
    %c0_207 = arith.constant 0 : index
    %240 = vector.load %arg12[%c224, %c0_207] : memref<576x256xf32, #tpu.memory_space<vmem>>, vector<32x256xf32>
    tpu.vector_store %arg12[%c224, %c0_207], %239 {strides = array<i32>} : memref<576x256xf32, #tpu.memory_space<vmem>>, vector<32x256xf32>,
    %c239_i32_208 = arith.constant 239 : i32
    %241 = tpu.dynamic_rotate %204 by %c239_i32_208 dim 1 : vector<32x256xf32>, i32 -> vector<32x256xf32>
    %c18_209 = arith.constant 18 : index
    %c0_210 = arith.constant 0 : index
    %242 = vector.load %arg2[%c18_209, %c0_210] : memref<25x256xf32, #tpu.memory_space<vmem>>, vector<1x256xf32>
    %243 = vector.broadcast %242 : vector<1x256xf32> to vector<32x256xf32>
    %244 = arith.mulf %241, %243 : vector<32x256xf32>
    %c256_211 = arith.constant 256 : index
    %c0_212 = arith.constant 0 : index
    %245 = vector.load %arg12[%c256_211, %c0_212] : memref<576x256xf32, #tpu.memory_space<vmem>>, vector<32x256xf32>
    tpu.vector_store %arg12[%c256_211, %c0_212], %244 {strides = array<i32>} : memref<576x256xf32, #tpu.memory_space<vmem>>, vector<32x256xf32>,
    %c0_213 = arith.constant 0 : index
    %c0_214 = arith.constant 0 : index
    %246 = vector.load %arg9[%c0_213, %c0_214] : memref<9x288xf32, #tpu.memory_space<vmem>>, vector<9x288xf32>
    %c0_215 = arith.constant 0 : index
    %c0_216 = arith.constant 0 : index
    %247 = vector.load %arg12[%c0_215, %c0_216] : memref<576x256xf32, #tpu.memory_space<vmem>>, vector<288x256xf32>
    %cst_217 = arith.constant dense<0.000000e+00> : vector<9x256xf32>
    %248 = tpu.matmul %246, %247, %cst_217 {dimension_numbers = #tpu.dot_dimension_numbers<[1], [0], [0], [1], [0, 0, 1, 1], [], []>} : vector<9x288xf32>, vector<288x256xf32>, vector<9x256xf32> -> vector<9x256xf32>
    %c0_218 = arith.constant 0 : index
    %c0_219 = arith.constant 0 : index
    %249 = vector.load %arg10[%c0_218, %c0_219] : memref<9x1xf32, #tpu.memory_space<vmem>>, vector<9x1xf32>
    %250 = vector.broadcast %249 : vector<9x1xf32> to vector<9x256xf32>
    %251 = arith.addf %248, %250 : vector<9x256xf32>
    %252 = vector.shape_cast %251 : vector<9x256xf32> to vector<1x9x256xf32>
    %c0_220 = arith.constant 0 : index
    %c0_221 = arith.constant 0 : index
    %c0_222 = arith.constant 0 : index
    %253 = vector.load %arg11[%c0_220, %c0_221, %c0_222] : memref<1x9x256xf32, #tpu.memory_space<vmem>>, vector<1x9x256xf32>
    tpu.vector_store %arg11[%c0_220, %c0_221, %c0_222], %252 {strides = array<i32>} : memref<1x9x256xf32, #tpu.memory_space<vmem>>, vector<1x9x256xf32>,
    return
  }
  func.func @transform_0(%arg0: i32) -> (i32, i32, i32) {
    %c0_i32 = arith.constant 0 : i32
    %c0_i32_0 = arith.constant 0 : i32
    %c0_i32_1 = arith.constant 0 : i32
    return %arg0, %c0_i32, %c0_i32_0 : i32, i32, i32
  }
  func.func @transform_1(%arg0: i32) -> (i32, i32) {
    %c0_i32 = arith.constant 0 : i32
    %c0_i32_0 = arith.constant 0 : i32
    %c0_i32_1 = arith.constant 0 : i32
    return %c0_i32, %c0_i32_0 : i32, i32
  }
  func.func @transform_2(%arg0: i32) -> (i32, i32) {
    %c0_i32 = arith.constant 0 : i32
    %c0_i32_0 = arith.constant 0 : i32
    %c0_i32_1 = arith.constant 0 : i32
    return %c0_i32, %c0_i32_0 : i32, i32
  }
  func.func @transform_3(%arg0: i32) -> (i32, i32) {
    %c0_i32 = arith.constant 0 : i32
    %c0_i32_0 = arith.constant 0 : i32
    %c0_i32_1 = arith.constant 0 : i32
    return %c0_i32, %c0_i32_0 : i32, i32
  }
  func.func @transform_4(%arg0: i32) -> (i32, i32) {
    %c0_i32 = arith.constant 0 : i32
    %c0_i32_0 = arith.constant 0 : i32
    %c0_i32_1 = arith.constant 0 : i32
    return %c0_i32, %c0_i32_0 : i32, i32
  }
  func.func @transform_5(%arg0: i32) -> (i32, i32) {
    %c0_i32 = arith.constant 0 : i32
    %c0_i32_0 = arith.constant 0 : i32
    %c0_i32_1 = arith.constant 0 : i32
    return %c0_i32, %c0_i32_0 : i32, i32
  }
  func.func @transform_6(%arg0: i32) -> (i32, i32) {
    %c0_i32 = arith.constant 0 : i32
    %c0_i32_0 = arith.constant 0 : i32
    %c0_i32_1 = arith.constant 0 : i32
    return %c0_i32, %c0_i32_0 : i32, i32
  }
  func.func @transform_7(%arg0: i32) -> (i32, i32) {
    %c0_i32 = arith.constant 0 : i32
    %c0_i32_0 = arith.constant 0 : i32
    %c0_i32_1 = arith.constant 0 : i32
    return %c0_i32, %c0_i32_0 : i32, i32
  }
  func.func @transform_8(%arg0: i32) -> (i32, i32) {
    %c0_i32 = arith.constant 0 : i32
    %c0_i32_0 = arith.constant 0 : i32
    %c0_i32_1 = arith.constant 0 : i32
    return %c0_i32, %c0_i32_0 : i32, i32
  }
  func.func @transform_9(%arg0: i32) -> (i32, i32) {
    %c0_i32 = arith.constant 0 : i32
    %c0_i32_0 = arith.constant 0 : i32
    %c0_i32_1 = arith.constant 0 : i32
    return %c0_i32, %c0_i32_0 : i32, i32
  }
  func.func @transform_10(%arg0: i32) -> (i32, i32, i32) {
    %c0_i32 = arith.constant 0 : i32
    %c0_i32_0 = arith.constant 0 : i32
    %c0_i32_1 = arith.constant 0 : i32
    return %arg0, %c0_i32, %c0_i32_0 : i32, i32, i32
  }
}

</mosaic_0001>

<llo_original>
// kernel: _lambda_.1
$region0: #{_lambda_.1}
  #allocation0 [shape = 'u32[]', space=smem, size = 0x4, offset = 0x4, fixed_abs, tag = 'smem constant byte address 0x4 - core index']
  #allocation1 [shape = 'u32[72,128]{1,0:T(1,128)}', space=vmem, size = 0x9000, scoped, tag = 'internal scratch']
  #allocation2 [shape = 'f32[576,256]{1,0:T(8,128)}', space=vmem, size = 0x90000, scoped, tag = 'scratch operand']
  %s0 = inlined_call_operand.vmem [shape: f32[2,1,256], index: 0, kind: input, shape index: {}]
  %s1 = inlined_call_operand.vmem [shape: f32[25,256], index: 1, kind: input, shape index: {}]
  %s2 = inlined_call_operand.vmem [shape: f32[64,25], index: 2, kind: input, shape index: {}]
  %s3 = inlined_call_operand.vmem [shape: f32[64,1], index: 3, kind: input, shape index: {}]
  %s4 = inlined_call_operand.vmem [shape: f32[64,576], index: 4, kind: input, shape index: {}]
  %s5 = inlined_call_operand.vmem [shape: f32[64,1], index: 5, kind: input, shape index: {}]
  %s6 = inlined_call_operand.vmem [shape: f32[32,576], index: 6, kind: input, shape index: {}]
  %s7 = inlined_call_operand.vmem [shape: f32[32,1], index: 7, kind: input, shape index: {}]
  %s8 = inlined_call_operand.vmem [shape: f32[9,288], index: 8, kind: input, shape index: {}]
  %s9 = inlined_call_operand.vmem [shape: f32[9,1], index: 9, kind: input, shape index: {}]
  %s10 = inlined_call_operand.vmem [shape: f32[2,9,256], index: 10, kind: output, shape index: {}]
  %s11 = sld [smem:[#allocation0]]
  $region73: #{_lambda_.1} parent=0
    _
  %s13 = ssub.s32 1, %s11
  %s14 = scalar_select 0, %s13, %s11
  loop: start=0, step=1, limit=4
  $region2: #{_lambda_.1} parent=0 // loop_pre_header
    _
  $region3: #{_lambda_.1} parent=0 // loop_header
    %s16 = sphi 0, %s20
    %p17 = scmp.ge.s32.totalorder %s16, 4
    %s26 = sphi 0, %s28
    %s29 = sphi 0, %s26
    %s30 = sphi 0, %s29
    %s46 = sphi 0, %s30
    %s50 = sphi 0, %s50
    %s52 = sphi 0, %s50
    %s53 = sphi 0, %s52
    %s67 = sphi 0, %s53
    %s71 = sphi 0, %s71
    %s73 = sphi 0, %s71
    %s74 = sphi 0, %s73
    %s88 = sphi 0, %s74
    %s92 = sphi 0, %s92
    %s94 = sphi 0, %s92
    %s95 = sphi 0, %s94
    %s109 = sphi 0, %s95
    %s113 = sphi 0, %s113
    %s115 = sphi 0, %s113
    %s116 = sphi 0, %s115
    %s130 = sphi 0, %s116
    %s134 = sphi 0, %s134
    %s136 = sphi 0, %s134
    %s137 = sphi 0, %s136
    %s151 = sphi 0, %s137
    %s155 = sphi 0, %s155
    %s157 = sphi 0, %s155
    %s158 = sphi 0, %s157
    %s172 = sphi 0, %s158
    %s176 = sphi 0, %s176
    %s178 = sphi 0, %s176
    %s179 = sphi 0, %s178
    %s193 = sphi 0, %s179
    %s197 = sphi 0, %s197
    %s199 = sphi 0, %s197
    %s200 = sphi 0, %s199
    %s214 = sphi 0, %s200
    %s218 = sphi 0, %s218
    %s220 = sphi 0, %s218
    %s221 = sphi 0, %s220
    %s235 = sphi 0, %s221
    %s241 = sphi 0, %s243
    %s244 = sphi 0, %s241
    %s245 = sphi 0, %s244
    %s261 = sphi 0, %s245
  $region4: #{_lambda_.1} parent=0 // loop_header_branch
    %19 = sbr.rel (%p17) target = $region8
  $region5: #{_lambda_.1} parent=0 // loop_body
    %s21 = ssub.s32 %s16, 1
    %s22 = ssub.s32 %s16, 2
    %s23 = sadd.s32 %s16, 1
    %s24 = ssub.s32 %s16, %s23
    %p25 = scmp.eq.s32.totalorder %s24, 0
    %s27 = sadd.s32 %s26, 1
    %s28 = scalar_select %p25, %s26, %s27
    %p31 = pneg %p25
    %p32 = scmp.eq.s32.totalorder %s16, 1
    %p33 = por %p31, %p32
    %p34 = scmp.ne.s32.totalorder %s26, %s29
    %p35 = scmp.eq.s32.totalorder %s16, 0
    %p36 = por %p34, %p35
    %p37 = scmp.ne.s32.totalorder %s26, %s29
    %p38 = scmp.eq.s32.totalorder %s21, 1
    %p39 = por %p37, %p38
    %p40 = scmp.ne.s32.totalorder %s29, %s30
    %p41 = scmp.eq.s32.totalorder %s21, 0
    %p42 = por %p40, %p41
    %p43 = scmp.ne.s32.totalorder %s29, %s30
    %p44 = scmp.eq.s32.totalorder %s22, 1
    %p45 = por %p43, %p44
    %p47 = scmp.ne.s32.totalorder %s30, %s46
    %p48 = scmp.eq.s32.totalorder %s22, 0
    %p49 = por %p47, %p48
    %s51 = sadd.s32 %s50, 1
    %p54 = scmp.eq.s32.totalorder %s16, 1
    %p55 = scmp.ne.s32.totalorder %s50, %s52
    %p56 = scmp.eq.s32.totalorder %s16, 0
    %p57 = por %p55, %p56
    %p58 = scmp.ne.s32.totalorder %s50, %s52
    %p59 = scmp.eq.s32.totalorder %s21, 1
    %p60 = por %p58, %p59
    %p61 = scmp.ne.s32.totalorder %s52, %s53
    %p62 = scmp.eq.s32.totalorder %s21, 0
    %p63 = por %p61, %p62
    %p64 = scmp.ne.s32.totalorder %s52, %s53
    %p65 = scmp.eq.s32.totalorder %s22, 1
    %p66 = por %p64, %p65
    %p68 = scmp.ne.s32.totalorder %s53, %s67
    %p69 = scmp.eq.s32.totalorder %s22, 0
    %p70 = por %p68, %p69
    %s72 = sadd.s32 %s71, 1
    %p75 = scmp.eq.s32.totalorder %s16, 1
    %p76 = scmp.ne.s32.totalorder %s71, %s73
    %p77 = scmp.eq.s32.totalorder %s16, 0
    %p78 = por %p76, %p77
    %p79 = scmp.ne.s32.totalorder %s71, %s73
    %p80 = scmp.eq.s32.totalorder %s21, 1
    %p81 = por %p79, %p80
    %p82 = scmp.ne.s32.totalorder %s73, %s74
    %p83 = scmp.eq.s32.totalorder %s21, 0
    %p84 = por %p82, %p83
    %p85 = scmp.ne.s32.totalorder %s73, %s74
    %p86 = scmp.eq.s32.totalorder %s22, 1
    %p87 = por %p85, %p86
    %p89 = scmp.ne.s32.totalorder %s74, %s88
    %p90 = scmp.eq.s32.totalorder %s22, 0
    %p91 = por %p89, %p90
    %s93 = sadd.s32 %s92, 1
    %p96 = scmp.eq.s32.totalorder %s16, 1
    %p97 = scmp.ne.s32.totalorder %s92, %s94
    %p98 = scmp.eq.s32.totalorder %s16, 0
    %p99 = por %p97, %p98
    %p100 = scmp.ne.s32.totalorder %s92, %s94
    %p101 = scmp.eq.s32.totalorder %s21, 1
    %p102 = por %p100, %p101
    %p103 = scmp.ne.s32.totalorder %s94, %s95
    %p104 = scmp.eq.s32.totalorder %s21, 0
    %p105 = por %p103, %p104
    %p106 = scmp.ne.s32.totalorder %s94, %s95
    %p107 = scmp.eq.s32.totalorder %s22, 1
    %p108 = por %p106, %p107
    %p110 = scmp.ne.s32.totalorder %s95, %s109
    %p111 = scmp.eq.s32.totalorder %s22, 0
    %p112 = por %p110, %p111
    %s114 = sadd.s32 %s113, 1
    %p117 = scmp.eq.s32.totalorder %s16, 1
    %p118 = scmp.ne.s32.totalorder %s113, %s115
    %p119 = scmp.eq.s32.totalorder %s16, 0
    %p120 = por %p118, %p119
    %p121 = scmp.ne.s32.totalorder %s113, %s115
    %p122 = scmp.eq.s32.totalorder %s21, 1
    %p123 = por %p121, %p122
    %p124 = scmp.ne.s32.totalorder %s115, %s116
    %p125 = scmp.eq.s32.totalorder %s21, 0
    %p126 = por %p124, %p125
    %p127 = scmp.ne.s32.totalorder %s115, %s116
    %p128 = scmp.eq.s32.totalorder %s22, 1
    %p129 = por %p127, %p128
    %p131 = scmp.ne.s32.totalorder %s116, %s130
    %p132 = scmp.eq.s32.totalorder %s22, 0
    %p133 = por %p131, %p132
    %s135 = sadd.s32 %s134, 1
    %p138 = scmp.eq.s32.totalorder %s16, 1
    %p139 = scmp.ne.s32.totalorder %s134, %s136
    %p140 = scmp.eq.s32.totalorder %s16, 0
    %p141 = por %p139, %p140
    %p142 = scmp.ne.s32.totalorder %s134, %s136
    %p143 = scmp.eq.s32.totalorder %s21, 1
    %p144 = por %p142, %p143
    %p145 = scmp.ne.s32.totalorder %s136, %s137
    %p146 = scmp.eq.s32.totalorder %s21, 0
    %p147 = por %p145, %p146
    %p148 = scmp.ne.s32.totalorder %s136, %s137
    %p149 = scmp.eq.s32.totalorder %s22, 1
    %p150 = por %p148, %p149
    %p152 = scmp.ne.s32.totalorder %s137, %s151
    %p153 = scmp.eq.s32.totalorder %s22, 0
    %p154 = por %p152, %p153
    %s156 = sadd.s32 %s155, 1
    %p159 = scmp.eq.s32.totalorder %s16, 1
    %p160 = scmp.ne.s32.totalorder %s155, %s157
    %p161 = scmp.eq.s32.totalorder %s16, 0
    %p162 = por %p160, %p161
    %p163 = scmp.ne.s32.totalorder %s155, %s157
    %p164 = scmp.eq.s32.totalorder %s21, 1
    %p165 = por %p163, %p164
    %p166 = scmp.ne.s32.totalorder %s157, %s158
    %p167 = scmp.eq.s32.totalorder %s21, 0
    %p168 = por %p166, %p167
    %p169 = scmp.ne.s32.totalorder %s157, %s158
    %p170 = scmp.eq.s32.totalorder %s22, 1
    %p171 = por %p169, %p170
    %p173 = scmp.ne.s32.totalorder %s158, %s172
    %p174 = scmp.eq.s32.totalorder %s22, 0
    %p175 = por %p173, %p174
    %s177 = sadd.s32 %s176, 1
    %p180 = scmp.eq.s32.totalorder %s16, 1
    %p181 = scmp.ne.s32.totalorder %s176, %s178
    %p182 = scmp.eq.s32.totalorder %s16, 0
    %p183 = por %p181, %p182
    %p184 = scmp.ne.s32.totalorder %s176, %s178
    %p185 = scmp.eq.s32.totalorder %s21, 1
    %p186 = por %p184, %p185
    %p187 = scmp.ne.s32.totalorder %s178, %s179
    %p188 = scmp.eq.s32.totalorder %s21, 0
    %p189 = por %p187, %p188
    %p190 = scmp.ne.s32.totalorder %s178, %s179
    %p191 = scmp.eq.s32.totalorder %s22, 1
    %p192 = por %p190, %p191
    %p194 = scmp.ne.s32.totalorder %s179, %s193
    %p195 = scmp.eq.s32.totalorder %s22, 0
    %p196 = por %p194, %p195
    %s198 = sadd.s32 %s197, 1
    %p201 = scmp.eq.s32.totalorder %s16, 1
    %p202 = scmp.ne.s32.totalorder %s197, %s199
    %p203 = scmp.eq.s32.totalorder %s16, 0
    %p204 = por %p202, %p203
    %p205 = scmp.ne.s32.totalorder %s197, %s199
    %p206 = scmp.eq.s32.totalorder %s21, 1
    %p207 = por %p205, %p206
    %p208 = scmp.ne.s32.totalorder %s199, %s200
    %p209 = scmp.eq.s32.totalorder %s21, 0
    %p210 = por %p208, %p209
    %p211 = scmp.ne.s32.totalorder %s199, %s200
    %p212 = scmp.eq.s32.totalorder %s22, 1
    %p213 = por %p211, %p212
    %p215 = scmp.ne.s32.totalorder %s200, %s214
    %p216 = scmp.eq.s32.totalorder %s22, 0
    %p217 = por %p215, %p216
    %s219 = sadd.s32 %s218, 1
    %p222 = scmp.eq.s32.totalorder %s16, 1
    %p223 = scmp.ne.s32.totalorder %s218, %s220
    %p224 = scmp.eq.s32.totalorder %s16, 0
    %p225 = por %p223, %p224
    %p226 = scmp.ne.s32.totalorder %s218, %s220
    %p227 = scmp.eq.s32.totalorder %s21, 1
    %p228 = por %p226, %p227
    %p229 = scmp.ne.s32.totalorder %s220, %s221
    %p230 = scmp.eq.s32.totalorder %s21, 0
    %p231 = por %p229, %p230
    %p232 = scmp.ne.s32.totalorder %s220, %s221
    %p233 = scmp.eq.s32.totalorder %s22, 1
    %p234 = por %p232, %p233
    %p236 = scmp.ne.s32.totalorder %s221, %s235
    %p237 = scmp.eq.s32.totalorder %s22, 0
    %p238 = por %p236, %p237
    %s239 = ssub.s32 %s16, %s23
    %p240 = scmp.eq.s32.totalorder %s239, 0
    %s242 = sadd.s32 %s241, 1
    %s243 = scalar_select %p240, %s241, %s242
    %p246 = pneg %p240
    %p247 = scmp.eq.s32.totalorder %s16, 1
    %p248 = por %p246, %p247
    %p249 = scmp.ne.s32.totalorder %s241, %s244
    %p250 = scmp.eq.s32.totalorder %s16, 0
    %p251 = por %p249, %p250
    %p252 = scmp.ne.s32.totalorder %s241, %s244
    %p253 = scmp.eq.s32.totalorder %s21, 1
    %p254 = por %p252, %p253
    %p255 = scmp.ne.s32.totalorder %s244, %s245
    %p256 = scmp.eq.s32.totalorder %s21, 0
    %p257 = por %p255, %p256
    %p258 = scmp.ne.s32.totalorder %s244, %s245
    %p259 = scmp.eq.s32.totalorder %s22, 1
    %p260 = por %p258, %p259
    %p262 = scmp.ne.s32.totalorder %s245, %s261
    %p263 = scmp.eq.s32.totalorder %s22, 0
    %p264 = por %p262, %p263
    %p265 = scmp.le.s32.totalorder 1, %s16
    %p266 = scmp.lt.s32.totalorder %s16, 3
    %p267 = pnand %p265, %p266
    %p268 = pneg %p267
    // Predicated region
    $region9: #{_lambda_.1} parent=5 // pred_check
      _
    $region10: #{_lambda_.1} parent=5 // pred_check_branch
      %270 = sbr.rel (%p267) target = $region12
    $region11: #{_lambda_.1} parent=5 // pred_region
      %s271 = ssub.s32 %s16, 1
      // Predicated region
      $region13: #{_lambda_.1} parent=11 // pred_check
        %p272 = pneg %p63
      $region14: #{_lambda_.1} parent=11 // pred_check_branch
        %274 = sbr.rel (%p272) target = $region16
      $region15: #{_lambda_.1} parent=11 // pred_region
        _
      $region16: #{_lambda_.1} parent=11 // pred_fallthru
        _
      // Predicated region
      $region17: #{_lambda_.1} parent=11 // pred_check
        %p275 = pneg %p84
      $region18: #{_lambda_.1} parent=11 // pred_check_branch
        %277 = sbr.rel (%p275) target = $region20
      $region19: #{_lambda_.1} parent=11 // pred_region
        _
      $region20: #{_lambda_.1} parent=11 // pred_fallthru
        _
      // Predicated region
      $region21: #{_lambda_.1} parent=11 // pred_check
        %p278 = pneg %p105
      $region22: #{_lambda_.1} parent=11 // pred_check_branch
        %280 = sbr.rel (%p278) target = $region24
      $region23: #{_lambda_.1} parent=11 // pred_region
        _
      $region24: #{_lambda_.1} parent=11 // pred_fallthru
        _
      // Predicated region
      $region25: #{_lambda_.1} parent=11 // pred_check
        %p281 = pneg %p126
      $region26: #{_lambda_.1} parent=11 // pred_check_branch
        %283 = sbr.rel (%p281) target = $region28
      $region27: #{_lambda_.1} parent=11 // pred_region
        _
      $region28: #{_lambda_.1} parent=11 // pred_fallthru
        _
      // Predicated region
      $region29: #{_lambda_.1} parent=11 // pred_check
        %p284 = pneg %p147
      $region30: #{_lambda_.1} parent=11 // pred_check_branch
        %286 = sbr.rel (%p284) target = $region32
      $region31: #{_lambda_.1} parent=11 // pred_region
        _
      $region32: #{_lambda_.1} parent=11 // pred_fallthru
        _
      // Predicated region
      $region33: #{_lambda_.1} parent=11 // pred_check
        %p287 = pneg %p168
      $region34: #{_lambda_.1} parent=11 // pred_check_branch
        %289 = sbr.rel (%p287) target = $region36
      $region35: #{_lambda_.1} parent=11 // pred_region
        _
      $region36: #{_lambda_.1} parent=11 // pred_fallthru
        _
      // Predicated region
      $region37: #{_lambda_.1} parent=11 // pred_check
        %p290 = pneg %p189
      $region38: #{_lambda_.1} parent=11 // pred_check_branch
        %292 = sbr.rel (%p290) target = $region40
      $region39: #{_lambda_.1} parent=11 // pred_region
        _
      $region40: #{_lambda_.1} parent=11 // pred_fallthru
        _
      // Predicated region
      $region41: #{_lambda_.1} parent=11 // pred_check
        %p293 = pneg %p210
      $region42: #{_lambda_.1} parent=11 // pred_check_branch
        %295 = sbr.rel (%p293) target = $region44
      $region43: #{_lambda_.1} parent=11 // pred_region
        _
      $region44: #{_lambda_.1} parent=11 // pred_fallthru
        _
      // Predicated region
      $region45: #{_lambda_.1} parent=11 // pred_check
        %p296 = pneg %p231
      $region46: #{_lambda_.1} parent=11 // pred_check_branch
        %298 = sbr.rel (%p296) target = $region48
      $region47: #{_lambda_.1} parent=11 // pred_region
        _
      $region48: #{_lambda_.1} parent=11 // pred_fallthru
        _
    $region12: #{_lambda_.1} parent=5 // pred_fallthru
      _
    %p299 = scmp.lt.s32.totalorder %s16, 2
    // Predicated region
    $region49: #{_lambda_.1} parent=5 // pred_check
      %p300 = pneg %p299
    $region50: #{_lambda_.1} parent=5 // pred_check_branch
      %302 = sbr.rel (%p300) target = $region52
    $region51: #{_lambda_.1} parent=5 // pred_region
      // Predicated region
      $region53: #{_lambda_.1} parent=51 // pred_check
        %p303 = pneg %p36
      $region54: #{_lambda_.1} parent=51 // pred_check_branch
        %305 = sbr.rel (%p303) target = $region56
      $region55: #{_lambda_.1} parent=51 // pred_region
        %p306 = scmp.lt.s32.totalorder %s16, 1
        %s307 = scalar_select %p306, %s16, 1
        %s308 = smul.addr %s307, 2
        %s309 = scalar_lea.vmem %s0, %s308
      $region56: #{_lambda_.1} parent=51 // pred_fallthru
        _
    $region52: #{_lambda_.1} parent=5 // pred_fallthru
      _
    %p310 = scmp.le.s32.totalorder 1, %s16
    %p311 = scmp.lt.s32.totalorder %s16, 3
    %p312 = pnand %p310, %p311
    %p313 = pneg %p312
    // Predicated region
    $region57: #{_lambda_.1} parent=5 // pred_check
      _
    $region58: #{_lambda_.1} parent=5 // pred_check_branch
      %315 = sbr.rel (%p312) target = $region60
    $region59: #{_lambda_.1} parent=5 // pred_region
      %s316 = ssub.s32 %s16, 1
      %p317 = scmp.lt.s32.totalorder %s21, 1
      %s318 = scalar_select %p317, %s21, 1
      %s319 = smul.addr %s318, 2
      %s320 = scalar_lea.vmem %s0, %s319
      %p321 = pneg %p42
      %p322 = pneg %p39
      %p323 = pneg %p63
      %p324 = pneg %p60
      %p325 = pneg %p84
      %p326 = pneg %p81
      %p327 = pneg %p105
      %p328 = pneg %p102
      %p329 = pneg %p126
      %p330 = pneg %p123
      %p331 = pneg %p147
      %p332 = pneg %p144
      %p333 = pneg %p168
      %p334 = pneg %p165
      %p335 = pneg %p189
      %p336 = pneg %p186
      %p337 = pneg %p210
      %p338 = pneg %p207
      %p339 = pneg %p231
      %p340 = pneg %p228
      %p341 = pneg %p257
      %p342 = pneg %p254
      %p343 = scmp.lt.s32.totalorder %s21, 1
      %s344 = scalar_select %p343, %s21, 1
      %s345 = smul.addr %s344, 4
      %s346 = smul.addr %s345, 8
      %s347 = scalar_lea.vmem %s10, %s346
      %p348 = scmp.lt.s32.totalorder %s21, 1
      %s349 = scalar_select %p348, %s21, 1
      %s350 = smul.addr %s349, 2
      %s351 = scalar_lea.vmem %s0, %s350
      %p352 = scmp.lt.s32.totalorder %s21, 1
      %s353 = scalar_select %p352, %s21, 1
      %s354 = smul.addr %s353, 4
      %s355 = smul.addr %s354, 8
      %s356 = scalar_lea.vmem %s10, %s355
      %v357 = vld [vmem:[%s351] sm:$0x3]
      %v359 = vperm.slane %v357, 0
      %v360 = vperm.slane %v357, 1
      %363 = vrot.lane.b32.xlu0 %v359, 34
      %v364 = vpop.permute.xlu0 %363
      %365 = vrot.lane.b32.xlu0 %v360, 34
      %v366 = vpop.permute.xlu0 %365
      %v367 = vlaneseq
      %v368 = vand.u32 %v367, 127
      %vm369 = vcmp.lt.s32.totalorder %v368, 34
      %v370 = vsel %vm369, %v364, %v366
      %v371 = vsel %vm369, %v366, %v364
      %v372 = vld [vmem:[%s1] ss:$8 sm:$0x3]
      %v374 = vperm.slane %v372, 0
      %v375 = vperm.slane %v372, 1
      %v378 = vmul.f32 %v371, %v374
      %v379 = vmul.f32 %v370, %v375
      %v382 = vrot.slane %v379, 7
      %vm383 = vcmask 1040384
      %v384 = vsel %vm383, %v378, %v382
      %v386 = vlaneseq
      %vm387 = vcmp.ge.s32.totalorder %v386, 0
      %vm388 = vcmp.lt.s32.totalorder %v386, 256
      %vm389 = vmand %vm387, %vm388
      %390 = vst.msk [vmem:[#allocation2] ss:$8 sm:$0x3] %vm389, %v384
      %391 = vst.msk [vmem:[#allocation2] ss:$8 sm:$0x0] %vm389, %v384
      %392 = vrot.lane.b32.xlu0 %v359, 33
      %v393 = vpop.permute.xlu0 %392
      %394 = vrot.lane.b32.xlu0 %v360, 33
      %v395 = vpop.permute.xlu0 %394
      %vm396 = vcmp.lt.s32.totalorder %v368, 33
      %v397 = vsel %vm396, %v393, %v395
      %v398 = vsel %vm396, %v395, %v393
      %s399 = scalar_lea.vmem %s1, 1
      %v400 = vld [vmem:[%s399] ss:$8 sm:$0x3]
      %v402 = vperm.slane %v400, 0
      %v403 = vperm.slane %v400, 1
      %v406 = vmul.f32 %v398, %v402
      %v407 = vmul.f32 %v397, %v403
      %v410 = vrot.slane %v407, 7
      %v411 = vsel %vm383, %v406, %v410
      %s413 = scalar_lea.vmem [#allocation2], 1
      %414 = vst.msk [vmem:[%s413] ss:$8 sm:$0x3] %vm389, %v411
      %415 = vst.msk [vmem:[%s413] ss:$8 sm:$0x0] %vm389, %v411
      %416 = vrot.lane.b32.xlu0 %v359, 32
      %v417 = vpop.permute.xlu0 %416
      %418 = vrot.lane.b32.xlu0 %v360, 32
      %v419 = vpop.permute.xlu0 %418
      %vm420 = vcmp.lt.s32.totalorder %v368, 32
      %v421 = vsel %vm420, %v417, %v419
      %v422 = vsel %vm420, %v419, %v417
      %s423 = scalar_lea.vmem %s1, 2
      %v424 = vld [vmem:[%s423] ss:$8 sm:$0x3]
      %v426 = vperm.slane %v424, 0
      %v427 = vperm.slane %v424, 1
      %v430 = vmul.f32 %v422, %v426
      %v431 = vmul.f32 %v421, %v427
      %v434 = vrot.slane %v431, 7
      %v435 = vsel %vm383, %v430, %v434
      %s437 = scalar_lea.vmem [#allocation2], 2
      %438 = vst.msk [vmem:[%s437] ss:$8 sm:$0x3] %vm389, %v435
      %439 = vst.msk [vmem:[%s437] ss:$8 sm:$0x0] %vm389, %v435
      %440 = vrot.lane.b32.xlu0 %v359, 31
      %v441 = vpop.permute.xlu0 %440
      %442 = vrot.lane.b32.xlu0 %v360, 31
      %v443 = vpop.permute.xlu0 %442
      %vm444 = vcmp.lt.s32.totalorder %v368, 31
      %v445 = vsel %vm444, %v441, %v443
      %v446 = vsel %vm444, %v443, %v441
      %s447 = scalar_lea.vmem %s1, 3
      %v448 = vld [vmem:[%s447] ss:$8 sm:$0x3]
      %v450 = vperm.slane %v448, 0
      %v451 = vperm.slane %v448, 1
      %v454 = vmul.f32 %v446, %v450
      %v455 = vmul.f32 %v445, %v451
      %v458 = vrot.slane %v455, 7
      %v459 = vsel %vm383, %v454, %v458
      %s461 = scalar_lea.vmem [#allocation2], 3
      %462 = vst.msk [vmem:[%s461] ss:$8 sm:$0x3] %vm389, %v459
      %463 = vst.msk [vmem:[%s461] ss:$8 sm:$0x0] %vm389, %v459
      %464 = vrot.lane.b32.xlu0 %v359, 30
      %v465 = vpop.permute.xlu0 %464
      %466 = vrot.lane.b32.xlu0 %v360, 30
      %v467 = vpop.permute.xlu0 %466
      %vm468 = vcmp.lt.s32.totalorder %v368, 30
      %v469 = vsel %vm468, %v465, %v467
      %v470 = vsel %vm468, %v467, %v465
      %s471 = scalar_lea.vmem %s1, 4
      %v472 = vld [vmem:[%s471] ss:$8 sm:$0x3]
      %v474 = vperm.slane %v472, 0
      %v475 = vperm.slane %v472, 1
      %v478 = vmul.f32 %v470, %v474
      %v479 = vmul.f32 %v469, %v475
      %v482 = vrot.slane %v479, 7
      %v483 = vsel %vm383, %v478, %v482
      %s485 = scalar_lea.vmem [#allocation2], 4
      %486 = vst.msk [vmem:[%s485] ss:$8 sm:$0x3] %vm389, %v483
      %487 = vst.msk [vmem:[%s485] ss:$8 sm:$0x0] %vm389, %v483
      %488 = vrot.lane.b32.xlu0 %v359, 18
      %v489 = vpop.permute.xlu0 %488
      %490 = vrot.lane.b32.xlu0 %v360, 18
      %v491 = vpop.permute.xlu0 %490
      %vm492 = vcmp.lt.s32.totalorder %v368, 18
      %v493 = vsel %vm492, %v489, %v491
      %v494 = vsel %vm492, %v491, %v489
      %s495 = scalar_lea.vmem %s1, 5
      %v496 = vld [vmem:[%s495] ss:$8 sm:$0x3]
      %v498 = vperm.slane %v496, 0
      %v499 = vperm.slane %v496, 1
      %v502 = vmul.f32 %v494, %v498
      %v503 = vmul.f32 %v493, %v499
      %v506 = vrot.slane %v503, 7
      %v507 = vsel %vm383, %v502, %v506
      %s509 = scalar_lea.vmem [#allocation2], 5
      %510 = vst.msk [vmem:[%s509] ss:$8 sm:$0x3] %vm389, %v507
      %511 = vst.msk [vmem:[%s509] ss:$8 sm:$0x0] %vm389, %v507
      %512 = vrot.lane.b32.xlu0 %v359, 17
      %v513 = vpop.permute.xlu0 %512
      %514 = vrot.lane.b32.xlu0 %v360, 17
      %v515 = vpop.permute.xlu0 %514
      %vm516 = vcmp.lt.s32.totalorder %v368, 17
      %v517 = vsel %vm516, %v513, %v515
      %v518 = vsel %vm516, %v515, %v513
      %s519 = scalar_lea.vmem %s1, 6
      %v520 = vld [vmem:[%s519] ss:$8 sm:$0x3]
      %v522 = vperm.slane %v520, 0
      %v523 = vperm.slane %v520, 1
      %v526 = vmul.f32 %v518, %v522
      %v527 = vmul.f32 %v517, %v523
      %v530 = vrot.slane %v527, 7
      %v531 = vsel %vm383, %v526, %v530
      %s533 = scalar_lea.vmem [#allocation2], 6
      %534 = vst.msk [vmem:[%s533] ss:$8 sm:$0x3] %vm389, %v531
      %535 = vst.msk [vmem:[%s533] ss:$8 sm:$0x0] %vm389, %v531
      %536 = vrot.lane.b32.xlu0 %v359, 16
      %v537 = vpop.permute.xlu0 %536
      %538 = vrot.lane.b32.xlu0 %v360, 16
      %v539 = vpop.permute.xlu0 %538
      %vm540 = vcmp.lt.s32.totalorder %v368, 16
      %v541 = vsel %vm540, %v537, %v539
      %v542 = vsel %vm540, %v539, %v537
      %s543 = scalar_lea.vmem %s1, 7
      %v544 = vld [vmem:[%s543] ss:$8 sm:$0x3]
      %v546 = vperm.slane %v544, 0
      %v547 = vperm.slane %v544, 1
      %v550 = vmul.f32 %v542, %v546
      %v551 = vmul.f32 %v541, %v547
      %v554 = vrot.slane %v551, 7
      %v555 = vsel %vm383, %v550, %v554
      %s557 = scalar_lea.vmem [#allocation2], 7
      %558 = vst.msk [vmem:[%s557] ss:$8 sm:$0x3] %vm389, %v555
      %559 = vst.msk [vmem:[%s557] ss:$8 sm:$0x0] %vm389, %v555
      %560 = vrot.lane.b32.xlu0 %v359, 15
      %v561 = vpop.permute.xlu0 %560
      %562 = vrot.lane.b32.xlu0 %v360, 15
      %v563 = vpop.permute.xlu0 %562
      %vm564 = vcmp.lt.s32.totalorder %v368, 15
      %v565 = vsel %vm564, %v561, %v563
      %v566 = vsel %vm564, %v563, %v561
      %s567 = scalar_lea.vmem %s1, 16
      %v568 = vld [vmem:[%s567] ss:$8 sm:$0x3]
      %v570 = vperm.slane %v568, 0
      %v571 = vperm.slane %v568, 1
      %v574 = vmul.f32 %v566, %v570
      %v575 = vmul.f32 %v565, %v571
      %v578 = vrot.slane %v575, 7
      %v579 = vsel %vm383, %v574, %v578
      %s581 = scalar_lea.vmem [#allocation2], 16
      %582 = vst.msk [vmem:[%s581] ss:$8 sm:$0x3] %vm389, %v579
      %583 = vst.msk [vmem:[%s581] ss:$8 sm:$0x0] %vm389, %v579
      %584 = vrot.lane.b32.xlu0 %v359, 14
      %v585 = vpop.permute.xlu0 %584
      %586 = vrot.lane.b32.xlu0 %v360, 14
      %v587 = vpop.permute.xlu0 %586
      %vm588 = vcmp.lt.s32.totalorder %v368, 14
      %v589 = vsel %vm588, %v585, %v587
      %v590 = vsel %vm588, %v587, %v585
      %s591 = scalar_lea.vmem %s1, 17
      %v592 = vld [vmem:[%s591] ss:$8 sm:$0x3]
      %v594 = vperm.slane %v592, 0
      %v595 = vperm.slane %v592, 1
      %v598 = vmul.f32 %v590, %v594
      %v599 = vmul.f32 %v589, %v595
      %v602 = vrot.slane %v599, 7
      %v603 = vsel %vm383, %v598, %v602
      %s605 = scalar_lea.vmem [#allocation2], 17
      %606 = vst.msk [vmem:[%s605] ss:$8 sm:$0x3] %vm389, %v603
      %607 = vst.msk [vmem:[%s605] ss:$8 sm:$0x0] %vm389, %v603
      %608 = vrot.lane.b32.xlu0 %v359, 2
      %v609 = vpop.permute.xlu0 %608
      %610 = vrot.lane.b32.xlu0 %v360, 2
      %v611 = vpop.permute.xlu0 %610
      %vm612 = vcmp.lt.s32.totalorder %v368, 2
      %v613 = vsel %vm612, %v609, %v611
      %v614 = vsel %vm612, %v611, %v609
      %s615 = scalar_lea.vmem %s1, 18
      %v616 = vld [vmem:[%s615] ss:$8 sm:$0x3]
      %v618 = vperm.slane %v616, 0
      %v619 = vperm.slane %v616, 1
      %v622 = vmul.f32 %v614, %v618
      %v623 = vmul.f32 %v613, %v619
      %v626 = vrot.slane %v623, 7
      %v627 = vsel %vm383, %v622, %v626
      %s629 = scalar_lea.vmem [#allocation2], 18
      %630 = vst.msk [vmem:[%s629] ss:$8 sm:$0x3] %vm389, %v627
      %631 = vst.msk [vmem:[%s629] ss:$8 sm:$0x0] %vm389, %v627
      %632 = vrot.lane.b32.xlu0 %v359, 1
      %v633 = vpop.permute.xlu0 %632
      %634 = vrot.lane.b32.xlu0 %v360, 1
      %v635 = vpop.permute.xlu0 %634
      %vm636 = vcmp.lt.s32.totalorder %v368, 1
      %v637 = vsel %vm636, %v633, %v635
      %v638 = vsel %vm636, %v635, %v633
      %s639 = scalar_lea.vmem %s1, 19
      %v640 = vld [vmem:[%s639] ss:$8 sm:$0x3]
      %v642 = vperm.slane %v640, 0
      %v643 = vperm.slane %v640, 1
      %v646 = vmul.f32 %v638, %v642
      %v647 = vmul.f32 %v637, %v643
      %v650 = vrot.slane %v647, 7
      %v651 = vsel %vm383, %v646, %v650
      %s653 = scalar_lea.vmem [#allocation2], 19
      %654 = vst.msk [vmem:[%s653] ss:$8 sm:$0x3] %vm389, %v651
      %655 = vst.msk [vmem:[%s653] ss:$8 sm:$0x0] %vm389, %v651
      %s656 = scalar_lea.vmem [#allocation2], 20
      %657 = vst.msk [vmem:[%s656] ss:$8 sm:$0x3] %vm389, %v357
      %658 = vst.msk [vmem:[%s656] ss:$8 sm:$0x0] %vm389, %v357
      %659 = vrot.lane.b32.xlu0 %v359, 127
      %v660 = vpop.permute.xlu0 %659
      %661 = vrot.lane.b32.xlu0 %v360, 127
      %v662 = vpop.permute.xlu0 %661
      %vm663 = vcmp.lt.s32.totalorder %v368, 127
      %v664 = vsel %vm663, %v660, %v662
      %v665 = vsel %vm663, %v662, %v660
      %s666 = scalar_lea.vmem %s1, 21
      %v667 = vld [vmem:[%s666] ss:$8 sm:$0x3]
      %v669 = vperm.slane %v667, 0
      %v670 = vperm.slane %v667, 1
      %v673 = vmul.f32 %v664, %v669
      %v674 = vmul.f32 %v665, %v670
      %v677 = vrot.slane %v674, 7
      %v678 = vsel %vm383, %v673, %v677
      %s680 = scalar_lea.vmem [#allocation2], 21
      %681 = vst.msk [vmem:[%s680] ss:$8 sm:$0x3] %vm389, %v678
      %682 = vst.msk [vmem:[%s680] ss:$8 sm:$0x0] %vm389, %v678
      %683 = vrot.lane.b32.xlu0 %v359, 126
      %v684 = vpop.permute.xlu0 %683
      %685 = vrot.lane.b32.xlu0 %v360, 126
      %v686 = vpop.permute.xlu0 %685
      %vm687 = vcmp.lt.s32.totalorder %v368, 126
      %v688 = vsel %vm687, %v684, %v686
      %v689 = vsel %vm687, %v686, %v684
      %s690 = scalar_lea.vmem %s1, 22
      %v691 = vld [vmem:[%s690] ss:$8 sm:$0x3]
      %v693 = vperm.slane %v691, 0
      %v694 = vperm.slane %v691, 1
      %v697 = vmul.f32 %v688, %v693
      %v698 = vmul.f32 %v689, %v694
      %v701 = vrot.slane %v698, 7
      %v702 = vsel %vm383, %v697, %v701
      %s704 = scalar_lea.vmem [#allocation2], 22
      %705 = vst.msk [vmem:[%s704] ss:$8 sm:$0x3] %vm389, %v702
      %706 = vst.msk [vmem:[%s704] ss:$8 sm:$0x0] %vm389, %v702
      %707 = vrot.lane.b32.xlu0 %v359, 114
      %v708 = vpop.permute.xlu0 %707
      %709 = vrot.lane.b32.xlu0 %v360, 114
      %v710 = vpop.permute.xlu0 %709
      %vm711 = vcmp.lt.s32.totalorder %v368, 114
      %v712 = vsel %vm711, %v708, %v710
      %v713 = vsel %vm711, %v710, %v708
      %s714 = scalar_lea.vmem %s1, 23
      %v715 = vld [vmem:[%s714] ss:$8 sm:$0x3]
      %v717 = vperm.slane %v715, 0
      %v718 = vperm.slane %v715, 1
      %v721 = vmul.f32 %v712, %v717
      %v722 = vmul.f32 %v713, %v718
      %v725 = vrot.slane %v722, 7
      %v726 = vsel %vm383, %v721, %v725
      %s728 = scalar_lea.vmem [#allocation2], 23
      %729 = vst.msk [vmem:[%s728] ss:$8 sm:$0x3] %vm389, %v726
      %730 = vst.msk [vmem:[%s728] ss:$8 sm:$0x0] %vm389, %v726
      %731 = vrot.lane.b32.xlu0 %v359, 113
      %v732 = vpop.permute.xlu0 %731
      %733 = vrot.lane.b32.xlu0 %v360, 113
      %v734 = vpop.permute.xlu0 %733
      %vm735 = vcmp.lt.s32.totalorder %v368, 113
      %v736 = vsel %vm735, %v732, %v734
      %v737 = vsel %vm735, %v734, %v732
      %s738 = scalar_lea.vmem %s1, 32
      %v739 = vld [vmem:[%s738] ss:$8 sm:$0x3]
      %v741 = vperm.slane %v739, 0
      %v742 = vperm.slane %v739, 1
      %v745 = vmul.f32 %v736, %v741
      %v746 = vmul.f32 %v737, %v742
      %v749 = vrot.slane %v746, 7
      %v750 = vsel %vm383, %v745, %v749
      %s752 = scalar_lea.vmem [#allocation2], 32
      %753 = vst.msk [vmem:[%s752] ss:$8 sm:$0x3] %vm389, %v750
      %754 = vst.msk [vmem:[%s752] ss:$8 sm:$0x0] %vm389, %v750
      %755 = vrot.lane.b32.xlu0 %v359, 112
      %v756 = vpop.permute.xlu0 %755
      %757 = vrot.lane.b32.xlu0 %v360, 112
      %v758 = vpop.permute.xlu0 %757
      %vm759 = vcmp.lt.s32.totalorder %v368, 112
      %v760 = vsel %vm759, %v756, %v758
      %v761 = vsel %vm759, %v758, %v756
      %s762 = scalar_lea.vmem %s1, 33
      %v763 = vld [vmem:[%s762] ss:$8 sm:$0x3]
      %v765 = vperm.slane %v763, 0
      %v766 = vperm.slane %v763, 1
      %v769 = vmul.f32 %v760, %v765
      %v770 = vmul.f32 %v761, %v766
      %v773 = vrot.slane %v770, 7
      %v774 = vsel %vm383, %v769, %v773
      %s776 = scalar_lea.vmem [#allocation2], 33
      %777 = vst.msk [vmem:[%s776] ss:$8 sm:$0x3] %vm389, %v774
      %778 = vst.msk [vmem:[%s776] ss:$8 sm:$0x0] %vm389, %v774
      %779 = vrot.lane.b32.xlu0 %v359, 111
      %v780 = vpop.permute.xlu0 %779
      %781 = vrot.lane.b32.xlu0 %v360, 111
      %v782 = vpop.permute.xlu0 %781
      %vm783 = vcmp.lt.s32.totalorder %v368, 111
      %v784 = vsel %vm783, %v780, %v782
      %v785 = vsel %vm783, %v782, %v780
      %s786 = scalar_lea.vmem %s1, 34
      %v787 = vld [vmem:[%s786] ss:$8 sm:$0x3]
      %v789 = vperm.slane %v787, 0
      %v790 = vperm.slane %v787, 1
      %v793 = vmul.f32 %v784, %v789
      %v794 = vmul.f32 %v785, %v790
      %v797 = vrot.slane %v794, 7
      %v798 = vsel %vm383, %v793, %v797
      %s800 = scalar_lea.vmem [#allocation2], 34
      %801 = vst.msk [vmem:[%s800] ss:$8 sm:$0x3] %vm389, %v798
      %802 = vst.msk [vmem:[%s800] ss:$8 sm:$0x0] %vm389, %v798
      %803 = vrot.lane.b32.xlu0 %v359, 110
      %v804 = vpop.permute.xlu0 %803
      %805 = vrot.lane.b32.xlu0 %v360, 110
      %v806 = vpop.permute.xlu0 %805
      %vm807 = vcmp.lt.s32.totalorder %v368, 110
      %v808 = vsel %vm807, %v804, %v806
      %v809 = vsel %vm807, %v806, %v804
      %s810 = scalar_lea.vmem %s1, 35
      %v811 = vld [vmem:[%s810] ss:$8 sm:$0x3]
      %v813 = vperm.slane %v811, 0
      %v814 = vperm.slane %v811, 1
      %v817 = vmul.f32 %v808, %v813
      %v818 = vmul.f32 %v809, %v814
      %v821 = vrot.slane %v818, 7
      %v822 = vsel %vm383, %v817, %v821
      %s824 = scalar_lea.vmem [#allocation2], 35
      %825 = vst.msk [vmem:[%s824] ss:$8 sm:$0x3] %vm389, %v822
      %826 = vst.msk [vmem:[%s824] ss:$8 sm:$0x0] %vm389, %v822
      %827 = vrot.lane.b32.xlu0 %v359, 98
      %v828 = vpop.permute.xlu0 %827
      %829 = vrot.lane.b32.xlu0 %v360, 98
      %v830 = vpop.permute.xlu0 %829
      %vm831 = vcmp.lt.s32.totalorder %v368, 98
      %v832 = vsel %vm831, %v828, %v830
      %v833 = vsel %vm831, %v830, %v828
      %s834 = scalar_lea.vmem %s1, 36
      %v835 = vld [vmem:[%s834] ss:$8 sm:$0x3]
      %v837 = vperm.slane %v835, 0
      %v838 = vperm.slane %v835, 1
      %v841 = vmul.f32 %v832, %v837
      %v842 = vmul.f32 %v833, %v838
      %v845 = vrot.slane %v842, 7
      %v846 = vsel %vm383, %v841, %v845
      %s848 = scalar_lea.vmem [#allocation2], 36
      %849 = vst.msk [vmem:[%s848] ss:$8 sm:$0x3] %vm389, %v846
      %850 = vst.msk [vmem:[%s848] ss:$8 sm:$0x0] %vm389, %v846
      %851 = vrot.lane.b32.xlu0 %v359, 97
      %v852 = vpop.permute.xlu0 %851
      %853 = vrot.lane.b32.xlu0 %v360, 97
      %v854 = vpop.permute.xlu0 %853
      %vm855 = vcmp.lt.s32.totalorder %v368, 97
      %v856 = vsel %vm855, %v852, %v854
      %v857 = vsel %vm855, %v854, %v852
      %s858 = scalar_lea.vmem %s1, 37
      %v859 = vld [vmem:[%s858] ss:$8 sm:$0x3]
      %v861 = vperm.slane %v859, 0
      %v862 = vperm.slane %v859, 1
      %v865 = vmul.f32 %v856, %v861
      %v866 = vmul.f32 %v857, %v862
      %v869 = vrot.slane %v866, 7
      %v870 = vsel %vm383, %v865, %v869
      %s872 = scalar_lea.vmem [#allocation2], 37
      %873 = vst.msk [vmem:[%s872] ss:$8 sm:$0x3] %vm389, %v870
      %874 = vst.msk [vmem:[%s872] ss:$8 sm:$0x0] %vm389, %v870
      %875 = vrot.lane.b32.xlu0 %v359, 96
      %v876 = vpop.permute.xlu0 %875
      %877 = vrot.lane.b32.xlu0 %v360, 96
      %v878 = vpop.permute.xlu0 %877
      %vm879 = vcmp.lt.s32.totalorder %v368, 96
      %v880 = vsel %vm879, %v876, %v878
      %v881 = vsel %vm879, %v878, %v876
      %s882 = scalar_lea.vmem %s1, 38
      %v883 = vld [vmem:[%s882] ss:$8 sm:$0x3]
      %v885 = vperm.slane %v883, 0
      %v886 = vperm.slane %v883, 1
      %v889 = vmul.f32 %v880, %v885
      %v890 = vmul.f32 %v881, %v886
      %v893 = vrot.slane %v890, 7
      %v894 = vsel %vm383, %v889, %v893
      %s896 = scalar_lea.vmem [#allocation2], 38
      %897 = vst.msk [vmem:[%s896] ss:$8 sm:$0x3] %vm389, %v894
      %898 = vst.msk [vmem:[%s896] ss:$8 sm:$0x0] %vm389, %v894
      %899 = vrot.lane.b32.xlu0 %v359, 95
      %v900 = vpop.permute.xlu0 %899
      %901 = vrot.lane.b32.xlu0 %v360, 95
      %v902 = vpop.permute.xlu0 %901
      %vm903 = vcmp.lt.s32.totalorder %v368, 95
      %v904 = vsel %vm903, %v900, %v902
      %v905 = vsel %vm903, %v902, %v900
      %s906 = scalar_lea.vmem %s1, 39
      %v907 = vld [vmem:[%s906] ss:$8 sm:$0x3]
      %v909 = vperm.slane %v907, 0
      %v910 = vperm.slane %v907, 1
      %v913 = vmul.f32 %v904, %v909
      %v914 = vmul.f32 %v905, %v910
      %v917 = vrot.slane %v914, 7
      %v918 = vsel %vm383, %v913, %v917
      %s920 = scalar_lea.vmem [#allocation2], 39
      %921 = vst.msk [vmem:[%s920] ss:$8 sm:$0x3] %vm389, %v918
      %922 = vst.msk [vmem:[%s920] ss:$8 sm:$0x0] %vm389, %v918
      %923 = vrot.lane.b32.xlu0 %v359, 94
      %v924 = vpop.permute.xlu0 %923
      %925 = vrot.lane.b32.xlu0 %v360, 94
      %v926 = vpop.permute.xlu0 %925
      %vm927 = vcmp.lt.s32.totalorder %v368, 94
      %v928 = vsel %vm927, %v924, %v926
      %v929 = vsel %vm927, %v926, %v924
      %s930 = scalar_lea.vmem %s1, 48
      %v931 = vld [vmem:[%s930] ss:$8 sm:$0x3]
      %v933 = vperm.slane %v931, 0
      %v934 = vperm.slane %v931, 1
      %v937 = vmul.f32 %v928, %v933
      %v938 = vmul.f32 %v929, %v934
      %v941 = vrot.slane %v938, 7
      %v942 = vsel %vm383, %v937, %v941
      %s944 = scalar_lea.vmem [#allocation2], 48
      %945 = vst.msk [vmem:[%s944] ss:$8 sm:$0x3] %vm389, %v942
      %946 = vst.msk [vmem:[%s944] ss:$8 sm:$0x0] %vm389, %v942
      %v947 = vld [vmem:[%s2] sm:$0xff]
      %v948 = vld [vmem:[%s2 + $0x8] sm:$0xff]
      %v949 = vld [vmem:[%s2 + $0x10] sm:$0xff]
      %v950 = vld [vmem:[%s2 + $0x18] sm:$0xff]
      %v951 = vld [vmem:[%s2 + $0x20] sm:$0xff]
      %v952 = vld [vmem:[%s2 + $0x28] sm:$0xff]
      %v953 = vld [vmem:[%s2 + $0x30] sm:$0xff]
      %v954 = vld [vmem:[%s2 + $0x38] sm:$0xff]
      %v955 = vld [vmem:[#allocation2] sm:$0xff]
      %v956 = vld [vmem:[#allocation2 + $0x8] sm:$0xff]
      %v957 = vld [vmem:[#allocation2 + $0x10] sm:$0xff]
      %v958 = vld [vmem:[#allocation2 + $0x18] sm:$0xff]
      %v959 = vld [vmem:[#allocation2 + $0x20] sm:$0xff]
      %v960 = vld [vmem:[#allocation2 + $0x28] sm:$0xff]
      %v961 = vld [vmem:[#allocation2 + $0x30] sm:$0x1]
      %v962 = vld [vmem:[#allocation2 + $0x38] sm:$0x1]
      %v963 = vld [vmem:[%s3] sm:$0xff]
      %v964 = vld [vmem:[%s3 + $0x8] sm:$0xff]
      %v965 = vld [vmem:[%s3 + $0x10] sm:$0xff]
      %v966 = vld [vmem:[%s3 + $0x18] sm:$0xff]
      %v967 = vld [vmem:[%s3 + $0x20] sm:$0xff]
      %v968 = vld [vmem:[%s3 + $0x28] sm:$0xff]
      %v969 = vld [vmem:[%s3 + $0x30] sm:$0xff]
      %v970 = vld [vmem:[%s3 + $0x38] sm:$0xff]
      %972 = vset.pattern.permute.xlu0 0
      %973 = vperm.xlu0 %972, %v963
      %v974 = vpop.permute.xlu0 %973
      %977 = vset.pattern.permute.xlu0 0
      %978 = vperm.xlu0 %977, %v964
      %v979 = vpop.permute.xlu0 %978
      %982 = vset.pattern.permute.xlu0 0
      %983 = vperm.xlu0 %982, %v965
      %v984 = vpop.permute.xlu0 %983
      %987 = vset.pattern.permute.xlu0 0
      %988 = vperm.xlu0 %987, %v966
      %v989 = vpop.permute.xlu0 %988
      %992 = vset.pattern.permute.xlu0 0
      %993 = vperm.xlu0 %992, %v967
      %v994 = vpop.permute.xlu0 %993
      %997 = vset.pattern.permute.xlu0 0
      %998 = vperm.xlu0 %997, %v968
      %v999 = vpop.permute.xlu0 %998
      %1002 = vset.pattern.permute.xlu0 0
      %1003 = vperm.xlu0 %1002, %v969
      %v1004 = vpop.permute.xlu0 %1003
      %1007 = vset.pattern.permute.xlu0 0
      %1008 = vperm.xlu0 %1007, %v970
      %v1009 = vpop.permute.xlu0 %1008
      %vm1011 = vcmask 203776
      %v1013 = vsel %vm1011, %v947, 0
      %v1016 = vsel %vm1011, %v948, 0
      %v1019 = vsel %vm1011, %v949, 0
      %v1022 = vsel %vm1011, %v950, 0
      %v1025 = vsel %vm1011, %v951, 0
      %v1028 = vsel %vm1011, %v952, 0
      %v1031 = vsel %vm1011, %v953, 0
      %v1034 = vsel %vm1011, %v954, 0
      %v1037 = vsel %vm383, %v961, 0
      %v1040 = vsel %vm383, %v962, 0
      %1042 = vmatpush.msra.mxu0 0.0
      %1043 = vmatpush.msra.mxu0 0.0
      %1044 = vmatpush.msra.mxu0 0.0
      %1045 = vmatpush.msra.mxu0 0.0
      %1046 = vmatpush.msra.mxu0 0.0
      %1047 = vmatpush.msra.mxu0 0.0
      %1048 = vmatpush.msra.mxu0 0.0
      %1049 = vmatpush.msra.mxu0 0.0
      %1050 = vmatpush.msra.mxu0 0.0
      %1051 = vmatpush.msra.mxu0 0.0
      %1052 = vmatpush.msra.mxu0 0.0
      %1053 = vmatpush.msra.mxu0 0.0
      %1054 = vmatpush.msra.mxu0 %v1037
      %1055 = vmatpush.msra.mxu0 %v959
      %1056 = vmatpush.msra.mxu0 %v957
      %1057 = vmatpush.msra.mxu0 %v955
      %1058 = vmatmul.f32.gmra.mxu0 %v1013
      %v1059 = vpop.f32.mrf.mxu0
      %v1060 = vadd.f32 %v974, %v1059
      %1061 = vmatmul.f32.gmra.mxu0 %v1016
      %v1062 = vpop.f32.mrf.mxu0
      %v1063 = vadd.f32 %v979, %v1062
      %1064 = vmatmul.f32.gmra.mxu0 %v1019
      %v1065 = vpop.f32.mrf.mxu0
      %v1066 = vadd.f32 %v984, %v1065
      %1067 = vmatmul.f32.gmra.mxu0 %v1022
      %v1068 = vpop.f32.mrf.mxu0
      %v1069 = vadd.f32 %v989, %v1068
      %1070 = vmatmul.f32.gmra.mxu0 %v1025
      %v1071 = vpop.f32.mrf.mxu0
      %v1072 = vadd.f32 %v994, %v1071
      %1073 = vmatmul.f32.gmra.mxu0 %v1028
      %v1074 = vpop.f32.mrf.mxu0
      %v1075 = vadd.f32 %v999, %v1074
      %1076 = vmatmul.f32.gmra.mxu0 %v1031
      %v1077 = vpop.f32.mrf.mxu0
      %v1078 = vadd.f32 %v1004, %v1077
      %1079 = vmatmul.f32.gmra.mxu0 %v1034
      %v1080 = vpop.f32.mrf.mxu0
      %v1081 = vadd.f32 %v1009, %v1080
      %1082 = vdwg.mxu0
      %1083 = vmatpush.msra.mxu0 0.0
      %1084 = vmatpush.msra.mxu0 0.0
      %1085 = vmatpush.msra.mxu0 0.0
      %1086 = vmatpush.msra.mxu0 0.0
      %1087 = vmatpush.msra.mxu0 0.0
      %1088 = vmatpush.msra.mxu0 0.0
      %1089 = vmatpush.msra.mxu0 0.0
      %1090 = vmatpush.msra.mxu0 0.0
      %1091 = vmatpush.msra.mxu0 0.0
      %1092 = vmatpush.msra.mxu0 0.0
      %1093 = vmatpush.msra.mxu0 0.0
      %1094 = vmatpush.msra.mxu0 0.0
      %1095 = vmatpush.msra.mxu0 %v1040
      %1096 = vmatpush.msra.mxu0 %v960
      %1097 = vmatpush.msra.mxu0 %v958
      %1098 = vmatpush.msra.mxu0 %v956
      %1099 = vmatmul.f32.gmra.mxu0 %v1013
      %v1100 = vpop.f32.mrf.mxu0
      %v1101 = vadd.f32 %v974, %v1100
      %1102 = vmatmul.f32.gmra.mxu0 %v1016
      %v1103 = vpop.f32.mrf.mxu0
      %v1104 = vadd.f32 %v979, %v1103
      %1105 = vmatmul.f32.gmra.mxu0 %v1019
      %v1106 = vpop.f32.mrf.mxu0
      %v1107 = vadd.f32 %v984, %v1106
      %1108 = vmatmul.f32.gmra.mxu0 %v1022
      %v1109 = vpop.f32.mrf.mxu0
      %v1110 = vadd.f32 %v989, %v1109
      %1111 = vmatmul.f32.gmra.mxu0 %v1025
      %v1112 = vpop.f32.mrf.mxu0
      %v1113 = vadd.f32 %v994, %v1112
      %1114 = vmatmul.f32.gmra.mxu0 %v1028
      %v1115 = vpop.f32.mrf.mxu0
      %v1116 = vadd.f32 %v999, %v1115
      %1117 = vmatmul.f32.gmra.mxu0 %v1031
      %v1118 = vpop.f32.mrf.mxu0
      %v1119 = vadd.f32 %v1004, %v1118
      %1120 = vmatmul.f32.gmra.mxu0 %v1034
      %v1121 = vpop.f32.mrf.mxu0
      %v1122 = vadd.f32 %v1009, %v1121
      %1123 = vdwg.mxu0
      %v1124 = vmax.f32 %v1060, 0.0
      %v1125 = vmax.f32 %v1101, 0.0
      %v1126 = vmax.f32 %v1063, 0.0
      %v1127 = vmax.f32 %v1104, 0.0
      %v1128 = vmax.f32 %v1066, 0.0
      %v1129 = vmax.f32 %v1107, 0.0
      %v1130 = vmax.f32 %v1069, 0.0
      %v1131 = vmax.f32 %v1110, 0.0
      %v1132 = vmax.f32 %v1072, 0.0
      %v1133 = vmax.f32 %v1113, 0.0
      %v1134 = vmax.f32 %v1075, 0.0
      %v1135 = vmax.f32 %v1116, 0.0
      %v1136 = vmax.f32 %v1078, 0.0
      %v1137 = vmax.f32 %v1119, 0.0
      %v1138 = vmax.f32 %v1081, 0.0
      %v1139 = vmax.f32 %v1122, 0.0
      %1140 = vrot.lane.b32.xlu0 %v1124, 17
      %v1141 = vpop.permute.xlu0 %1140
      %1142 = vrot.lane.b32.xlu0 %v1126, 17
      %v1143 = vpop.permute.xlu0 %1142
      %1144 = vrot.lane.b32.xlu0 %v1128, 17
      %v1145 = vpop.permute.xlu0 %1144
      %1146 = vrot.lane.b32.xlu0 %v1130, 17
      %v1147 = vpop.permute.xlu0 %1146
      %1148 = vrot.lane.b32.xlu0 %v1132, 17
      %v1149 = vpop.permute.xlu0 %1148
      %1150 = vrot.lane.b32.xlu0 %v1134, 17
      %v1151 = vpop.permute.xlu0 %1150
      %1152 = vrot.lane.b32.xlu0 %v1136, 17
      %v1153 = vpop.permute.xlu0 %1152
      %1154 = vrot.lane.b32.xlu0 %v1138, 17
      %v1155 = vpop.permute.xlu0 %1154
      %1156 = vrot.lane.b32.xlu0 %v1125, 17
      %v1157 = vpop.permute.xlu0 %1156
      %1158 = vrot.lane.b32.xlu0 %v1127, 17
      %v1159 = vpop.permute.xlu0 %1158
      %1160 = vrot.lane.b32.xlu0 %v1129, 17
      %v1161 = vpop.permute.xlu0 %1160
      %1162 = vrot.lane.b32.xlu0 %v1131, 17
      %v1163 = vpop.permute.xlu0 %1162
      %1164 = vrot.lane.b32.xlu0 %v1133, 17
      %v1165 = vpop.permute.xlu0 %1164
      %1166 = vrot.lane.b32.xlu0 %v1135, 17
      %v1167 = vpop.permute.xlu0 %1166
      %1168 = vrot.lane.b32.xlu0 %v1137, 17
      %v1169 = vpop.permute.xlu0 %1168
      %1170 = vrot.lane.b32.xlu0 %v1139, 17
      %v1171 = vpop.permute.xlu0 %1170
      %v1172 = vsel %vm516, %v1141, %v1157
      %v1173 = vsel %vm516, %v1143, %v1159
      %v1174 = vsel %vm516, %v1145, %v1161
      %v1175 = vsel %vm516, %v1147, %v1163
      %v1176 = vsel %vm516, %v1149, %v1165
      %v1177 = vsel %vm516, %v1151, %v1167
      %v1178 = vsel %vm516, %v1153, %v1169
      %v1179 = vsel %vm516, %v1155, %v1171
      %v1180 = vsel %vm516, %v1157, %v1141
      %v1181 = vsel %vm516, %v1159, %v1143
      %v1182 = vsel %vm516, %v1161, %v1145
      %v1183 = vsel %vm516, %v1163, %v1147
      %v1184 = vsel %vm516, %v1165, %v1149
      %v1185 = vsel %vm516, %v1167, %v1151
      %v1186 = vsel %vm516, %v1169, %v1153
      %v1187 = vsel %vm516, %v1171, %v1155
      %v1188 = vld [vmem:[%s519] ss:$8 sm:$0x3]
      %v1190 = vperm.slane %v1188, 0
      %v1191 = vperm.slane %v1188, 1
      %v1194 = vmul.f32 %v1180, %v1190
      %v1195 = vmul.f32 %v1172, %v1191
      %v1196 = vmul.f32 %v1181, %v1190
      %v1197 = vmul.f32 %v1173, %v1191
      %v1198 = vmul.f32 %v1182, %v1190
      %v1199 = vmul.f32 %v1174, %v1191
      %v1200 = vmul.f32 %v1183, %v1190
      %v1201 = vmul.f32 %v1175, %v1191
      %v1202 = vmul.f32 %v1184, %v1190
      %v1203 = vmul.f32 %v1176, %v1191
      %v1204 = vmul.f32 %v1185, %v1190
      %v1205 = vmul.f32 %v1177, %v1191
      %v1206 = vmul.f32 %v1186, %v1190
      %v1207 = vmul.f32 %v1178, %v1191
      %v1208 = vmul.f32 %v1187, %v1190
      %v1209 = vmul.f32 %v1179, %v1191
      %1210 = vst [vmem:[#allocation2] sm:$0xff] %v1194
      %1211 = vst [vmem:[#allocation2 + $0x8] sm:$0xff] %v1195
      %1212 = vst [vmem:[#allocation2 + $0x10] sm:$0xff] %v1196
      %1213 = vst [vmem:[#allocation2 + $0x18] sm:$0xff] %v1197
      %1214 = vst [vmem:[#allocation2 + $0x20] sm:$0xff] %v1198
      %1215 = vst [vmem:[#allocation2 + $0x28] sm:$0xff] %v1199
      %1216 = vst [vmem:[#allocation2 + $0x30] sm:$0xff] %v1200
      %1217 = vst [vmem:[#allocation2 + $0x38] sm:$0xff] %v1201
      %1218 = vst [vmem:[#allocation2 + $0x40] sm:$0xff] %v1202
      %1219 = vst [vmem:[#allocation2 + $0x48] sm:$0xff] %v1203
      %1220 = vst [vmem:[#allocation2 + $0x50] sm:$0xff] %v1204
      %1221 = vst [vmem:[#allocation2 + $0x58] sm:$0xff] %v1205
      %1222 = vst [vmem:[#allocation2 + $0x60] sm:$0xff] %v1206
      %1223 = vst [vmem:[#allocation2 + $0x68] sm:$0xff] %v1207
      %1224 = vst [vmem:[#allocation2 + $0x70] sm:$0xff] %v1208
      %1225 = vst [vmem:[#allocation2 + $0x78] sm:$0xff] %v1209
      %1226 = vrot.lane.b32.xlu0 %v1124, 16
      %v1227 = vpop.permute.xlu0 %1226
      %1228 = vrot.lane.b32.xlu0 %v1126, 16
      %v1229 = vpop.permute.xlu0 %1228
      %1230 = vrot.lane.b32.xlu0 %v1128, 16
      %v1231 = vpop.permute.xlu0 %1230
      %1232 = vrot.lane.b32.xlu0 %v1130, 16
      %v1233 = vpop.permute.xlu0 %1232
      %1234 = vrot.lane.b32.xlu0 %v1132, 16
      %v1235 = vpop.permute.xlu0 %1234
      %1236 = vrot.lane.b32.xlu0 %v1134, 16
      %v1237 = vpop.permute.xlu0 %1236
      %1238 = vrot.lane.b32.xlu0 %v1136, 16
      %v1239 = vpop.permute.xlu0 %1238
      %1240 = vrot.lane.b32.xlu0 %v1138, 16
      %v1241 = vpop.permute.xlu0 %1240
      %1242 = vrot.lane.b32.xlu0 %v1125, 16
      %v1243 = vpop.permute.xlu0 %1242
      %1244 = vrot.lane.b32.xlu0 %v1127, 16
      %v1245 = vpop.permute.xlu0 %1244
      %1246 = vrot.lane.b32.xlu0 %v1129, 16
      %v1247 = vpop.permute.xlu0 %1246
      %1248 = vrot.lane.b32.xlu0 %v1131, 16
      %v1249 = vpop.permute.xlu0 %1248
      %1250 = vrot.lane.b32.xlu0 %v1133, 16
      %v1251 = vpop.permute.xlu0 %1250
      %1252 = vrot.lane.b32.xlu0 %v1135, 16
      %v1253 = vpop.permute.xlu0 %1252
      %1254 = vrot.lane.b32.xlu0 %v1137, 16
      %v1255 = vpop.permute.xlu0 %1254
      %1256 = vrot.lane.b32.xlu0 %v1139, 16
      %v1257 = vpop.permute.xlu0 %1256
      %v1258 = vsel %vm540, %v1227, %v1243
      %v1259 = vsel %vm540, %v1229, %v1245
      %v1260 = vsel %vm540, %v1231, %v1247
      %v1261 = vsel %vm540, %v1233, %v1249
      %v1262 = vsel %vm540, %v1235, %v1251
      %v1263 = vsel %vm540, %v1237, %v1253
      %v1264 = vsel %vm540, %v1239, %v1255
      %v1265 = vsel %vm540, %v1241, %v1257
      %v1266 = vsel %vm540, %v1243, %v1227
      %v1267 = vsel %vm540, %v1245, %v1229
      %v1268 = vsel %vm540, %v1247, %v1231
      %v1269 = vsel %vm540, %v1249, %v1233
      %v1270 = vsel %vm540, %v1251, %v1235
      %v1271 = vsel %vm540, %v1253, %v1237
      %v1272 = vsel %vm540, %v1255, %v1239
      %v1273 = vsel %vm540, %v1257, %v1241
      %v1274 = vld [vmem:[%s543] ss:$8 sm:$0x3]
      %v1276 = vperm.slane %v1274, 0
      %v1277 = vperm.slane %v1274, 1
      %v1280 = vmul.f32 %v1266, %v1276
      %v1281 = vmul.f32 %v1258, %v1277
      %v1282 = vmul.f32 %v1267, %v1276
      %v1283 = vmul.f32 %v1259, %v1277
      %v1284 = vmul.f32 %v1268, %v1276
      %v1285 = vmul.f32 %v1260, %v1277
      %v1286 = vmul.f32 %v1269, %v1276
      %v1287 = vmul.f32 %v1261, %v1277
      %v1288 = vmul.f32 %v1270, %v1276
      %v1289 = vmul.f32 %v1262, %v1277
      %v1290 = vmul.f32 %v1271, %v1276
      %v1291 = vmul.f32 %v1263, %v1277
      %v1292 = vmul.f32 %v1272, %v1276
      %v1293 = vmul.f32 %v1264, %v1277
      %v1294 = vmul.f32 %v1273, %v1276
      %v1295 = vmul.f32 %v1265, %v1277
      %1296 = vst [vmem:[#allocation2 + $0x80] sm:$0xff] %v1280
      %1297 = vst [vmem:[#allocation2 + $0x88] sm:$0xff] %v1281
      %1298 = vst [vmem:[#allocation2 + $0x90] sm:$0xff] %v1282
      %1299 = vst [vmem:[#allocation2 + $0x98] sm:$0xff] %v1283
      %1300 = vst [vmem:[#allocation2 + $0xa0] sm:$0xff] %v1284
      %1301 = vst [vmem:[#allocation2 + $0xa8] sm:$0xff] %v1285
      %1302 = vst [vmem:[#allocation2 + $0xb0] sm:$0xff] %v1286
      %1303 = vst [vmem:[#allocation2 + $0xb8] sm:$0xff] %v1287
      %1304 = vst [vmem:[#allocation2 + $0xc0] sm:$0xff] %v1288
      %1305 = vst [vmem:[#allocation2 + $0xc8] sm:$0xff] %v1289
      %1306 = vst [vmem:[#allocation2 + $0xd0] sm:$0xff] %v1290
      %1307 = vst [vmem:[#allocation2 + $0xd8] sm:$0xff] %v1291
      %1308 = vst [vmem:[#allocation2 + $0xe0] sm:$0xff] %v1292
      %1309 = vst [vmem:[#allocation2 + $0xe8] sm:$0xff] %v1293
      %1310 = vst [vmem:[#allocation2 + $0xf0] sm:$0xff] %v1294
      %1311 = vst [vmem:[#allocation2 + $0xf8] sm:$0xff] %v1295
      %1312 = vrot.lane.b32.xlu0 %v1124, 15
      %v1313 = vpop.permute.xlu0 %1312
      %1314 = vrot.lane.b32.xlu0 %v1126, 15
      %v1315 = vpop.permute.xlu0 %1314
      %1316 = vrot.lane.b32.xlu0 %v1128, 15
      %v1317 = vpop.permute.xlu0 %1316
      %1318 = vrot.lane.b32.xlu0 %v1130, 15
      %v1319 = vpop.permute.xlu0 %1318
      %1320 = vrot.lane.b32.xlu0 %v1132, 15
      %v1321 = vpop.permute.xlu0 %1320
      %1322 = vrot.lane.b32.xlu0 %v1134, 15
      %v1323 = vpop.permute.xlu0 %1322
      %1324 = vrot.lane.b32.xlu0 %v1136, 15
      %v1325 = vpop.permute.xlu0 %1324
      %1326 = vrot.lane.b32.xlu0 %v1138, 15
      %v1327 = vpop.permute.xlu0 %1326
      %1328 = vrot.lane.b32.xlu0 %v1125, 15
      %v1329 = vpop.permute.xlu0 %1328
      %1330 = vrot.lane.b32.xlu0 %v1127, 15
      %v1331 = vpop.permute.xlu0 %1330
      %1332 = vrot.lane.b32.xlu0 %v1129, 15
      %v1333 = vpop.permute.xlu0 %1332
      %1334 = vrot.lane.b32.xlu0 %v1131, 15
      %v1335 = vpop.permute.xlu0 %1334
      %1336 = vrot.lane.b32.xlu0 %v1133, 15
      %v1337 = vpop.permute.xlu0 %1336
      %1338 = vrot.lane.b32.xlu0 %v1135, 15
      %v1339 = vpop.permute.xlu0 %1338
      %1340 = vrot.lane.b32.xlu0 %v1137, 15
      %v1341 = vpop.permute.xlu0 %1340
      %1342 = vrot.lane.b32.xlu0 %v1139, 15
      %v1343 = vpop.permute.xlu0 %1342
      %v1344 = vsel %vm564, %v1313, %v1329
      %v1345 = vsel %vm564, %v1315, %v1331
      %v1346 = vsel %vm564, %v1317, %v1333
      %v1347 = vsel %vm564, %v1319, %v1335
      %v1348 = vsel %vm564, %v1321, %v1337
      %v1349 = vsel %vm564, %v1323, %v1339
      %v1350 = vsel %vm564, %v1325, %v1341
      %v1351 = vsel %vm564, %v1327, %v1343
      %v1352 = vsel %vm564, %v1329, %v1313
      %v1353 = vsel %vm564, %v1331, %v1315
      %v1354 = vsel %vm564, %v1333, %v1317
      %v1355 = vsel %vm564, %v1335, %v1319
      %v1356 = vsel %vm564, %v1337, %v1321
      %v1357 = vsel %vm564, %v1339, %v1323
      %v1358 = vsel %vm564, %v1341, %v1325
      %v1359 = vsel %vm564, %v1343, %v1327
      %v1360 = vld [vmem:[%s567] ss:$8 sm:$0x3]
      %v1362 = vperm.slane %v1360, 0
      %v1363 = vperm.slane %v1360, 1
      %v1366 = vmul.f32 %v1352, %v1362
      %v1367 = vmul.f32 %v1344, %v1363
      %v1368 = vmul.f32 %v1353, %v1362
      %v1369 = vmul.f32 %v1345, %v1363
      %v1370 = vmul.f32 %v1354, %v1362
      %v1371 = vmul.f32 %v1346, %v1363
      %v1372 = vmul.f32 %v1355, %v1362
      %v1373 = vmul.f32 %v1347, %v1363
      %v1374 = vmul.f32 %v1356, %v1362
      %v1375 = vmul.f32 %v1348, %v1363
      %v1376 = vmul.f32 %v1357, %v1362
      %v1377 = vmul.f32 %v1349, %v1363
      %v1378 = vmul.f32 %v1358, %v1362
      %v1379 = vmul.f32 %v1350, %v1363
      %v1380 = vmul.f32 %v1359, %v1362
      %v1381 = vmul.f32 %v1351, %v1363
      %1382 = vst [vmem:[#allocation2 + $0x100] sm:$0xff] %v1366
      %1383 = vst [vmem:[#allocation2 + $0x108] sm:$0xff] %v1367
      %1384 = vst [vmem:[#allocation2 + $0x110] sm:$0xff] %v1368
      %1385 = vst [vmem:[#allocation2 + $0x118] sm:$0xff] %v1369
      %1386 = vst [vmem:[#allocation2 + $0x120] sm:$0xff] %v1370
      %1387 = vst [vmem:[#allocation2 + $0x128] sm:$0xff] %v1371
      %1388 = vst [vmem:[#allocation2 + $0x130] sm:$0xff] %v1372
      %1389 = vst [vmem:[#allocation2 + $0x138] sm:$0xff] %v1373
      %1390 = vst [vmem:[#allocation2 + $0x140] sm:$0xff] %v1374
      %1391 = vst [vmem:[#allocation2 + $0x148] sm:$0xff] %v1375
      %1392 = vst [vmem:[#allocation2 + $0x150] sm:$0xff] %v1376
      %1393 = vst [vmem:[#allocation2 + $0x158] sm:$0xff] %v1377
      %1394 = vst [vmem:[#allocation2 + $0x160] sm:$0xff] %v1378
      %1395 = vst [vmem:[#allocation2 + $0x168] sm:$0xff] %v1379
      %1396 = vst [vmem:[#allocation2 + $0x170] sm:$0xff] %v1380
      %1397 = vst [vmem:[#allocation2 + $0x178] sm:$0xff] %v1381
      %1398 = vrot.lane.b32.xlu0 %v1124, 1
      %v1399 = vpop.permute.xlu0 %1398
      %1400 = vrot.lane.b32.xlu0 %v1126, 1
      %v1401 = vpop.permute.xlu0 %1400
      %1402 = vrot.lane.b32.xlu0 %v1128, 1
      %v1403 = vpop.permute.xlu0 %1402
      %1404 = vrot.lane.b32.xlu0 %v1130, 1
      %v1405 = vpop.permute.xlu0 %1404
      %1406 = vrot.lane.b32.xlu0 %v1132, 1
      %v1407 = vpop.permute.xlu0 %1406
      %1408 = vrot.lane.b32.xlu0 %v1134, 1
      %v1409 = vpop.permute.xlu0 %1408
      %1410 = vrot.lane.b32.xlu0 %v1136, 1
      %v1411 = vpop.permute.xlu0 %1410
      %1412 = vrot.lane.b32.xlu0 %v1138, 1
      %v1413 = vpop.permute.xlu0 %1412
      %1414 = vrot.lane.b32.xlu0 %v1125, 1
      %v1415 = vpop.permute.xlu0 %1414
      %1416 = vrot.lane.b32.xlu0 %v1127, 1
      %v1417 = vpop.permute.xlu0 %1416
      %1418 = vrot.lane.b32.xlu0 %v1129, 1
      %v1419 = vpop.permute.xlu0 %1418
      %1420 = vrot.lane.b32.xlu0 %v1131, 1
      %v1421 = vpop.permute.xlu0 %1420
      %1422 = vrot.lane.b32.xlu0 %v1133, 1
      %v1423 = vpop.permute.xlu0 %1422
      %1424 = vrot.lane.b32.xlu0 %v1135, 1
      %v1425 = vpop.permute.xlu0 %1424
      %1426 = vrot.lane.b32.xlu0 %v1137, 1
      %v1427 = vpop.permute.xlu0 %1426
      %1428 = vrot.lane.b32.xlu0 %v1139, 1
      %v1429 = vpop.permute.xlu0 %1428
      %v1430 = vsel %vm636, %v1399, %v1415
      %v1431 = vsel %vm636, %v1401, %v1417
      %v1432 = vsel %vm636, %v1403, %v1419
      %v1433 = vsel %vm636, %v1405, %v1421
      %v1434 = vsel %vm636, %v1407, %v1423
      %v1435 = vsel %vm636, %v1409, %v1425
      %v1436 = vsel %vm636, %v1411, %v1427
      %v1437 = vsel %vm636, %v1413, %v1429
      %v1438 = vsel %vm636, %v1415, %v1399
      %v1439 = vsel %vm636, %v1417, %v1401
      %v1440 = vsel %vm636, %v1419, %v1403
      %v1441 = vsel %vm636, %v1421, %v1405
      %v1442 = vsel %vm636, %v1423, %v1407
      %v1443 = vsel %vm636, %v1425, %v1409
      %v1444 = vsel %vm636, %v1427, %v1411
      %v1445 = vsel %vm636, %v1429, %v1413
      %v1446 = vld [vmem:[%s639] ss:$8 sm:$0x3]
      %v1448 = vperm.slane %v1446, 0
      %v1449 = vperm.slane %v1446, 1
      %v1452 = vmul.f32 %v1438, %v1448
      %v1453 = vmul.f32 %v1430, %v1449
      %v1454 = vmul.f32 %v1439, %v1448
      %v1455 = vmul.f32 %v1431, %v1449
      %v1456 = vmul.f32 %v1440, %v1448
      %v1457 = vmul.f32 %v1432, %v1449
      %v1458 = vmul.f32 %v1441, %v1448
      %v1459 = vmul.f32 %v1433, %v1449
      %v1460 = vmul.f32 %v1442, %v1448
      %v1461 = vmul.f32 %v1434, %v1449
      %v1462 = vmul.f32 %v1443, %v1448
      %v1463 = vmul.f32 %v1435, %v1449
      %v1464 = vmul.f32 %v1444, %v1448
      %v1465 = vmul.f32 %v1436, %v1449
      %v1466 = vmul.f32 %v1445, %v1448
      %v1467 = vmul.f32 %v1437, %v1449
      %1468 = vst [vmem:[#allocation2 + $0x180] sm:$0xff] %v1452
      %1469 = vst [vmem:[#allocation2 + $0x188] sm:$0xff] %v1453
      %1470 = vst [vmem:[#allocation2 + $0x190] sm:$0xff] %v1454
      %1471 = vst [vmem:[#allocation2 + $0x198] sm:$0xff] %v1455
      %1472 = vst [vmem:[#allocation2 + $0x1a0] sm:$0xff] %v1456
      %1473 = vst [vmem:[#allocation2 + $0x1a8] sm:$0xff] %v1457
      %1474 = vst [vmem:[#allocation2 + $0x1b0] sm:$0xff] %v1458
      %1475 = vst [vmem:[#allocation2 + $0x1b8] sm:$0xff] %v1459
      %1476 = vst [vmem:[#allocation2 + $0x1c0] sm:$0xff] %v1460
      %1477 = vst [vmem:[#allocation2 + $0x1c8] sm:$0xff] %v1461
      %1478 = vst [vmem:[#allocation2 + $0x1d0] sm:$0xff] %v1462
      %1479 = vst [vmem:[#allocation2 + $0x1d8] sm:$0xff] %v1463
      %1480 = vst [vmem:[#allocation2 + $0x1e0] sm:$0xff] %v1464
      %1481 = vst [vmem:[#allocation2 + $0x1e8] sm:$0xff] %v1465
      %1482 = vst [vmem:[#allocation2 + $0x1f0] sm:$0xff] %v1466
      %1483 = vst [vmem:[#allocation2 + $0x1f8] sm:$0xff] %v1467
      %1484 = vst [vmem:[#allocation2 + $0x200] sm:$0xff] %v1124
      %1485 = vst [vmem:[#allocation2 + $0x208] sm:$0xff] %v1125
      %1486 = vst [vmem:[#allocation2 + $0x210] sm:$0xff] %v1126
      %1487 = vst [vmem:[#allocation2 + $0x218] sm:$0xff] %v1127
      %1488 = vst [vmem:[#allocation2 + $0x220] sm:$0xff] %v1128
      %1489 = vst [vmem:[#allocation2 + $0x228] sm:$0xff] %v1129
      %1490 = vst [vmem:[#allocation2 + $0x230] sm:$0xff] %v1130
      %1491 = vst [vmem:[#allocation2 + $0x238] sm:$0xff] %v1131
      %1492 = vst [vmem:[#allocation2 + $0x240] sm:$0xff] %v1132
      %1493 = vst [vmem:[#allocation2 + $0x248] sm:$0xff] %v1133
      %1494 = vst [vmem:[#allocation2 + $0x250] sm:$0xff] %v1134
      %1495 = vst [vmem:[#allocation2 + $0x258] sm:$0xff] %v1135
      %1496 = vst [vmem:[#allocation2 + $0x260] sm:$0xff] %v1136
      %1497 = vst [vmem:[#allocation2 + $0x268] sm:$0xff] %v1137
      %1498 = vst [vmem:[#allocation2 + $0x270] sm:$0xff] %v1138
      %1499 = vst [vmem:[#allocation2 + $0x278] sm:$0xff] %v1139
      %1500 = vrot.lane.b32.xlu0 %v1124, 127
      %v1501 = vpop.permute.xlu0 %1500
      %1502 = vrot.lane.b32.xlu0 %v1126, 127
      %v1503 = vpop.permute.xlu0 %1502
      %1504 = vrot.lane.b32.xlu0 %v1128, 127
      %v1505 = vpop.permute.xlu0 %1504
      %1506 = vrot.lane.b32.xlu0 %v1130, 127
      %v1507 = vpop.permute.xlu0 %1506
      %1508 = vrot.lane.b32.xlu0 %v1132, 127
      %v1509 = vpop.permute.xlu0 %1508
      %1510 = vrot.lane.b32.xlu0 %v1134, 127
      %v1511 = vpop.permute.xlu0 %1510
      %1512 = vrot.lane.b32.xlu0 %v1136, 127
      %v1513 = vpop.permute.xlu0 %1512
      %1514 = vrot.lane.b32.xlu0 %v1138, 127
      %v1515 = vpop.permute.xlu0 %1514
      %1516 = vrot.lane.b32.xlu0 %v1125, 127
      %v1517 = vpop.permute.xlu0 %1516
      %1518 = vrot.lane.b32.xlu0 %v1127, 127
      %v1519 = vpop.permute.xlu0 %1518
      %1520 = vrot.lane.b32.xlu0 %v1129, 127
      %v1521 = vpop.permute.xlu0 %1520
      %1522 = vrot.lane.b32.xlu0 %v1131, 127
      %v1523 = vpop.permute.xlu0 %1522
      %1524 = vrot.lane.b32.xlu0 %v1133, 127
      %v1525 = vpop.permute.xlu0 %1524
      %1526 = vrot.lane.b32.xlu0 %v1135, 127
      %v1527 = vpop.permute.xlu0 %1526
      %1528 = vrot.lane.b32.xlu0 %v1137, 127
      %v1529 = vpop.permute.xlu0 %1528
      %1530 = vrot.lane.b32.xlu0 %v1139, 127
      %v1531 = vpop.permute.xlu0 %1530
      %v1532 = vsel %vm663, %v1501, %v1517
      %v1533 = vsel %vm663, %v1503, %v1519
      %v1534 = vsel %vm663, %v1505, %v1521
      %v1535 = vsel %vm663, %v1507, %v1523
      %v1536 = vsel %vm663, %v1509, %v1525
      %v1537 = vsel %vm663, %v1511, %v1527
      %v1538 = vsel %vm663, %v1513, %v1529
      %v1539 = vsel %vm663, %v1515, %v1531
      %v1540 = vsel %vm663, %v1517, %v1501
      %v1541 = vsel %vm663, %v1519, %v1503
      %v1542 = vsel %vm663, %v1521, %v1505
      %v1543 = vsel %vm663, %v1523, %v1507
      %v1544 = vsel %vm663, %v1525, %v1509
      %v1545 = vsel %vm663, %v1527, %v1511
      %v1546 = vsel %vm663, %v1529, %v1513
      %v1547 = vsel %vm663, %v1531, %v1515
      %v1548 = vld [vmem:[%s666] ss:$8 sm:$0x3]
      %v1550 = vperm.slane %v1548, 0
      %v1551 = vperm.slane %v1548, 1
      %v1554 = vmul.f32 %v1532, %v1550
      %v1555 = vmul.f32 %v1540, %v1551
      %v1556 = vmul.f32 %v1533, %v1550
      %v1557 = vmul.f32 %v1541, %v1551
      %v1558 = vmul.f32 %v1534, %v1550
      %v1559 = vmul.f32 %v1542, %v1551
      %v1560 = vmul.f32 %v1535, %v1550
      %v1561 = vmul.f32 %v1543, %v1551
      %v1562 = vmul.f32 %v1536, %v1550
      %v1563 = vmul.f32 %v1544, %v1551
      %v1564 = vmul.f32 %v1537, %v1550
      %v1565 = vmul.f32 %v1545, %v1551
      %v1566 = vmul.f32 %v1538, %v1550
      %v1567 = vmul.f32 %v1546, %v1551
      %v1568 = vmul.f32 %v1539, %v1550
      %v1569 = vmul.f32 %v1547, %v1551
      %1570 = vst [vmem:[#allocation2 + $0x280] sm:$0xff] %v1554
      %1571 = vst [vmem:[#allocation2 + $0x288] sm:$0xff] %v1555
      %1572 = vst [vmem:[#allocation2 + $0x290] sm:$0xff] %v1556
      %1573 = vst [vmem:[#allocation2 + $0x298] sm:$0xff] %v1557
      %1574 = vst [vmem:[#allocation2 + $0x2a0] sm:$0xff] %v1558
      %1575 = vst [vmem:[#allocation2 + $0x2a8] sm:$0xff] %v1559
      %1576 = vst [vmem:[#allocation2 + $0x2b0] sm:$0xff] %v1560
      %1577 = vst [vmem:[#allocation2 + $0x2b8] sm:$0xff] %v1561
      %1578 = vst [vmem:[#allocation2 + $0x2c0] sm:$0xff] %v1562
      %1579 = vst [vmem:[#allocation2 + $0x2c8] sm:$0xff] %v1563
      %1580 = vst [vmem:[#allocation2 + $0x2d0] sm:$0xff] %v1564
      %1581 = vst [vmem:[#allocation2 + $0x2d8] sm:$0xff] %v1565
      %1582 = vst [vmem:[#allocation2 + $0x2e0] sm:$0xff] %v1566
      %1583 = vst [vmem:[#allocation2 + $0x2e8] sm:$0xff] %v1567
      %1584 = vst [vmem:[#allocation2 + $0x2f0] sm:$0xff] %v1568
      %1585 = vst [vmem:[#allocation2 + $0x2f8] sm:$0xff] %v1569
      %1586 = vrot.lane.b32.xlu0 %v1124, 113
      %v1587 = vpop.permute.xlu0 %1586
      %1588 = vrot.lane.b32.xlu0 %v1126, 113
      %v1589 = vpop.permute.xlu0 %1588
      %1590 = vrot.lane.b32.xlu0 %v1128, 113
      %v1591 = vpop.permute.xlu0 %1590
      %1592 = vrot.lane.b32.xlu0 %v1130, 113
      %v1593 = vpop.permute.xlu0 %1592
      %1594 = vrot.lane.b32.xlu0 %v1132, 113
      %v1595 = vpop.permute.xlu0 %1594
      %1596 = vrot.lane.b32.xlu0 %v1134, 113
      %v1597 = vpop.permute.xlu0 %1596
      %1598 = vrot.lane.b32.xlu0 %v1136, 113
      %v1599 = vpop.permute.xlu0 %1598
      %1600 = vrot.lane.b32.xlu0 %v1138, 113
      %v1601 = vpop.permute.xlu0 %1600
      %1602 = vrot.lane.b32.xlu0 %v1125, 113
      %v1603 = vpop.permute.xlu0 %1602
      %1604 = vrot.lane.b32.xlu0 %v1127, 113
      %v1605 = vpop.permute.xlu0 %1604
      %1606 = vrot.lane.b32.xlu0 %v1129, 113
      %v1607 = vpop.permute.xlu0 %1606
      %1608 = vrot.lane.b32.xlu0 %v1131, 113
      %v1609 = vpop.permute.xlu0 %1608
      %1610 = vrot.lane.b32.xlu0 %v1133, 113
      %v1611 = vpop.permute.xlu0 %1610
      %1612 = vrot.lane.b32.xlu0 %v1135, 113
      %v1613 = vpop.permute.xlu0 %1612
      %1614 = vrot.lane.b32.xlu0 %v1137, 113
      %v1615 = vpop.permute.xlu0 %1614
      %1616 = vrot.lane.b32.xlu0 %v1139, 113
      %v1617 = vpop.permute.xlu0 %1616
      %v1618 = vsel %vm735, %v1587, %v1603
      %v1619 = vsel %vm735, %v1589, %v1605
      %v1620 = vsel %vm735, %v1591, %v1607
      %v1621 = vsel %vm735, %v1593, %v1609
      %v1622 = vsel %vm735, %v1595, %v1611
      %v1623 = vsel %vm735, %v1597, %v1613
      %v1624 = vsel %vm735, %v1599, %v1615
      %v1625 = vsel %vm735, %v1601, %v1617
      %v1626 = vsel %vm735, %v1603, %v1587
      %v1627 = vsel %vm735, %v1605, %v1589
      %v1628 = vsel %vm735, %v1607, %v1591
      %v1629 = vsel %vm735, %v1609, %v1593
      %v1630 = vsel %vm735, %v1611, %v1595
      %v1631 = vsel %vm735, %v1613, %v1597
      %v1632 = vsel %vm735, %v1615, %v1599
      %v1633 = vsel %vm735, %v1617, %v1601
      %v1634 = vld [vmem:[%s738] ss:$8 sm:$0x3]
      %v1636 = vperm.slane %v1634, 0
      %v1637 = vperm.slane %v1634, 1
      %v1640 = vmul.f32 %v1618, %v1636
      %v1641 = vmul.f32 %v1626, %v1637
      %v1642 = vmul.f32 %v1619, %v1636
      %v1643 = vmul.f32 %v1627, %v1637
      %v1644 = vmul.f32 %v1620, %v1636
      %v1645 = vmul.f32 %v1628, %v1637
      %v1646 = vmul.f32 %v1621, %v1636
      %v1647 = vmul.f32 %v1629, %v1637
      %v1648 = vmul.f32 %v1622, %v1636
      %v1649 = vmul.f32 %v1630, %v1637
      %v1650 = vmul.f32 %v1623, %v1636
      %v1651 = vmul.f32 %v1631, %v1637
      %v1652 = vmul.f32 %v1624, %v1636
      %v1653 = vmul.f32 %v1632, %v1637
      %v1654 = vmul.f32 %v1625, %v1636
      %v1655 = vmul.f32 %v1633, %v1637
      %1656 = vst [vmem:[#allocation2 + $0x300] sm:$0xff] %v1640
      %1657 = vst [vmem:[#allocation2 + $0x308] sm:$0xff] %v1641
      %1658 = vst [vmem:[#allocation2 + $0x310] sm:$0xff] %v1642
      %1659 = vst [vmem:[#allocation2 + $0x318] sm:$0xff] %v1643
      %1660 = vst [vmem:[#allocation2 + $0x320] sm:$0xff] %v1644
      %1661 = vst [vmem:[#allocation2 + $0x328] sm:$0xff] %v1645
      %1662 = vst [vmem:[#allocation2 + $0x330] sm:$0xff] %v1646
      %1663 = vst [vmem:[#allocation2 + $0x338] sm:$0xff] %v1647
      %1664 = vst [vmem:[#allocation2 + $0x340] sm:$0xff] %v1648
      %1665 = vst [vmem:[#allocation2 + $0x348] sm:$0xff] %v1649
      %1666 = vst [vmem:[#allocation2 + $0x350] sm:$0xff] %v1650
      %1667 = vst [vmem:[#allocation2 + $0x358] sm:$0xff] %v1651
      %1668 = vst [vmem:[#allocation2 + $0x360] sm:$0xff] %v1652
      %1669 = vst [vmem:[#allocation2 + $0x368] sm:$0xff] %v1653
      %1670 = vst [vmem:[#allocation2 + $0x370] sm:$0xff] %v1654
      %1671 = vst [vmem:[#allocation2 + $0x378] sm:$0xff] %v1655
      %1672 = vrot.lane.b32.xlu0 %v1124, 112
      %v1673 = vpop.permute.xlu0 %1672
      %1674 = vrot.lane.b32.xlu0 %v1126, 112
      %v1675 = vpop.permute.xlu0 %1674
      %1676 = vrot.lane.b32.xlu0 %v1128, 112
      %v1677 = vpop.permute.xlu0 %1676
      %1678 = vrot.lane.b32.xlu0 %v1130, 112
      %v1679 = vpop.permute.xlu0 %1678
      %1680 = vrot.lane.b32.xlu0 %v1132, 112
      %v1681 = vpop.permute.xlu0 %1680
      %1682 = vrot.lane.b32.xlu0 %v1134, 112
      %v1683 = vpop.permute.xlu0 %1682
      %1684 = vrot.lane.b32.xlu0 %v1136, 112
      %v1685 = vpop.permute.xlu0 %1684
      %1686 = vrot.lane.b32.xlu0 %v1138, 112
      %v1687 = vpop.permute.xlu0 %1686
      %1688 = vrot.lane.b32.xlu0 %v1125, 112
      %v1689 = vpop.permute.xlu0 %1688
      %1690 = vrot.lane.b32.xlu0 %v1127, 112
      %v1691 = vpop.permute.xlu0 %1690
      %1692 = vrot.lane.b32.xlu0 %v1129, 112
      %v1693 = vpop.permute.xlu0 %1692
      %1694 = vrot.lane.b32.xlu0 %v1131, 112
      %v1695 = vpop.permute.xlu0 %1694
      %1696 = vrot.lane.b32.xlu0 %v1133, 112
      %v1697 = vpop.permute.xlu0 %1696
      %1698 = vrot.lane.b32.xlu0 %v1135, 112
      %v1699 = vpop.permute.xlu0 %1698
      %1700 = vrot.lane.b32.xlu0 %v1137, 112
      %v1701 = vpop.permute.xlu0 %1700
      %1702 = vrot.lane.b32.xlu0 %v1139, 112
      %v1703 = vpop.permute.xlu0 %1702
      %v1704 = vsel %vm759, %v1673, %v1689
      %v1705 = vsel %vm759, %v1675, %v1691
      %v1706 = vsel %vm759, %v1677, %v1693
      %v1707 = vsel %vm759, %v1679, %v1695
      %v1708 = vsel %vm759, %v1681, %v1697
      %v1709 = vsel %vm759, %v1683, %v1699
      %v1710 = vsel %vm759, %v1685, %v1701
      %v1711 = vsel %vm759, %v1687, %v1703
      %v1712 = vsel %vm759, %v1689, %v1673
      %v1713 = vsel %vm759, %v1691, %v1675
      %v1714 = vsel %vm759, %v1693, %v1677
      %v1715 = vsel %vm759, %v1695, %v1679
      %v1716 = vsel %vm759, %v1697, %v1681
      %v1717 = vsel %vm759, %v1699, %v1683
      %v1718 = vsel %vm759, %v1701, %v1685
      %v1719 = vsel %vm759, %v1703, %v1687
      %v1720 = vld [vmem:[%s762] ss:$8 sm:$0x3]
      %v1722 = vperm.slane %v1720, 0
      %v1723 = vperm.slane %v1720, 1
      %v1726 = vmul.f32 %v1704, %v1722
      %v1727 = vmul.f32 %v1712, %v1723
      %v1728 = vmul.f32 %v1705, %v1722
      %v1729 = vmul.f32 %v1713, %v1723
      %v1730 = vmul.f32 %v1706, %v1722
      %v1731 = vmul.f32 %v1714, %v1723
      %v1732 = vmul.f32 %v1707, %v1722
      %v1733 = vmul.f32 %v1715, %v1723
      %v1734 = vmul.f32 %v1708, %v1722
      %v1735 = vmul.f32 %v1716, %v1723
      %v1736 = vmul.f32 %v1709, %v1722
      %v1737 = vmul.f32 %v1717, %v1723
      %v1738 = vmul.f32 %v1710, %v1722
      %v1739 = vmul.f32 %v1718, %v1723
      %v1740 = vmul.f32 %v1711, %v1722
      %v1741 = vmul.f32 %v1719, %v1723
      %1742 = vst [vmem:[#allocation2 + $0x380] sm:$0xff] %v1726
      %1743 = vst [vmem:[#allocation2 + $0x388] sm:$0xff] %v1727
      %1744 = vst [vmem:[#allocation2 + $0x390] sm:$0xff] %v1728
      %1745 = vst [vmem:[#allocation2 + $0x398] sm:$0xff] %v1729
      %1746 = vst [vmem:[#allocation2 + $0x3a0] sm:$0xff] %v1730
      %1747 = vst [vmem:[#allocation2 + $0x3a8] sm:$0xff] %v1731
      %1748 = vst [vmem:[#allocation2 + $0x3b0] sm:$0xff] %v1732
      %1749 = vst [vmem:[#allocation2 + $0x3b8] sm:$0xff] %v1733
      %1750 = vst [vmem:[#allocation2 + $0x3c0] sm:$0xff] %v1734
      %1751 = vst [vmem:[#allocation2 + $0x3c8] sm:$0xff] %v1735
      %1752 = vst [vmem:[#allocation2 + $0x3d0] sm:$0xff] %v1736
      %1753 = vst [vmem:[#allocation2 + $0x3d8] sm:$0xff] %v1737
      %1754 = vst [vmem:[#allocation2 + $0x3e0] sm:$0xff] %v1738
      %1755 = vst [vmem:[#allocation2 + $0x3e8] sm:$0xff] %v1739
      %1756 = vst [vmem:[#allocation2 + $0x3f0] sm:$0xff] %v1740
      %1757 = vst [vmem:[#allocation2 + $0x3f8] sm:$0xff] %v1741
      %1758 = vrot.lane.b32.xlu0 %v1124, 111
      %v1759 = vpop.permute.xlu0 %1758
      %1760 = vrot.lane.b32.xlu0 %v1126, 111
      %v1761 = vpop.permute.xlu0 %1760
      %1762 = vrot.lane.b32.xlu0 %v1128, 111
      %v1763 = vpop.permute.xlu0 %1762
      %1764 = vrot.lane.b32.xlu0 %v1130, 111
      %v1765 = vpop.permute.xlu0 %1764
      %1766 = vrot.lane.b32.xlu0 %v1132, 111
      %v1767 = vpop.permute.xlu0 %1766
      %1768 = vrot.lane.b32.xlu0 %v1134, 111
      %v1769 = vpop.permute.xlu0 %1768
      %1770 = vrot.lane.b32.xlu0 %v1136, 111
      %v1771 = vpop.permute.xlu0 %1770
      %1772 = vrot.lane.b32.xlu0 %v1138, 111
      %v1773 = vpop.permute.xlu0 %1772
      %1774 = vrot.lane.b32.xlu0 %v1125, 111
      %v1775 = vpop.permute.xlu0 %1774
      %1776 = vrot.lane.b32.xlu0 %v1127, 111
      %v1777 = vpop.permute.xlu0 %1776
      %1778 = vrot.lane.b32.xlu0 %v1129, 111
      %v1779 = vpop.permute.xlu0 %1778
      %1780 = vrot.lane.b32.xlu0 %v1131, 111
      %v1781 = vpop.permute.xlu0 %1780
      %1782 = vrot.lane.b32.xlu0 %v1133, 111
      %v1783 = vpop.permute.xlu0 %1782
      %1784 = vrot.lane.b32.xlu0 %v1135, 111
      %v1785 = vpop.permute.xlu0 %1784
      %1786 = vrot.lane.b32.xlu0 %v1137, 111
      %v1787 = vpop.permute.xlu0 %1786
      %1788 = vrot.lane.b32.xlu0 %v1139, 111
      %v1789 = vpop.permute.xlu0 %1788
      %v1790 = vsel %vm783, %v1759, %v1775
      %v1791 = vsel %vm783, %v1761, %v1777
      %v1792 = vsel %vm783, %v1763, %v1779
      %v1793 = vsel %vm783, %v1765, %v1781
      %v1794 = vsel %vm783, %v1767, %v1783
      %v1795 = vsel %vm783, %v1769, %v1785
      %v1796 = vsel %vm783, %v1771, %v1787
      %v1797 = vsel %vm783, %v1773, %v1789
      %v1798 = vsel %vm783, %v1775, %v1759
      %v1799 = vsel %vm783, %v1777, %v1761
      %v1800 = vsel %vm783, %v1779, %v1763
      %v1801 = vsel %vm783, %v1781, %v1765
      %v1802 = vsel %vm783, %v1783, %v1767
      %v1803 = vsel %vm783, %v1785, %v1769
      %v1804 = vsel %vm783, %v1787, %v1771
      %v1805 = vsel %vm783, %v1789, %v1773
      %v1806 = vld [vmem:[%s786] ss:$8 sm:$0x3]
      %v1808 = vperm.slane %v1806, 0
      %v1809 = vperm.slane %v1806, 1
      %v1812 = vmul.f32 %v1790, %v1808
      %v1813 = vmul.f32 %v1798, %v1809
      %v1814 = vmul.f32 %v1791, %v1808
      %v1815 = vmul.f32 %v1799, %v1809
      %v1816 = vmul.f32 %v1792, %v1808
      %v1817 = vmul.f32 %v1800, %v1809
      %v1818 = vmul.f32 %v1793, %v1808
      %v1819 = vmul.f32 %v1801, %v1809
      %v1820 = vmul.f32 %v1794, %v1808
      %v1821 = vmul.f32 %v1802, %v1809
      %v1822 = vmul.f32 %v1795, %v1808
      %v1823 = vmul.f32 %v1803, %v1809
      %v1824 = vmul.f32 %v1796, %v1808
      %v1825 = vmul.f32 %v1804, %v1809
      %v1826 = vmul.f32 %v1797, %v1808
      %v1827 = vmul.f32 %v1805, %v1809
      %1828 = vst [vmem:[#allocation2 + $0x400] sm:$0xff] %v1812
      %1829 = vst [vmem:[#allocation2 + $0x408] sm:$0xff] %v1813
      %1830 = vst [vmem:[#allocation2 + $0x410] sm:$0xff] %v1814
      %1831 = vst [vmem:[#allocation2 + $0x418] sm:$0xff] %v1815
      %1832 = vst [vmem:[#allocation2 + $0x420] sm:$0xff] %v1816
      %1833 = vst [vmem:[#allocation2 + $0x428] sm:$0xff] %v1817
      %1834 = vst [vmem:[#allocation2 + $0x430] sm:$0xff] %v1818
      %1835 = vst [vmem:[#allocation2 + $0x438] sm:$0xff] %v1819
      %1836 = vst [vmem:[#allocation2 + $0x440] sm:$0xff] %v1820
      %1837 = vst [vmem:[#allocation2 + $0x448] sm:$0xff] %v1821
      %1838 = vst [vmem:[#allocation2 + $0x450] sm:$0xff] %v1822
      %1839 = vst [vmem:[#allocation2 + $0x458] sm:$0xff] %v1823
      %1840 = vst [vmem:[#allocation2 + $0x460] sm:$0xff] %v1824
      %1841 = vst [vmem:[#allocation2 + $0x468] sm:$0xff] %v1825
      %1842 = vst [vmem:[#allocation2 + $0x470] sm:$0xff] %v1826
      %1843 = vst [vmem:[#allocation2 + $0x478] sm:$0xff] %v1827
      %v1844 = vld [vmem:[%s4] sm:$0xff]
      %v1845 = vld [vmem:[%s4 + $0x8] sm:$0xff]
      %v1846 = vld [vmem:[%s4 + $0x10] sm:$0xff]
      %v1847 = vld [vmem:[%s4 + $0x18] sm:$0xff]
      %v1848 = vld [vmem:[%s4 + $0x20] sm:$0xff]
      %v1849 = vld [vmem:[%s4 + $0x28] sm:$0xff]
      %v1850 = vld [vmem:[%s4 + $0x30] sm:$0xff]
      %v1851 = vld [vmem:[%s4 + $0x38] sm:$0xff]
      %v1852 = vld [vmem:[%s4 + $0x40] sm:$0xff]
      %v1853 = vld [vmem:[%s4 + $0x48] sm:$0xff]
      %v1854 = vld [vmem:[%s4 + $0x50] sm:$0xff]
      %v1855 = vld [vmem:[%s4 + $0x58] sm:$0xff]
      %v1856 = vld [vmem:[%s4 + $0x60] sm:$0xff]
      %v1857 = vld [vmem:[%s4 + $0x68] sm:$0xff]
      %v1858 = vld [vmem:[%s4 + $0x70] sm:$0xff]
      %v1859 = vld [vmem:[%s4 + $0x78] sm:$0xff]
      %v1860 = vld [vmem:[%s4 + $0x80] sm:$0xff]
      %v1861 = vld [vmem:[%s4 + $0x88] sm:$0xff]
      %v1862 = vld [vmem:[%s4 + $0x90] sm:$0xff]
      %v1863 = vld [vmem:[%s4 + $0x98] sm:$0xff]
      %v1864 = vld [vmem:[%s4 + $0xa0] sm:$0xff]
      %v1865 = vld [vmem:[%s4 + $0xa8] sm:$0xff]
      %v1866 = vld [vmem:[%s4 + $0xb0] sm:$0xff]
      %v1867 = vld [vmem:[%s4 + $0xb8] sm:$0xff]
      %v1868 = vld [vmem:[%s4 + $0xc0] sm:$0xff]
      %v1869 = vld [vmem:[%s4 + $0xc8] sm:$0xff]
      %v1870 = vld [vmem:[%s4 + $0xd0] sm:$0xff]
      %v1871 = vld [vmem:[%s4 + $0xd8] sm:$0xff]
      %v1872 = vld [vmem:[%s4 + $0xe0] sm:$0xff]
      %v1873 = vld [vmem:[%s4 + $0xe8] sm:$0xff]
      %v1874 = vld [vmem:[%s4 + $0xf0] sm:$0xff]
      %v1875 = vld [vmem:[%s4 + $0xf8] sm:$0xff]
      %v1876 = vld [vmem:[%s4 + $0x100] sm:$0xff]
      %v1877 = vld [vmem:[%s4 + $0x108] sm:$0xff]
      %v1878 = vld [vmem:[%s4 + $0x110] sm:$0xff]
      %v1879 = vld [vmem:[%s4 + $0x118] sm:$0xff]
      %v1880 = vld [vmem:[%s4 + $0x120] sm:$0xff]
      %v1881 = vld [vmem:[%s4 + $0x128] sm:$0xff]
      %v1882 = vld [vmem:[%s4 + $0x130] sm:$0xff]
      %v1883 = vld [vmem:[%s4 + $0x138] sm:$0xff]
      %v1884 = vld [vmem:[#allocation2] sm:$0xff]
      %v1885 = vld [vmem:[#allocation2 + $0x8] sm:$0xff]
      %v1886 = vld [vmem:[#allocation2 + $0x10] sm:$0xff]
      %v1887 = vld [vmem:[#allocation2 + $0x18] sm:$0xff]
      %v1888 = vld [vmem:[#allocation2 + $0x20] sm:$0xff]
      %v1889 = vld [vmem:[#allocation2 + $0x28] sm:$0xff]
      %v1890 = vld [vmem:[#allocation2 + $0x30] sm:$0xff]
      %v1891 = vld [vmem:[#allocation2 + $0x38] sm:$0xff]
      %v1892 = vld [vmem:[#allocation2 + $0x40] sm:$0xff]
      %v1893 = vld [vmem:[#allocation2 + $0x48] sm:$0xff]
      %v1894 = vld [vmem:[#allocation2 + $0x50] sm:$0xff]
      %v1895 = vld [vmem:[#allocation2 + $0x58] sm:$0xff]
      %v1896 = vld [vmem:[#allocation2 + $0x60] sm:$0xff]
      %v1897 = vld [vmem:[#allocation2 + $0x68] sm:$0xff]
      %v1898 = vld [vmem:[#allocation2 + $0x70] sm:$0xff]
      %v1899 = vld [vmem:[#allocation2 + $0x78] sm:$0xff]
      %v1900 = vld [vmem:[#allocation2 + $0x80] sm:$0xff]
      %v1901 = vld [vmem:[#allocation2 + $0x88] sm:$0xff]
      %v1902 = vld [vmem:[#allocation2 + $0x90] sm:$0xff]
      %v1903 = vld [vmem:[#allocation2 + $0x98] sm:$0xff]
      %v1904 = vld [vmem:[#allocation2 + $0xa0] sm:$0xff]
      %v1905 = vld [vmem:[#allocation2 + $0xa8] sm:$0xff]
      %v1906 = vld [vmem:[#allocation2 + $0xb0] sm:$0xff]
      %v1907 = vld [vmem:[#allocation2 + $0xb8] sm:$0xff]
      %v1908 = vld [vmem:[#allocation2 + $0xc0] sm:$0xff]
      %v1909 = vld [vmem:[#allocation2 + $0xc8] sm:$0xff]
      %v1910 = vld [vmem:[#allocation2 + $0xd0] sm:$0xff]
      %v1911 = vld [vmem:[#allocation2 + $0xd8] sm:$0xff]
      %v1912 = vld [vmem:[#allocation2 + $0xe0] sm:$0xff]
      %v1913 = vld [vmem:[#allocation2 + $0xe8] sm:$0xff]
      %v1914 = vld [vmem:[#allocation2 + $0xf0] sm:$0xff]
      %v1915 = vld [vmem:[#allocation2 + $0xf8] sm:$0xff]
      %v1916 = vld [vmem:[#allocation2 + $0x100] sm:$0xff]
      %v1917 = vld [vmem:[#allocation2 + $0x108] sm:$0xff]
      %v1918 = vld [vmem:[#allocation2 + $0x110] sm:$0xff]
      %v1919 = vld [vmem:[#allocation2 + $0x118] sm:$0xff]
      %v1920 = vld [vmem:[#allocation2 + $0x120] sm:$0xff]
      %v1921 = vld [vmem:[#allocation2 + $0x128] sm:$0xff]
      %v1922 = vld [vmem:[#allocation2 + $0x130] sm:$0xff]
      %v1923 = vld [vmem:[#allocation2 + $0x138] sm:$0xff]
      %v1924 = vld [vmem:[#allocation2 + $0x140] sm:$0xff]
      %v1925 = vld [vmem:[#allocation2 + $0x148] sm:$0xff]
      %v1926 = vld [vmem:[#allocation2 + $0x150] sm:$0xff]
      %v1927 = vld [vmem:[#allocation2 + $0x158] sm:$0xff]
      %v1928 = vld [vmem:[#allocation2 + $0x160] sm:$0xff]
      %v1929 = vld [vmem:[#allocation2 + $0x168] sm:$0xff]
      %v1930 = vld [vmem:[#allocation2 + $0x170] sm:$0xff]
      %v1931 = vld [vmem:[#allocation2 + $0x178] sm:$0xff]
      %v1932 = vld [vmem:[#allocation2 + $0x180] sm:$0xff]
      %v1933 = vld [vmem:[#allocation2 + $0x188] sm:$0xff]
      %v1934 = vld [vmem:[#allocation2 + $0x190] sm:$0xff]
      %v1935 = vld [vmem:[#allocation2 + $0x198] sm:$0xff]
      %v1936 = vld [vmem:[#allocation2 + $0x1a0] sm:$0xff]
      %v1937 = vld [vmem:[#allocation2 + $0x1a8] sm:$0xff]
      %v1938 = vld [vmem:[#allocation2 + $0x1b0] sm:$0xff]
      %v1939 = vld [vmem:[#allocation2 + $0x1b8] sm:$0xff]
      %v1940 = vld [vmem:[#allocation2 + $0x1c0] sm:$0xff]
      %v1941 = vld [vmem:[#allocation2 + $0x1c8] sm:$0xff]
      %v1942 = vld [vmem:[#allocation2 + $0x1d0] sm:$0xff]
      %v1943 = vld [vmem:[#allocation2 + $0x1d8] sm:$0xff]
      %v1944 = vld [vmem:[#allocation2 + $0x1e0] sm:$0xff]
      %v1945 = vld [vmem:[#allocation2 + $0x1e8] sm:$0xff]
      %v1946 = vld [vmem:[#allocation2 + $0x1f0] sm:$0xff]
      %v1947 = vld [vmem:[#allocation2 + $0x1f8] sm:$0xff]
      %v1948 = vld [vmem:[#allocation2 + $0x200] sm:$0xff]
      %v1949 = vld [vmem:[#allocation2 + $0x208] sm:$0xff]
      %v1950 = vld [vmem:[#allocation2 + $0x210] sm:$0xff]
      %v1951 = vld [vmem:[#allocation2 + $0x218] sm:$0xff]
      %v1952 = vld [vmem:[#allocation2 + $0x220] sm:$0xff]
      %v1953 = vld [vmem:[#allocation2 + $0x228] sm:$0xff]
      %v1954 = vld [vmem:[#allocation2 + $0x230] sm:$0xff]
      %v1955 = vld [vmem:[#allocation2 + $0x238] sm:$0xff]
      %v1956 = vld [vmem:[#allocation2 + $0x240] sm:$0xff]
      %v1957 = vld [vmem:[#allocation2 + $0x248] sm:$0xff]
      %v1958 = vld [vmem:[#allocation2 + $0x250] sm:$0xff]
      %v1959 = vld [vmem:[#allocation2 + $0x258] sm:$0xff]
      %v1960 = vld [vmem:[#allocation2 + $0x260] sm:$0xff]
      %v1961 = vld [vmem:[#allocation2 + $0x268] sm:$0xff]
      %v1962 = vld [vmem:[#allocation2 + $0x270] sm:$0xff]
      %v1963 = vld [vmem:[#allocation2 + $0x278] sm:$0xff]
      %v1964 = vld [vmem:[#allocation2 + $0x280] sm:$0xff]
      %v1965 = vld [vmem:[#allocation2 + $0x288] sm:$0xff]
      %v1966 = vld [vmem:[#allocation2 + $0x290] sm:$0xff]
      %v1967 = vld [vmem:[#allocation2 + $0x298] sm:$0xff]
      %v1968 = vld [vmem:[#allocation2 + $0x2a0] sm:$0xff]
      %v1969 = vld [vmem:[#allocation2 + $0x2a8] sm:$0xff]
      %v1970 = vld [vmem:[#allocation2 + $0x2b0] sm:$0xff]
      %v1971 = vld [vmem:[#allocation2 + $0x2b8] sm:$0xff]
      %v1972 = vld [vmem:[#allocation2 + $0x2c0] sm:$0xff]
      %v1973 = vld [vmem:[#allocation2 + $0x2c8] sm:$0xff]
      %v1974 = vld [vmem:[#allocation2 + $0x2d0] sm:$0xff]
      %v1975 = vld [vmem:[#allocation2 + $0x2d8] sm:$0xff]
      %v1976 = vld [vmem:[#allocation2 + $0x2e0] sm:$0xff]
      %v1977 = vld [vmem:[#allocation2 + $0x2e8] sm:$0xff]
      %v1978 = vld [vmem:[#allocation2 + $0x2f0] sm:$0xff]
      %v1979 = vld [vmem:[#allocation2 + $0x2f8] sm:$0xff]
      %v1980 = vld [vmem:[#allocation2 + $0x300] sm:$0xff]
      %v1981 = vld [vmem:[#allocation2 + $0x308] sm:$0xff]
      %v1982 = vld [vmem:[#allocation2 + $0x310] sm:$0xff]
      %v1983 = vld [vmem:[#allocation2 + $0x318] sm:$0xff]
      %v1984 = vld [vmem:[#allocation2 + $0x320] sm:$0xff]
      %v1985 = vld [vmem:[#allocation2 + $0x328] sm:$0xff]
      %v1986 = vld [vmem:[#allocation2 + $0x330] sm:$0xff]
      %v1987 = vld [vmem:[#allocation2 + $0x338] sm:$0xff]
      %v1988 = vld [vmem:[#allocation2 + $0x340] sm:$0xff]
      %v1989 = vld [vmem:[#allocation2 + $0x348] sm:$0xff]
      %v1990 = vld [vmem:[#allocation2 + $0x350] sm:$0xff]
      %v1991 = vld [vmem:[#allocation2 + $0x358] sm:$0xff]
      %v1992 = vld [vmem:[#allocation2 + $0x360] sm:$0xff]
      %v1993 = vld [vmem:[#allocation2 + $0x368] sm:$0xff]
      %v1994 = vld [vmem:[#allocation2 + $0x370] sm:$0xff]
      %v1995 = vld [vmem:[#allocation2 + $0x378] sm:$0xff]
      %v1996 = vld [vmem:[#allocation2 + $0x380] sm:$0xff]
      %v1997 = vld [vmem:[#allocation2 + $0x388] sm:$0xff]
      %v1998 = vld [vmem:[#allocation2 + $0x390] sm:$0xff]
      %v1999 = vld [vmem:[#allocation2 + $0x398] sm:$0xff]
      %v2000 = vld [vmem:[#allocation2 + $0x3a0] sm:$0xff]
      %v2001 = vld [vmem:[#allocation2 + $0x3a8] sm:$0xff]
      %v2002 = vld [vmem:[#allocation2 + $0x3b0] sm:$0xff]
      %v2003 = vld [vmem:[#allocation2 + $0x3b8] sm:$0xff]
      %v2004 = vld [vmem:[#allocation2 + $0x3c0] sm:$0xff]
      %v2005 = vld [vmem:[#allocation2 + $0x3c8] sm:$0xff]
      %v2006 = vld [vmem:[#allocation2 + $0x3d0] sm:$0xff]
      %v2007 = vld [vmem:[#allocation2 + $0x3d8] sm:$0xff]
      %v2008 = vld [vmem:[#allocation2 + $0x3e0] sm:$0xff]
      %v2009 = vld [vmem:[#allocation2 + $0x3e8] sm:$0xff]
      %v2010 = vld [vmem:[#allocation2 + $0x3f0] sm:$0xff]
      %v2011 = vld [vmem:[#allocation2 + $0x3f8] sm:$0xff]
      %v2012 = vld [vmem:[#allocation2 + $0x400] sm:$0xff]
      %v2013 = vld [vmem:[#allocation2 + $0x408] sm:$0xff]
      %v2014 = vld [vmem:[#allocation2 + $0x410] sm:$0xff]
      %v2015 = vld [vmem:[#allocation2 + $0x418] sm:$0xff]
      %v2016 = vld [vmem:[#allocation2 + $0x420] sm:$0xff]
      %v2017 = vld [vmem:[#allocation2 + $0x428] sm:$0xff]
      %v2018 = vld [vmem:[#allocation2 + $0x430] sm:$0xff]
      %v2019 = vld [vmem:[#allocation2 + $0x438] sm:$0xff]
      %v2020 = vld [vmem:[#allocation2 + $0x440] sm:$0xff]
      %v2021 = vld [vmem:[#allocation2 + $0x448] sm:$0xff]
      %v2022 = vld [vmem:[#allocation2 + $0x450] sm:$0xff]
      %v2023 = vld [vmem:[#allocation2 + $0x458] sm:$0xff]
      %v2024 = vld [vmem:[#allocation2 + $0x460] sm:$0xff]
      %v2025 = vld [vmem:[#allocation2 + $0x468] sm:$0xff]
      %v2026 = vld [vmem:[#allocation2 + $0x470] sm:$0xff]
      %v2027 = vld [vmem:[#allocation2 + $0x478] sm:$0xff]
      %v2028 = vld [vmem:[%s5] sm:$0xff]
      %v2029 = vld [vmem:[%s5 + $0x8] sm:$0xff]
      %v2030 = vld [vmem:[%s5 + $0x10] sm:$0xff]
      %v2031 = vld [vmem:[%s5 + $0x18] sm:$0xff]
      %v2032 = vld [vmem:[%s5 + $0x20] sm:$0xff]
      %v2033 = vld [vmem:[%s5 + $0x28] sm:$0xff]
      %v2034 = vld [vmem:[%s5 + $0x30] sm:$0xff]
      %v2035 = vld [vmem:[%s5 + $0x38] sm:$0xff]
      %2037 = vset.pattern.permute.xlu0 0
      %2038 = vperm.xlu0 %2037, %v2028
      %v2039 = vpop.permute.xlu0 %2038
      %2042 = vset.pattern.permute.xlu0 0
      %2043 = vperm.xlu0 %2042, %v2029
      %v2044 = vpop.permute.xlu0 %2043
      %2047 = vset.pattern.permute.xlu0 0
      %2048 = vperm.xlu0 %2047, %v2030
      %v2049 = vpop.permute.xlu0 %2048
      %2052 = vset.pattern.permute.xlu0 0
      %2053 = vperm.xlu0 %2052, %v2031
      %v2054 = vpop.permute.xlu0 %2053
      %2057 = vset.pattern.permute.xlu0 0
      %2058 = vperm.xlu0 %2057, %v2032
      %v2059 = vpop.permute.xlu0 %2058
      %2062 = vset.pattern.permute.xlu0 0
      %2063 = vperm.xlu0 %2062, %v2033
      %v2064 = vpop.permute.xlu0 %2063
      %2067 = vset.pattern.permute.xlu0 0
      %2068 = vperm.xlu0 %2067, %v2034
      %v2069 = vpop.permute.xlu0 %2068
      %2072 = vset.pattern.permute.xlu0 0
      %2073 = vperm.xlu0 %2072, %v2035
      %v2074 = vpop.permute.xlu0 %2073
      %vm2076 = vcmask 523264
      %v2078 = vsel %vm2076, %v1848, 0
      %v2081 = vsel %vm2076, %v1853, 0
      %v2084 = vsel %vm2076, %v1858, 0
      %v2087 = vsel %vm2076, %v1863, 0
      %v2090 = vsel %vm2076, %v1868, 0
      %v2093 = vsel %vm2076, %v1873, 0
      %v2096 = vsel %vm2076, %v1878, 0
      %v2099 = vsel %vm2076, %v1883, 0
      %2101 = vmatpush.msra.mxu0 %v1914
      %2102 = vmatpush.msra.mxu0 %v1912
      %2103 = vmatpush.msra.mxu0 %v1910
      %2104 = vmatpush.msra.mxu0 %v1908
      %2105 = vmatpush.msra.mxu0 %v1906
      %2106 = vmatpush.msra.mxu0 %v1904
      %2107 = vmatpush.msra.mxu0 %v1902
      %2108 = vmatpush.msra.mxu0 %v1900
      %2109 = vmatpush.msra.mxu0 %v1898
      %2110 = vmatpush.msra.mxu0 %v1896
      %2111 = vmatpush.msra.mxu0 %v1894
      %2112 = vmatpush.msra.mxu0 %v1892
      %2113 = vmatpush.msra.mxu0 %v1890
      %2114 = vmatpush.msra.mxu0 %v1888
      %2115 = vmatpush.msra.mxu0 %v1886
      %2116 = vmatpush.msra.mxu0 %v1884
      %2117 = vmatmul.f32.gmra.mxu0 %v1844
      %v2118 = vpop.f32.mrf.mxu0
      %v2119 = vadd.f32 %v2039, %v2118
      %2120 = vmatmul.f32.gmra.mxu0 %v1849
      %v2121 = vpop.f32.mrf.mxu0
      %v2122 = vadd.f32 %v2044, %v2121
      %2123 = vmatmul.f32.gmra.mxu0 %v1854
      %v2124 = vpop.f32.mrf.mxu0
      %v2125 = vadd.f32 %v2049, %v2124
      %2126 = vmatmul.f32.gmra.mxu0 %v1859
      %v2127 = vpop.f32.mrf.mxu0
      %v2128 = vadd.f32 %v2054, %v2127
      %2129 = vmatmul.f32.gmra.mxu0 %v1864
      %v2130 = vpop.f32.mrf.mxu0
      %v2131 = vadd.f32 %v2059, %v2130
      %2132 = vmatmul.f32.gmra.mxu0 %v1869
      %v2133 = vpop.f32.mrf.mxu0
      %v2134 = vadd.f32 %v2064, %v2133
      %2135 = vmatmul.f32.gmra.mxu0 %v1874
      %v2136 = vpop.f32.mrf.mxu0
      %v2137 = vadd.f32 %v2069, %v2136
      %2138 = vmatmul.f32.gmra.mxu0 %v1879
      %v2139 = vpop.f32.mrf.mxu0
      %v2140 = vadd.f32 %v2074, %v2139
      %2141 = vdwg.mxu0
      %2142 = vmatpush.msra.mxu0 %v1946
      %2143 = vmatpush.msra.mxu0 %v1944
      %2144 = vmatpush.msra.mxu0 %v1942
      %2145 = vmatpush.msra.mxu0 %v1940
      %2146 = vmatpush.msra.mxu0 %v1938
      %2147 = vmatpush.msra.mxu0 %v1936
      %2148 = vmatpush.msra.mxu0 %v1934
      %2149 = vmatpush.msra.mxu0 %v1932
      %2150 = vmatpush.msra.mxu0 %v1930
      %2151 = vmatpush.msra.mxu0 %v1928
      %2152 = vmatpush.msra.mxu0 %v1926
      %2153 = vmatpush.msra.mxu0 %v1924
      %2154 = vmatpush.msra.mxu0 %v1922
      %2155 = vmatpush.msra.mxu0 %v1920
      %2156 = vmatpush.msra.mxu0 %v1918
      %2157 = vmatpush.msra.mxu0 %v1916
      %2158 = vmatmul.f32.gmra.mxu0 %v1845
      %v2159 = vpop.f32.mrf.mxu0
      %v2160 = vadd.f32 %v2119, %v2159
      %2161 = vmatmul.f32.gmra.mxu0 %v1850
      %v2162 = vpop.f32.mrf.mxu0
      %v2163 = vadd.f32 %v2122, %v2162
      %2164 = vmatmul.f32.gmra.mxu0 %v1855
      %v2165 = vpop.f32.mrf.mxu0
      %v2166 = vadd.f32 %v2125, %v2165
      %2167 = vmatmul.f32.gmra.mxu0 %v1860
      %v2168 = vpop.f32.mrf.mxu0
      %v2169 = vadd.f32 %v2128, %v2168
      %2170 = vmatmul.f32.gmra.mxu0 %v1865
      %v2171 = vpop.f32.mrf.mxu0
      %v2172 = vadd.f32 %v2131, %v2171
      %2173 = vmatmul.f32.gmra.mxu0 %v1870
      %v2174 = vpop.f32.mrf.mxu0
      %v2175 = vadd.f32 %v2134, %v2174
      %2176 = vmatmul.f32.gmra.mxu0 %v1875
      %v2177 = vpop.f32.mrf.mxu0
      %v2178 = vadd.f32 %v2137, %v2177
      %2179 = vmatmul.f32.gmra.mxu0 %v1880
      %v2180 = vpop.f32.mrf.mxu0
      %v2181 = vadd.f32 %v2140, %v2180
      %2182 = vdwg.mxu0
      %2183 = vmatpush.msra.mxu0 %v1978
      %2184 = vmatpush.msra.mxu0 %v1976
      %2185 = vmatpush.msra.mxu0 %v1974
      %2186 = vmatpush.msra.mxu0 %v1972
      %2187 = vmatpush.msra.mxu0 %v1970
      %2188 = vmatpush.msra.mxu0 %v1968
      %2189 = vmatpush.msra.mxu0 %v1966
      %2190 = vmatpush.msra.mxu0 %v1964
      %2191 = vmatpush.msra.mxu0 %v1962
      %2192 = vmatpush.msra.mxu0 %v1960
      %2193 = vmatpush.msra.mxu0 %v1958
      %2194 = vmatpush.msra.mxu0 %v1956
      %2195 = vmatpush.msra.mxu0 %v1954
      %2196 = vmatpush.msra.mxu0 %v1952
      %2197 = vmatpush.msra.mxu0 %v1950
      %2198 = vmatpush.msra.mxu0 %v1948
      %2199 = vmatmul.f32.gmra.mxu0 %v1846
      %v2200 = vpop.f32.mrf.mxu0
      %v2201 = vadd.f32 %v2160, %v2200
      %2202 = vmatmul.f32.gmra.mxu0 %v1851
      %v2203 = vpop.f32.mrf.mxu0
      %v2204 = vadd.f32 %v2163, %v2203
      %2205 = vmatmul.f32.gmra.mxu0 %v1856
      %v2206 = vpop.f32.mrf.mxu0
      %v2207 = vadd.f32 %v2166, %v2206
      %2208 = vmatmul.f32.gmra.mxu0 %v1861
      %v2209 = vpop.f32.mrf.mxu0
      %v2210 = vadd.f32 %v2169, %v2209
      %2211 = vmatmul.f32.gmra.mxu0 %v1866
      %v2212 = vpop.f32.mrf.mxu0
      %v2213 = vadd.f32 %v2172, %v2212
      %2214 = vmatmul.f32.gmra.mxu0 %v1871
      %v2215 = vpop.f32.mrf.mxu0
      %v2216 = vadd.f32 %v2175, %v2215
      %2217 = vmatmul.f32.gmra.mxu0 %v1876
      %v2218 = vpop.f32.mrf.mxu0
      %v2219 = vadd.f32 %v2178, %v2218
      %2220 = vmatmul.f32.gmra.mxu0 %v1881
      %v2221 = vpop.f32.mrf.mxu0
      %v2222 = vadd.f32 %v2181, %v2221
      %2223 = vdwg.mxu0
      %2224 = vmatpush.msra.mxu0 %v2010
      %2225 = vmatpush.msra.mxu0 %v2008
      %2226 = vmatpush.msra.mxu0 %v2006
      %2227 = vmatpush.msra.mxu0 %v2004
      %2228 = vmatpush.msra.mxu0 %v2002
      %2229 = vmatpush.msra.mxu0 %v2000
      %2230 = vmatpush.msra.mxu0 %v1998
      %2231 = vmatpush.msra.mxu0 %v1996
      %2232 = vmatpush.msra.mxu0 %v1994
      %2233 = vmatpush.msra.mxu0 %v1992
      %2234 = vmatpush.msra.mxu0 %v1990
      %2235 = vmatpush.msra.mxu0 %v1988
      %2236 = vmatpush.msra.mxu0 %v1986
      %2237 = vmatpush.msra.mxu0 %v1984
      %2238 = vmatpush.msra.mxu0 %v1982
      %2239 = vmatpush.msra.mxu0 %v1980
      %2240 = vmatmul.f32.gmra.mxu0 %v1847
      %v2241 = vpop.f32.mrf.mxu0
      %v2242 = vadd.f32 %v2201, %v2241
      %2243 = vmatmul.f32.gmra.mxu0 %v1852
      %v2244 = vpop.f32.mrf.mxu0
      %v2245 = vadd.f32 %v2204, %v2244
      %2246 = vmatmul.f32.gmra.mxu0 %v1857
      %v2247 = vpop.f32.mrf.mxu0
      %v2248 = vadd.f32 %v2207, %v2247
      %2249 = vmatmul.f32.gmra.mxu0 %v1862
      %v2250 = vpop.f32.mrf.mxu0
      %v2251 = vadd.f32 %v2210, %v2250
      %2252 = vmatmul.f32.gmra.mxu0 %v1867
      %v2253 = vpop.f32.mrf.mxu0
      %v2254 = vadd.f32 %v2213, %v2253
      %2255 = vmatmul.f32.gmra.mxu0 %v1872
      %v2256 = vpop.f32.mrf.mxu0
      %v2257 = vadd.f32 %v2216, %v2256
      %2258 = vmatmul.f32.gmra.mxu0 %v1877
      %v2259 = vpop.f32.mrf.mxu0
      %v2260 = vadd.f32 %v2219, %v2259
      %2261 = vmatmul.f32.gmra.mxu0 %v1882
      %v2262 = vpop.f32.mrf.mxu0
      %v2263 = vadd.f32 %v2222, %v2262
      %2264 = vdwg.mxu0
      %2265 = vmatpush.msra.mxu0 0.0
      %2266 = vmatpush.msra.mxu0 0.0
      %2267 = vmatpush.msra.mxu0 0.0
      %2268 = vmatpush.msra.mxu0 0.0
      %2269 = vmatpush.msra.mxu0 0.0
      %2270 = vmatpush.msra.mxu0 0.0
      %2271 = vmatpush.msra.mxu0 0.0
      %2272 = vmatpush.msra.mxu0 0.0
      %2273 = vmatpush.msra.mxu0 %v2026
      %2274 = vmatpush.msra.mxu0 %v2024
      %2275 = vmatpush.msra.mxu0 %v2022
      %2276 = vmatpush.msra.mxu0 %v2020
      %2277 = vmatpush.msra.mxu0 %v2018
      %2278 = vmatpush.msra.mxu0 %v2016
      %2279 = vmatpush.msra.mxu0 %v2014
      %2280 = vmatpush.msra.mxu0 %v2012
      %2281 = vmatmul.f32.gmra.mxu0 %v2078
      %v2282 = vpop.f32.mrf.mxu0
      %v2283 = vadd.f32 %v2242, %v2282
      %2284 = vmatmul.f32.gmra.mxu0 %v2081
      %v2285 = vpop.f32.mrf.mxu0
      %v2286 = vadd.f32 %v2245, %v2285
      %2287 = vmatmul.f32.gmra.mxu0 %v2084
      %v2288 = vpop.f32.mrf.mxu0
      %v2289 = vadd.f32 %v2248, %v2288
      %2290 = vmatmul.f32.gmra.mxu0 %v2087
      %v2291 = vpop.f32.mrf.mxu0
      %v2292 = vadd.f32 %v2251, %v2291
      %2293 = vmatmul.f32.gmra.mxu0 %v2090
      %v2294 = vpop.f32.mrf.mxu0
      %v2295 = vadd.f32 %v2254, %v2294
      %2296 = vmatmul.f32.gmra.mxu0 %v2093
      %v2297 = vpop.f32.mrf.mxu0
      %v2298 = vadd.f32 %v2257, %v2297
      %2299 = vmatmul.f32.gmra.mxu0 %v2096
      %v2300 = vpop.f32.mrf.mxu0
      %v2301 = vadd.f32 %v2260, %v2300
      %2302 = vmatmul.f32.gmra.mxu0 %v2099
      %v2303 = vpop.f32.mrf.mxu0
      %v2304 = vadd.f32 %v2263, %v2303
      %2305 = vdwg.mxu0
      %2306 = vmatpush.msra.mxu0 %v1915
      %2307 = vmatpush.msra.mxu0 %v1913
      %2308 = vmatpush.msra.mxu0 %v1911
      %2309 = vmatpush.msra.mxu0 %v1909
      %2310 = vmatpush.msra.mxu0 %v1907
      %2311 = vmatpush.msra.mxu0 %v1905
      %2312 = vmatpush.msra.mxu0 %v1903
      %2313 = vmatpush.msra.mxu0 %v1901
      %2314 = vmatpush.msra.mxu0 %v1899
      %2315 = vmatpush.msra.mxu0 %v1897
      %2316 = vmatpush.msra.mxu0 %v1895
      %2317 = vmatpush.msra.mxu0 %v1893
      %2318 = vmatpush.msra.mxu0 %v1891
      %2319 = vmatpush.msra.mxu0 %v1889
      %2320 = vmatpush.msra.mxu0 %v1887
      %2321 = vmatpush.msra.mxu0 %v1885
      %2322 = vmatmul.f32.gmra.mxu0 %v1844
      %v2323 = vpop.f32.mrf.mxu0
      %v2324 = vadd.f32 %v2039, %v2323
      %2325 = vmatmul.f32.gmra.mxu0 %v1849
      %v2326 = vpop.f32.mrf.mxu0
      %v2327 = vadd.f32 %v2044, %v2326
      %2328 = vmatmul.f32.gmra.mxu0 %v1854
      %v2329 = vpop.f32.mrf.mxu0
      %v2330 = vadd.f32 %v2049, %v2329
      %2331 = vmatmul.f32.gmra.mxu0 %v1859
      %v2332 = vpop.f32.mrf.mxu0
      %v2333 = vadd.f32 %v2054, %v2332
      %2334 = vmatmul.f32.gmra.mxu0 %v1864
      %v2335 = vpop.f32.mrf.mxu0
      %v2336 = vadd.f32 %v2059, %v2335
      %2337 = vmatmul.f32.gmra.mxu0 %v1869
      %v2338 = vpop.f32.mrf.mxu0
      %v2339 = vadd.f32 %v2064, %v2338
      %2340 = vmatmul.f32.gmra.mxu0 %v1874
      %v2341 = vpop.f32.mrf.mxu0
      %v2342 = vadd.f32 %v2069, %v2341
      %2343 = vmatmul.f32.gmra.mxu0 %v1879
      %v2344 = vpop.f32.mrf.mxu0
      %v2345 = vadd.f32 %v2074, %v2344
      %2346 = vdwg.mxu0
      %2347 = vmatpush.msra.mxu0 %v1947
      %2348 = vmatpush.msra.mxu0 %v1945
      %2349 = vmatpush.msra.mxu0 %v1943
      %2350 = vmatpush.msra.mxu0 %v1941
      %2351 = vmatpush.msra.mxu0 %v1939
      %2352 = vmatpush.msra.mxu0 %v1937
      %2353 = vmatpush.msra.mxu0 %v1935
      %2354 = vmatpush.msra.mxu0 %v1933
      %2355 = vmatpush.msra.mxu0 %v1931
      %2356 = vmatpush.msra.mxu0 %v1929
      %2357 = vmatpush.msra.mxu0 %v1927
      %2358 = vmatpush.msra.mxu0 %v1925
      %2359 = vmatpush.msra.mxu0 %v1923
      %2360 = vmatpush.msra.mxu0 %v1921
      %2361 = vmatpush.msra.mxu0 %v1919
      %2362 = vmatpush.msra.mxu0 %v1917
      %2363 = vmatmul.f32.gmra.mxu0 %v1845
      %v2364 = vpop.f32.mrf.mxu0
      %v2365 = vadd.f32 %v2324, %v2364
      %2366 = vmatmul.f32.gmra.mxu0 %v1850
      %v2367 = vpop.f32.mrf.mxu0
      %v2368 = vadd.f32 %v2327, %v2367
      %2369 = vmatmul.f32.gmra.mxu0 %v1855
      %v2370 = vpop.f32.mrf.mxu0
      %v2371 = vadd.f32 %v2330, %v2370
      %2372 = vmatmul.f32.gmra.mxu0 %v1860
      %v2373 = vpop.f32.mrf.mxu0
      %v2374 = vadd.f32 %v2333, %v2373
      %2375 = vmatmul.f32.gmra.mxu0 %v1865
      %v2376 = vpop.f32.mrf.mxu0
      %v2377 = vadd.f32 %v2336, %v2376
      %2378 = vmatmul.f32.gmra.mxu0 %v1870
      %v2379 = vpop.f32.mrf.mxu0
      %v2380 = vadd.f32 %v2339, %v2379
      %2381 = vmatmul.f32.gmra.mxu0 %v1875
      %v2382 = vpop.f32.mrf.mxu0
      %v2383 = vadd.f32 %v2342, %v2382
      %2384 = vmatmul.f32.gmra.mxu0 %v1880
      %v2385 = vpop.f32.mrf.mxu0
      %v2386 = vadd.f32 %v2345, %v2385
      %2387 = vdwg.mxu0
      %2388 = vmatpush.msra.mxu0 %v1979
      %2389 = vmatpush.msra.mxu0 %v1977
      %2390 = vmatpush.msra.mxu0 %v1975
      %2391 = vmatpush.msra.mxu0 %v1973
      %2392 = vmatpush.msra.mxu0 %v1971
      %2393 = vmatpush.msra.mxu0 %v1969
      %2394 = vmatpush.msra.mxu0 %v1967
      %2395 = vmatpush.msra.mxu0 %v1965
      %2396 = vmatpush.msra.mxu0 %v1963
      %2397 = vmatpush.msra.mxu0 %v1961
      %2398 = vmatpush.msra.mxu0 %v1959
      %2399 = vmatpush.msra.mxu0 %v1957
      %2400 = vmatpush.msra.mxu0 %v1955
      %2401 = vmatpush.msra.mxu0 %v1953
      %2402 = vmatpush.msra.mxu0 %v1951
      %2403 = vmatpush.msra.mxu0 %v1949
      %2404 = vmatmul.f32.gmra.mxu0 %v1846
      %v2405 = vpop.f32.mrf.mxu0
      %v2406 = vadd.f32 %v2365, %v2405
      %2407 = vmatmul.f32.gmra.mxu0 %v1851
      %v2408 = vpop.f32.mrf.mxu0
      %v2409 = vadd.f32 %v2368, %v2408
      %2410 = vmatmul.f32.gmra.mxu0 %v1856
      %v2411 = vpop.f32.mrf.mxu0
      %v2412 = vadd.f32 %v2371, %v2411
      %2413 = vmatmul.f32.gmra.mxu0 %v1861
      %v2414 = vpop.f32.mrf.mxu0
      %v2415 = vadd.f32 %v2374, %v2414
      %2416 = vmatmul.f32.gmra.mxu0 %v1866
      %v2417 = vpop.f32.mrf.mxu0
      %v2418 = vadd.f32 %v2377, %v2417
      %2419 = vmatmul.f32.gmra.mxu0 %v1871
      %v2420 = vpop.f32.mrf.mxu0
      %v2421 = vadd.f32 %v2380, %v2420
      %2422 = vmatmul.f32.gmra.mxu0 %v1876
      %v2423 = vpop.f32.mrf.mxu0
      %v2424 = vadd.f32 %v2383, %v2423
      %2425 = vmatmul.f32.gmra.mxu0 %v1881
      %v2426 = vpop.f32.mrf.mxu0
      %v2427 = vadd.f32 %v2386, %v2426
      %2428 = vdwg.mxu0
      %2429 = vmatpush.msra.mxu0 %v2011
      %2430 = vmatpush.msra.mxu0 %v2009
      %2431 = vmatpush.msra.mxu0 %v2007
      %2432 = vmatpush.msra.mxu0 %v2005
      %2433 = vmatpush.msra.mxu0 %v2003
      %2434 = vmatpush.msra.mxu0 %v2001
      %2435 = vmatpush.msra.mxu0 %v1999
      %2436 = vmatpush.msra.mxu0 %v1997
      %2437 = vmatpush.msra.mxu0 %v1995
      %2438 = vmatpush.msra.mxu0 %v1993
      %2439 = vmatpush.msra.mxu0 %v1991
      %2440 = vmatpush.msra.mxu0 %v1989
      %2441 = vmatpush.msra.mxu0 %v1987
      %2442 = vmatpush.msra.mxu0 %v1985
      %2443 = vmatpush.msra.mxu0 %v1983
      %2444 = vmatpush.msra.mxu0 %v1981
      %2445 = vmatmul.f32.gmra.mxu0 %v1847
      %v2446 = vpop.f32.mrf.mxu0
      %v2447 = vadd.f32 %v2406, %v2446
      %2448 = vmatmul.f32.gmra.mxu0 %v1852
      %v2449 = vpop.f32.mrf.mxu0
      %v2450 = vadd.f32 %v2409, %v2449
      %2451 = vmatmul.f32.gmra.mxu0 %v1857
      %v2452 = vpop.f32.mrf.mxu0
      %v2453 = vadd.f32 %v2412, %v2452
      %2454 = vmatmul.f32.gmra.mxu0 %v1862
      %v2455 = vpop.f32.mrf.mxu0
      %v2456 = vadd.f32 %v2415, %v2455
      %2457 = vmatmul.f32.gmra.mxu0 %v1867
      %v2458 = vpop.f32.mrf.mxu0
      %v2459 = vadd.f32 %v2418, %v2458
      %2460 = vmatmul.f32.gmra.mxu0 %v1872
      %v2461 = vpop.f32.mrf.mxu0
      %v2462 = vadd.f32 %v2421, %v2461
      %2463 = vmatmul.f32.gmra.mxu0 %v1877
      %v2464 = vpop.f32.mrf.mxu0
      %v2465 = vadd.f32 %v2424, %v2464
      %2466 = vmatmul.f32.gmra.mxu0 %v1882
      %v2467 = vpop.f32.mrf.mxu0
      %v2468 = vadd.f32 %v2427, %v2467
      %2469 = vdwg.mxu0
      %2470 = vmatpush.msra.mxu0 0.0
      %2471 = vmatpush.msra.mxu0 0.0
      %2472 = vmatpush.msra.mxu0 0.0
      %2473 = vmatpush.msra.mxu0 0.0
      %2474 = vmatpush.msra.mxu0 0.0
      %2475 = vmatpush.msra.mxu0 0.0
      %2476 = vmatpush.msra.mxu0 0.0
      %2477 = vmatpush.msra.mxu0 0.0
      %2478 = vmatpush.msra.mxu0 %v2027
      %2479 = vmatpush.msra.mxu0 %v2025
      %2480 = vmatpush.msra.mxu0 %v2023
      %2481 = vmatpush.msra.mxu0 %v2021
      %2482 = vmatpush.msra.mxu0 %v2019
      %2483 = vmatpush.msra.mxu0 %v2017
      %2484 = vmatpush.msra.mxu0 %v2015
      %2485 = vmatpush.msra.mxu0 %v2013
      %2486 = vmatmul.f32.gmra.mxu0 %v2078
      %v2487 = vpop.f32.mrf.mxu0
      %v2488 = vadd.f32 %v2447, %v2487
      %2489 = vmatmul.f32.gmra.mxu0 %v2081
      %v2490 = vpop.f32.mrf.mxu0
      %v2491 = vadd.f32 %v2450, %v2490
      %2492 = vmatmul.f32.gmra.mxu0 %v2084
      %v2493 = vpop.f32.mrf.mxu0
      %v2494 = vadd.f32 %v2453, %v2493
      %2495 = vmatmul.f32.gmra.mxu0 %v2087
      %v2496 = vpop.f32.mrf.mxu0
      %v2497 = vadd.f32 %v2456, %v2496
      %2498 = vmatmul.f32.gmra.mxu0 %v2090
      %v2499 = vpop.f32.mrf.mxu0
      %v2500 = vadd.f32 %v2459, %v2499
      %2501 = vmatmul.f32.gmra.mxu0 %v2093
      %v2502 = vpop.f32.mrf.mxu0
      %v2503 = vadd.f32 %v2462, %v2502
      %2504 = vmatmul.f32.gmra.mxu0 %v2096
      %v2505 = vpop.f32.mrf.mxu0
      %v2506 = vadd.f32 %v2465, %v2505
      %2507 = vmatmul.f32.gmra.mxu0 %v2099
      %v2508 = vpop.f32.mrf.mxu0
      %v2509 = vadd.f32 %v2468, %v2508
      %2510 = vdwg.mxu0
      %v2511 = vmax.f32 %v2283, 0.0
      %v2512 = vmax.f32 %v2488, 0.0
      %v2513 = vmax.f32 %v2286, 0.0
      %v2514 = vmax.f32 %v2491, 0.0
      %v2515 = vmax.f32 %v2289, 0.0
      %v2516 = vmax.f32 %v2494, 0.0
      %v2517 = vmax.f32 %v2292, 0.0
      %v2518 = vmax.f32 %v2497, 0.0
      %v2519 = vmax.f32 %v2295, 0.0
      %v2520 = vmax.f32 %v2500, 0.0
      %v2521 = vmax.f32 %v2298, 0.0
      %v2522 = vmax.f32 %v2503, 0.0
      %v2523 = vmax.f32 %v2301, 0.0
      %v2524 = vmax.f32 %v2506, 0.0
      %v2525 = vmax.f32 %v2304, 0.0
      %v2526 = vmax.f32 %v2509, 0.0
      %2527 = vrot.lane.b32.xlu0 %v2511, 17
      %v2528 = vpop.permute.xlu0 %2527
      %2529 = vrot.lane.b32.xlu0 %v2513, 17
      %v2530 = vpop.permute.xlu0 %2529
      %2531 = vrot.lane.b32.xlu0 %v2515, 17
      %v2532 = vpop.permute.xlu0 %2531
      %2533 = vrot.lane.b32.xlu0 %v2517, 17
      %v2534 = vpop.permute.xlu0 %2533
      %2535 = vrot.lane.b32.xlu0 %v2519, 17
      %v2536 = vpop.permute.xlu0 %2535
      %2537 = vrot.lane.b32.xlu0 %v2521, 17
      %v2538 = vpop.permute.xlu0 %2537
      %2539 = vrot.lane.b32.xlu0 %v2523, 17
      %v2540 = vpop.permute.xlu0 %2539
      %2541 = vrot.lane.b32.xlu0 %v2525, 17
      %v2542 = vpop.permute.xlu0 %2541
      %2543 = vrot.lane.b32.xlu0 %v2512, 17
      %v2544 = vpop.permute.xlu0 %2543
      %2545 = vrot.lane.b32.xlu0 %v2514, 17
      %v2546 = vpop.permute.xlu0 %2545
      %2547 = vrot.lane.b32.xlu0 %v2516, 17
      %v2548 = vpop.permute.xlu0 %2547
      %2549 = vrot.lane.b32.xlu0 %v2518, 17
      %v2550 = vpop.permute.xlu0 %2549
      %2551 = vrot.lane.b32.xlu0 %v2520, 17
      %v2552 = vpop.permute.xlu0 %2551
      %2553 = vrot.lane.b32.xlu0 %v2522, 17
      %v2554 = vpop.permute.xlu0 %2553
      %2555 = vrot.lane.b32.xlu0 %v2524, 17
      %v2556 = vpop.permute.xlu0 %2555
      %2557 = vrot.lane.b32.xlu0 %v2526, 17
      %v2558 = vpop.permute.xlu0 %2557
      %v2559 = vsel %vm516, %v2528, %v2544
      %v2560 = vsel %vm516, %v2530, %v2546
      %v2561 = vsel %vm516, %v2532, %v2548
      %v2562 = vsel %vm516, %v2534, %v2550
      %v2563 = vsel %vm516, %v2536, %v2552
      %v2564 = vsel %vm516, %v2538, %v2554
      %v2565 = vsel %vm516, %v2540, %v2556
      %v2566 = vsel %vm516, %v2542, %v2558
      %v2567 = vsel %vm516, %v2544, %v2528
      %v2568 = vsel %vm516, %v2546, %v2530
      %v2569 = vsel %vm516, %v2548, %v2532
      %v2570 = vsel %vm516, %v2550, %v2534
      %v2571 = vsel %vm516, %v2552, %v2536
      %v2572 = vsel %vm516, %v2554, %v2538
      %v2573 = vsel %vm516, %v2556, %v2540
      %v2574 = vsel %vm516, %v2558, %v2542
      %v2575 = vld [vmem:[%s519] ss:$8 sm:$0x3]
      %v2577 = vperm.slane %v2575, 0
      %v2578 = vperm.slane %v2575, 1
      %v2581 = vmul.f32 %v2567, %v2577
      %v2582 = vmul.f32 %v2559, %v2578
      %v2583 = vmul.f32 %v2568, %v2577
      %v2584 = vmul.f32 %v2560, %v2578
      %v2585 = vmul.f32 %v2569, %v2577
      %v2586 = vmul.f32 %v2561, %v2578
      %v2587 = vmul.f32 %v2570, %v2577
      %v2588 = vmul.f32 %v2562, %v2578
      %v2589 = vmul.f32 %v2571, %v2577
      %v2590 = vmul.f32 %v2563, %v2578
      %v2591 = vmul.f32 %v2572, %v2577
      %v2592 = vmul.f32 %v2564, %v2578
      %v2593 = vmul.f32 %v2573, %v2577
      %v2594 = vmul.f32 %v2565, %v2578
      %v2595 = vmul.f32 %v2574, %v2577
      %v2596 = vmul.f32 %v2566, %v2578
      %2597 = vst [vmem:[#allocation2] sm:$0xff] %v2581
      %2598 = vst [vmem:[#allocation2 + $0x8] sm:$0xff] %v2582
      %2599 = vst [vmem:[#allocation2 + $0x10] sm:$0xff] %v2583
      %2600 = vst [vmem:[#allocation2 + $0x18] sm:$0xff] %v2584
      %2601 = vst [vmem:[#allocation2 + $0x20] sm:$0xff] %v2585
      %2602 = vst [vmem:[#allocation2 + $0x28] sm:$0xff] %v2586
      %2603 = vst [vmem:[#allocation2 + $0x30] sm:$0xff] %v2587
      %2604 = vst [vmem:[#allocation2 + $0x38] sm:$0xff] %v2588
      %2605 = vst [vmem:[#allocation2 + $0x40] sm:$0xff] %v2589
      %2606 = vst [vmem:[#allocation2 + $0x48] sm:$0xff] %v2590
      %2607 = vst [vmem:[#allocation2 + $0x50] sm:$0xff] %v2591
      %2608 = vst [vmem:[#allocation2 + $0x58] sm:$0xff] %v2592
      %2609 = vst [vmem:[#allocation2 + $0x60] sm:$0xff] %v2593
      %2610 = vst [vmem:[#allocation2 + $0x68] sm:$0xff] %v2594
      %2611 = vst [vmem:[#allocation2 + $0x70] sm:$0xff] %v2595
      %2612 = vst [vmem:[#allocation2 + $0x78] sm:$0xff] %v2596
      %2613 = vrot.lane.b32.xlu0 %v2511, 16
      %v2614 = vpop.permute.xlu0 %2613
      %2615 = vrot.lane.b32.xlu0 %v2513, 16
      %v2616 = vpop.permute.xlu0 %2615
      %2617 = vrot.lane.b32.xlu0 %v2515, 16
      %v2618 = vpop.permute.xlu0 %2617
      %2619 = vrot.lane.b32.xlu0 %v2517, 16
      %v2620 = vpop.permute.xlu0 %2619
      %2621 = vrot.lane.b32.xlu0 %v2519, 16
      %v2622 = vpop.permute.xlu0 %2621
      %2623 = vrot.lane.b32.xlu0 %v2521, 16
      %v2624 = vpop.permute.xlu0 %2623
      %2625 = vrot.lane.b32.xlu0 %v2523, 16
      %v2626 = vpop.permute.xlu0 %2625
      %2627 = vrot.lane.b32.xlu0 %v2525, 16
      %v2628 = vpop.permute.xlu0 %2627
      %2629 = vrot.lane.b32.xlu0 %v2512, 16
      %v2630 = vpop.permute.xlu0 %2629
      %2631 = vrot.lane.b32.xlu0 %v2514, 16
      %v2632 = vpop.permute.xlu0 %2631
      %2633 = vrot.lane.b32.xlu0 %v2516, 16
      %v2634 = vpop.permute.xlu0 %2633
      %2635 = vrot.lane.b32.xlu0 %v2518, 16
      %v2636 = vpop.permute.xlu0 %2635
      %2637 = vrot.lane.b32.xlu0 %v2520, 16
      %v2638 = vpop.permute.xlu0 %2637
      %2639 = vrot.lane.b32.xlu0 %v2522, 16
      %v2640 = vpop.permute.xlu0 %2639
      %2641 = vrot.lane.b32.xlu0 %v2524, 16
      %v2642 = vpop.permute.xlu0 %2641
      %2643 = vrot.lane.b32.xlu0 %v2526, 16
      %v2644 = vpop.permute.xlu0 %2643
      %v2645 = vsel %vm540, %v2614, %v2630
      %v2646 = vsel %vm540, %v2616, %v2632
      %v2647 = vsel %vm540, %v2618, %v2634
      %v2648 = vsel %vm540, %v2620, %v2636
      %v2649 = vsel %vm540, %v2622, %v2638
      %v2650 = vsel %vm540, %v2624, %v2640
      %v2651 = vsel %vm540, %v2626, %v2642
      %v2652 = vsel %vm540, %v2628, %v2644
      %v2653 = vsel %vm540, %v2630, %v2614
      %v2654 = vsel %vm540, %v2632, %v2616
      %v2655 = vsel %vm540, %v2634, %v2618
      %v2656 = vsel %vm540, %v2636, %v2620
      %v2657 = vsel %vm540, %v2638, %v2622
      %v2658 = vsel %vm540, %v2640, %v2624
      %v2659 = vsel %vm540, %v2642, %v2626
      %v2660 = vsel %vm540, %v2644, %v2628
      %v2661 = vld [vmem:[%s543] ss:$8 sm:$0x3]
      %v2663 = vperm.slane %v2661, 0
      %v2664 = vperm.slane %v2661, 1
      %v2667 = vmul.f32 %v2653, %v2663
      %v2668 = vmul.f32 %v2645, %v2664
      %v2669 = vmul.f32 %v2654, %v2663
      %v2670 = vmul.f32 %v2646, %v2664
      %v2671 = vmul.f32 %v2655, %v2663
      %v2672 = vmul.f32 %v2647, %v2664
      %v2673 = vmul.f32 %v2656, %v2663
      %v2674 = vmul.f32 %v2648, %v2664
      %v2675 = vmul.f32 %v2657, %v2663
      %v2676 = vmul.f32 %v2649, %v2664
      %v2677 = vmul.f32 %v2658, %v2663
      %v2678 = vmul.f32 %v2650, %v2664
      %v2679 = vmul.f32 %v2659, %v2663
      %v2680 = vmul.f32 %v2651, %v2664
      %v2681 = vmul.f32 %v2660, %v2663
      %v2682 = vmul.f32 %v2652, %v2664
      %2683 = vst [vmem:[#allocation2 + $0x80] sm:$0xff] %v2667
      %2684 = vst [vmem:[#allocation2 + $0x88] sm:$0xff] %v2668
      %2685 = vst [vmem:[#allocation2 + $0x90] sm:$0xff] %v2669
      %2686 = vst [vmem:[#allocation2 + $0x98] sm:$0xff] %v2670
      %2687 = vst [vmem:[#allocation2 + $0xa0] sm:$0xff] %v2671
      %2688 = vst [vmem:[#allocation2 + $0xa8] sm:$0xff] %v2672
      %2689 = vst [vmem:[#allocation2 + $0xb0] sm:$0xff] %v2673
      %2690 = vst [vmem:[#allocation2 + $0xb8] sm:$0xff] %v2674
      %2691 = vst [vmem:[#allocation2 + $0xc0] sm:$0xff] %v2675
      %2692 = vst [vmem:[#allocation2 + $0xc8] sm:$0xff] %v2676
      %2693 = vst [vmem:[#allocation2 + $0xd0] sm:$0xff] %v2677
      %2694 = vst [vmem:[#allocation2 + $0xd8] sm:$0xff] %v2678
      %2695 = vst [vmem:[#allocation2 + $0xe0] sm:$0xff] %v2679
      %2696 = vst [vmem:[#allocation2 + $0xe8] sm:$0xff] %v2680
      %2697 = vst [vmem:[#allocation2 + $0xf0] sm:$0xff] %v2681
      %2698 = vst [vmem:[#allocation2 + $0xf8] sm:$0xff] %v2682
      %2699 = vrot.lane.b32.xlu0 %v2511, 15
      %v2700 = vpop.permute.xlu0 %2699
      %2701 = vrot.lane.b32.xlu0 %v2513, 15
      %v2702 = vpop.permute.xlu0 %2701
      %2703 = vrot.lane.b32.xlu0 %v2515, 15
      %v2704 = vpop.permute.xlu0 %2703
      %2705 = vrot.lane.b32.xlu0 %v2517, 15
      %v2706 = vpop.permute.xlu0 %2705
      %2707 = vrot.lane.b32.xlu0 %v2519, 15
      %v2708 = vpop.permute.xlu0 %2707
      %2709 = vrot.lane.b32.xlu0 %v2521, 15
      %v2710 = vpop.permute.xlu0 %2709
      %2711 = vrot.lane.b32.xlu0 %v2523, 15
      %v2712 = vpop.permute.xlu0 %2711
      %2713 = vrot.lane.b32.xlu0 %v2525, 15
      %v2714 = vpop.permute.xlu0 %2713
      %2715 = vrot.lane.b32.xlu0 %v2512, 15
      %v2716 = vpop.permute.xlu0 %2715
      %2717 = vrot.lane.b32.xlu0 %v2514, 15
      %v2718 = vpop.permute.xlu0 %2717
      %2719 = vrot.lane.b32.xlu0 %v2516, 15
      %v2720 = vpop.permute.xlu0 %2719
      %2721 = vrot.lane.b32.xlu0 %v2518, 15
      %v2722 = vpop.permute.xlu0 %2721
      %2723 = vrot.lane.b32.xlu0 %v2520, 15
      %v2724 = vpop.permute.xlu0 %2723
      %2725 = vrot.lane.b32.xlu0 %v2522, 15
      %v2726 = vpop.permute.xlu0 %2725
      %2727 = vrot.lane.b32.xlu0 %v2524, 15
      %v2728 = vpop.permute.xlu0 %2727
      %2729 = vrot.lane.b32.xlu0 %v2526, 15
      %v2730 = vpop.permute.xlu0 %2729
      %v2731 = vsel %vm564, %v2700, %v2716
      %v2732 = vsel %vm564, %v2702, %v2718
      %v2733 = vsel %vm564, %v2704, %v2720
      %v2734 = vsel %vm564, %v2706, %v2722
      %v2735 = vsel %vm564, %v2708, %v2724
      %v2736 = vsel %vm564, %v2710, %v2726
      %v2737 = vsel %vm564, %v2712, %v2728
      %v2738 = vsel %vm564, %v2714, %v2730
      %v2739 = vsel %vm564, %v2716, %v2700
      %v2740 = vsel %vm564, %v2718, %v2702
      %v2741 = vsel %vm564, %v2720, %v2704
      %v2742 = vsel %vm564, %v2722, %v2706
      %v2743 = vsel %vm564, %v2724, %v2708
      %v2744 = vsel %vm564, %v2726, %v2710
      %v2745 = vsel %vm564, %v2728, %v2712
      %v2746 = vsel %vm564, %v2730, %v2714
      %v2747 = vld [vmem:[%s567] ss:$8 sm:$0x3]
      %v2749 = vperm.slane %v2747, 0
      %v2750 = vperm.slane %v2747, 1
      %v2753 = vmul.f32 %v2739, %v2749
      %v2754 = vmul.f32 %v2731, %v2750
      %v2755 = vmul.f32 %v2740, %v2749
      %v2756 = vmul.f32 %v2732, %v2750
      %v2757 = vmul.f32 %v2741, %v2749
      %v2758 = vmul.f32 %v2733, %v2750
      %v2759 = vmul.f32 %v2742, %v2749
      %v2760 = vmul.f32 %v2734, %v2750
      %v2761 = vmul.f32 %v2743, %v2749
      %v2762 = vmul.f32 %v2735, %v2750
      %v2763 = vmul.f32 %v2744, %v2749
      %v2764 = vmul.f32 %v2736, %v2750
      %v2765 = vmul.f32 %v2745, %v2749
      %v2766 = vmul.f32 %v2737, %v2750
      %v2767 = vmul.f32 %v2746, %v2749
      %v2768 = vmul.f32 %v2738, %v2750
      %2769 = vst [vmem:[#allocation2 + $0x100] sm:$0xff] %v2753
      %2770 = vst [vmem:[#allocation2 + $0x108] sm:$0xff] %v2754
      %2771 = vst [vmem:[#allocation2 + $0x110] sm:$0xff] %v2755
      %2772 = vst [vmem:[#allocation2 + $0x118] sm:$0xff] %v2756
      %2773 = vst [vmem:[#allocation2 + $0x120] sm:$0xff] %v2757
      %2774 = vst [vmem:[#allocation2 + $0x128] sm:$0xff] %v2758
      %2775 = vst [vmem:[#allocation2 + $0x130] sm:$0xff] %v2759
      %2776 = vst [vmem:[#allocation2 + $0x138] sm:$0xff] %v2760
      %2777 = vst [vmem:[#allocation2 + $0x140] sm:$0xff] %v2761
      %2778 = vst [vmem:[#allocation2 + $0x148] sm:$0xff] %v2762
      %2779 = vst [vmem:[#allocation2 + $0x150] sm:$0xff] %v2763
      %2780 = vst [vmem:[#allocation2 + $0x158] sm:$0xff] %v2764
      %2781 = vst [vmem:[#allocation2 + $0x160] sm:$0xff] %v2765
      %2782 = vst [vmem:[#allocation2 + $0x168] sm:$0xff] %v2766
      %2783 = vst [vmem:[#allocation2 + $0x170] sm:$0xff] %v2767
      %2784 = vst [vmem:[#allocation2 + $0x178] sm:$0xff] %v2768
      %2785 = vrot.lane.b32.xlu0 %v2511, 1
      %v2786 = vpop.permute.xlu0 %2785
      %2787 = vrot.lane.b32.xlu0 %v2513, 1
      %v2788 = vpop.permute.xlu0 %2787
      %2789 = vrot.lane.b32.xlu0 %v2515, 1
      %v2790 = vpop.permute.xlu0 %2789
      %2791 = vrot.lane.b32.xlu0 %v2517, 1
      %v2792 = vpop.permute.xlu0 %2791
      %2793 = vrot.lane.b32.xlu0 %v2519, 1
      %v2794 = vpop.permute.xlu0 %2793
      %2795 = vrot.lane.b32.xlu0 %v2521, 1
      %v2796 = vpop.permute.xlu0 %2795
      %2797 = vrot.lane.b32.xlu0 %v2523, 1
      %v2798 = vpop.permute.xlu0 %2797
      %2799 = vrot.lane.b32.xlu0 %v2525, 1
      %v2800 = vpop.permute.xlu0 %2799
      %2801 = vrot.lane.b32.xlu0 %v2512, 1
      %v2802 = vpop.permute.xlu0 %2801
      %2803 = vrot.lane.b32.xlu0 %v2514, 1
      %v2804 = vpop.permute.xlu0 %2803
      %2805 = vrot.lane.b32.xlu0 %v2516, 1
      %v2806 = vpop.permute.xlu0 %2805
      %2807 = vrot.lane.b32.xlu0 %v2518, 1
      %v2808 = vpop.permute.xlu0 %2807
      %2809 = vrot.lane.b32.xlu0 %v2520, 1
      %v2810 = vpop.permute.xlu0 %2809
      %2811 = vrot.lane.b32.xlu0 %v2522, 1
      %v2812 = vpop.permute.xlu0 %2811
      %2813 = vrot.lane.b32.xlu0 %v2524, 1
      %v2814 = vpop.permute.xlu0 %2813
      %2815 = vrot.lane.b32.xlu0 %v2526, 1
      %v2816 = vpop.permute.xlu0 %2815
      %v2817 = vsel %vm636, %v2786, %v2802
      %v2818 = vsel %vm636, %v2788, %v2804
      %v2819 = vsel %vm636, %v2790, %v2806
      %v2820 = vsel %vm636, %v2792, %v2808
      %v2821 = vsel %vm636, %v2794, %v2810
      %v2822 = vsel %vm636, %v2796, %v2812
      %v2823 = vsel %vm636, %v2798, %v2814
      %v2824 = vsel %vm636, %v2800, %v2816
      %v2825 = vsel %vm636, %v2802, %v2786
      %v2826 = vsel %vm636, %v2804, %v2788
      %v2827 = vsel %vm636, %v2806, %v2790
      %v2828 = vsel %vm636, %v2808, %v2792
      %v2829 = vsel %vm636, %v2810, %v2794
      %v2830 = vsel %vm636, %v2812, %v2796
      %v2831 = vsel %vm636, %v2814, %v2798
      %v2832 = vsel %vm636, %v2816, %v2800
      %v2833 = vld [vmem:[%s639] ss:$8 sm:$0x3]
      %v2835 = vperm.slane %v2833, 0
      %v2836 = vperm.slane %v2833, 1
      %v2839 = vmul.f32 %v2825, %v2835
      %v2840 = vmul.f32 %v2817, %v2836
      %v2841 = vmul.f32 %v2826, %v2835
      %v2842 = vmul.f32 %v2818, %v2836
      %v2843 = vmul.f32 %v2827, %v2835
      %v2844 = vmul.f32 %v2819, %v2836
      %v2845 = vmul.f32 %v2828, %v2835
      %v2846 = vmul.f32 %v2820, %v2836
      %v2847 = vmul.f32 %v2829, %v2835
      %v2848 = vmul.f32 %v2821, %v2836
      %v2849 = vmul.f32 %v2830, %v2835
      %v2850 = vmul.f32 %v2822, %v2836
      %v2851 = vmul.f32 %v2831, %v2835
      %v2852 = vmul.f32 %v2823, %v2836
      %v2853 = vmul.f32 %v2832, %v2835
      %v2854 = vmul.f32 %v2824, %v2836
      %2855 = vst [vmem:[#allocation2 + $0x180] sm:$0xff] %v2839
      %2856 = vst [vmem:[#allocation2 + $0x188] sm:$0xff] %v2840
      %2857 = vst [vmem:[#allocation2 + $0x190] sm:$0xff] %v2841
      %2858 = vst [vmem:[#allocation2 + $0x198] sm:$0xff] %v2842
      %2859 = vst [vmem:[#allocation2 + $0x1a0] sm:$0xff] %v2843
      %2860 = vst [vmem:[#allocation2 + $0x1a8] sm:$0xff] %v2844
      %2861 = vst [vmem:[#allocation2 + $0x1b0] sm:$0xff] %v2845
      %2862 = vst [vmem:[#allocation2 + $0x1b8] sm:$0xff] %v2846
      %2863 = vst [vmem:[#allocation2 + $0x1c0] sm:$0xff] %v2847
      %2864 = vst [vmem:[#allocation2 + $0x1c8] sm:$0xff] %v2848
      %2865 = vst [vmem:[#allocation2 + $0x1d0] sm:$0xff] %v2849
      %2866 = vst [vmem:[#allocation2 + $0x1d8] sm:$0xff] %v2850
      %2867 = vst [vmem:[#allocation2 + $0x1e0] sm:$0xff] %v2851
      %2868 = vst [vmem:[#allocation2 + $0x1e8] sm:$0xff] %v2852
      %2869 = vst [vmem:[#allocation2 + $0x1f0] sm:$0xff] %v2853
      %2870 = vst [vmem:[#allocation2 + $0x1f8] sm:$0xff] %v2854
      %2871 = vst [vmem:[#allocation2 + $0x200] sm:$0xff] %v2511
      %2872 = vst [vmem:[#allocation2 + $0x208] sm:$0xff] %v2512
      %2873 = vst [vmem:[#allocation2 + $0x210] sm:$0xff] %v2513
      %2874 = vst [vmem:[#allocation2 + $0x218] sm:$0xff] %v2514
      %2875 = vst [vmem:[#allocation2 + $0x220] sm:$0xff] %v2515
      %2876 = vst [vmem:[#allocation2 + $0x228] sm:$0xff] %v2516
      %2877 = vst [vmem:[#allocation2 + $0x230] sm:$0xff] %v2517
      %2878 = vst [vmem:[#allocation2 + $0x238] sm:$0xff] %v2518
      %2879 = vst [vmem:[#allocation2 + $0x240] sm:$0xff] %v2519
      %2880 = vst [vmem:[#allocation2 + $0x248] sm:$0xff] %v2520
      %2881 = vst [vmem:[#allocation2 + $0x250] sm:$0xff] %v2521
      %2882 = vst [vmem:[#allocation2 + $0x258] sm:$0xff] %v2522
      %2883 = vst [vmem:[#allocation2 + $0x260] sm:$0xff] %v2523
      %2884 = vst [vmem:[#allocation2 + $0x268] sm:$0xff] %v2524
      %2885 = vst [vmem:[#allocation2 + $0x270] sm:$0xff] %v2525
      %2886 = vst [vmem:[#allocation2 + $0x278] sm:$0xff] %v2526
      %2887 = vrot.lane.b32.xlu0 %v2511, 127
      %v2888 = vpop.permute.xlu0 %2887
      %2889 = vrot.lane.b32.xlu0 %v2513, 127
      %v2890 = vpop.permute.xlu0 %2889
      %2891 = vrot.lane.b32.xlu0 %v2515, 127
      %v2892 = vpop.permute.xlu0 %2891
      %2893 = vrot.lane.b32.xlu0 %v2517, 127
      %v2894 = vpop.permute.xlu0 %2893
      %2895 = vrot.lane.b32.xlu0 %v2519, 127
      %v2896 = vpop.permute.xlu0 %2895
      %2897 = vrot.lane.b32.xlu0 %v2521, 127
      %v2898 = vpop.permute.xlu0 %2897
      %2899 = vrot.lane.b32.xlu0 %v2523, 127
      %v2900 = vpop.permute.xlu0 %2899
      %2901 = vrot.lane.b32.xlu0 %v2525, 127
      %v2902 = vpop.permute.xlu0 %2901
      %2903 = vrot.lane.b32.xlu0 %v2512, 127
      %v2904 = vpop.permute.xlu0 %2903
      %2905 = vrot.lane.b32.xlu0 %v2514, 127
      %v2906 = vpop.permute.xlu0 %2905
      %2907 = vrot.lane.b32.xlu0 %v2516, 127
      %v2908 = vpop.permute.xlu0 %2907
      %2909 = vrot.lane.b32.xlu0 %v2518, 127
      %v2910 = vpop.permute.xlu0 %2909
      %2911 = vrot.lane.b32.xlu0 %v2520, 127
      %v2912 = vpop.permute.xlu0 %2911
      %2913 = vrot.lane.b32.xlu0 %v2522, 127
      %v2914 = vpop.permute.xlu0 %2913
      %2915 = vrot.lane.b32.xlu0 %v2524, 127
      %v2916 = vpop.permute.xlu0 %2915
      %2917 = vrot.lane.b32.xlu0 %v2526, 127
      %v2918 = vpop.permute.xlu0 %2917
      %v2919 = vsel %vm663, %v2888, %v2904
      %v2920 = vsel %vm663, %v2890, %v2906
      %v2921 = vsel %vm663, %v2892, %v2908
      %v2922 = vsel %vm663, %v2894, %v2910
      %v2923 = vsel %vm663, %v2896, %v2912
      %v2924 = vsel %vm663, %v2898, %v2914
      %v2925 = vsel %vm663, %v2900, %v2916
      %v2926 = vsel %vm663, %v2902, %v2918
      %v2927 = vsel %vm663, %v2904, %v2888
      %v2928 = vsel %vm663, %v2906, %v2890
      %v2929 = vsel %vm663, %v2908, %v2892
      %v2930 = vsel %vm663, %v2910, %v2894
      %v2931 = vsel %vm663, %v2912, %v2896
      %v2932 = vsel %vm663, %v2914, %v2898
      %v2933 = vsel %vm663, %v2916, %v2900
      %v2934 = vsel %vm663, %v2918, %v2902
      %v2935 = vld [vmem:[%s666] ss:$8 sm:$0x3]
      %v2937 = vperm.slane %v2935, 0
      %v2938 = vperm.slane %v2935, 1
      %v2941 = vmul.f32 %v2919, %v2937
      %v2942 = vmul.f32 %v2927, %v2938
      %v2943 = vmul.f32 %v2920, %v2937
      %v2944 = vmul.f32 %v2928, %v2938
      %v2945 = vmul.f32 %v2921, %v2937
      %v2946 = vmul.f32 %v2929, %v2938
      %v2947 = vmul.f32 %v2922, %v2937
      %v2948 = vmul.f32 %v2930, %v2938
      %v2949 = vmul.f32 %v2923, %v2937
      %v2950 = vmul.f32 %v2931, %v2938
      %v2951 = vmul.f32 %v2924, %v2937
      %v2952 = vmul.f32 %v2932, %v2938
      %v2953 = vmul.f32 %v2925, %v2937
      %v2954 = vmul.f32 %v2933, %v2938
      %v2955 = vmul.f32 %v2926, %v2937
      %v2956 = vmul.f32 %v2934, %v2938
      %2957 = vst [vmem:[#allocation2 + $0x280] sm:$0xff] %v2941
      %2958 = vst [vmem:[#allocation2 + $0x288] sm:$0xff] %v2942
      %2959 = vst [vmem:[#allocation2 + $0x290] sm:$0xff] %v2943
      %2960 = vst [vmem:[#allocation2 + $0x298] sm:$0xff] %v2944
      %2961 = vst [vmem:[#allocation2 + $0x2a0] sm:$0xff] %v2945
      %2962 = vst [vmem:[#allocation2 + $0x2a8] sm:$0xff] %v2946
      %2963 = vst [vmem:[#allocation2 + $0x2b0] sm:$0xff] %v2947
      %2964 = vst [vmem:[#allocation2 + $0x2b8] sm:$0xff] %v2948
      %2965 = vst [vmem:[#allocation2 + $0x2c0] sm:$0xff] %v2949
      %2966 = vst [vmem:[#allocation2 + $0x2c8] sm:$0xff] %v2950
      %2967 = vst [vmem:[#allocation2 + $0x2d0] sm:$0xff] %v2951
      %2968 = vst [vmem:[#allocation2 + $0x2d8] sm:$0xff] %v2952
      %2969 = vst [vmem:[#allocation2 + $0x2e0] sm:$0xff] %v2953
      %2970 = vst [vmem:[#allocation2 + $0x2e8] sm:$0xff] %v2954
      %2971 = vst [vmem:[#allocation2 + $0x2f0] sm:$0xff] %v2955
      %2972 = vst [vmem:[#allocation2 + $0x2f8] sm:$0xff] %v2956
      %2973 = vrot.lane.b32.xlu0 %v2511, 113
      %v2974 = vpop.permute.xlu0 %2973
      %2975 = vrot.lane.b32.xlu0 %v2513, 113
      %v2976 = vpop.permute.xlu0 %2975
      %2977 = vrot.lane.b32.xlu0 %v2515, 113
      %v2978 = vpop.permute.xlu0 %2977
      %2979 = vrot.lane.b32.xlu0 %v2517, 113
      %v2980 = vpop.permute.xlu0 %2979
      %2981 = vrot.lane.b32.xlu0 %v2519, 113
      %v2982 = vpop.permute.xlu0 %2981
      %2983 = vrot.lane.b32.xlu0 %v2521, 113
      %v2984 = vpop.permute.xlu0 %2983
      %2985 = vrot.lane.b32.xlu0 %v2523, 113
      %v2986 = vpop.permute.xlu0 %2985
      %2987 = vrot.lane.b32.xlu0 %v2525, 113
      %v2988 = vpop.permute.xlu0 %2987
      %2989 = vrot.lane.b32.xlu0 %v2512, 113
      %v2990 = vpop.permute.xlu0 %2989
      %2991 = vrot.lane.b32.xlu0 %v2514, 113
      %v2992 = vpop.permute.xlu0 %2991
      %2993 = vrot.lane.b32.xlu0 %v2516, 113
      %v2994 = vpop.permute.xlu0 %2993
      %2995 = vrot.lane.b32.xlu0 %v2518, 113
      %v2996 = vpop.permute.xlu0 %2995
      %2997 = vrot.lane.b32.xlu0 %v2520, 113
      %v2998 = vpop.permute.xlu0 %2997
      %2999 = vrot.lane.b32.xlu0 %v2522, 113
      %v3000 = vpop.permute.xlu0 %2999
      %3001 = vrot.lane.b32.xlu0 %v2524, 113
      %v3002 = vpop.permute.xlu0 %3001
      %3003 = vrot.lane.b32.xlu0 %v2526, 113
      %v3004 = vpop.permute.xlu0 %3003
      %v3005 = vsel %vm735, %v2974, %v2990
      %v3006 = vsel %vm735, %v2976, %v2992
      %v3007 = vsel %vm735, %v2978, %v2994
      %v3008 = vsel %vm735, %v2980, %v2996
      %v3009 = vsel %vm735, %v2982, %v2998
      %v3010 = vsel %vm735, %v2984, %v3000
      %v3011 = vsel %vm735, %v2986, %v3002
      %v3012 = vsel %vm735, %v2988, %v3004
      %v3013 = vsel %vm735, %v2990, %v2974
      %v3014 = vsel %vm735, %v2992, %v2976
      %v3015 = vsel %vm735, %v2994, %v2978
      %v3016 = vsel %vm735, %v2996, %v2980
      %v3017 = vsel %vm735, %v2998, %v2982
      %v3018 = vsel %vm735, %v3000, %v2984
      %v3019 = vsel %vm735, %v3002, %v2986
      %v3020 = vsel %vm735, %v3004, %v2988
      %v3021 = vld [vmem:[%s738] ss:$8 sm:$0x3]
      %v3023 = vperm.slane %v3021, 0
      %v3024 = vperm.slane %v3021, 1
      %v3027 = vmul.f32 %v3005, %v3023
      %v3028 = vmul.f32 %v3013, %v3024
      %v3029 = vmul.f32 %v3006, %v3023
      %v3030 = vmul.f32 %v3014, %v3024
      %v3031 = vmul.f32 %v3007, %v3023
      %v3032 = vmul.f32 %v3015, %v3024
      %v3033 = vmul.f32 %v3008, %v3023
      %v3034 = vmul.f32 %v3016, %v3024
      %v3035 = vmul.f32 %v3009, %v3023
      %v3036 = vmul.f32 %v3017, %v3024
      %v3037 = vmul.f32 %v3010, %v3023
      %v3038 = vmul.f32 %v3018, %v3024
      %v3039 = vmul.f32 %v3011, %v3023
      %v3040 = vmul.f32 %v3019, %v3024
      %v3041 = vmul.f32 %v3012, %v3023
      %v3042 = vmul.f32 %v3020, %v3024
      %3043 = vst [vmem:[#allocation2 + $0x300] sm:$0xff] %v3027
      %3044 = vst [vmem:[#allocation2 + $0x308] sm:$0xff] %v3028
      %3045 = vst [vmem:[#allocation2 + $0x310] sm:$0xff] %v3029
      %3046 = vst [vmem:[#allocation2 + $0x318] sm:$0xff] %v3030
      %3047 = vst [vmem:[#allocation2 + $0x320] sm:$0xff] %v3031
      %3048 = vst [vmem:[#allocation2 + $0x328] sm:$0xff] %v3032
      %3049 = vst [vmem:[#allocation2 + $0x330] sm:$0xff] %v3033
      %3050 = vst [vmem:[#allocation2 + $0x338] sm:$0xff] %v3034
      %3051 = vst [vmem:[#allocation2 + $0x340] sm:$0xff] %v3035
      %3052 = vst [vmem:[#allocation2 + $0x348] sm:$0xff] %v3036
      %3053 = vst [vmem:[#allocation2 + $0x350] sm:$0xff] %v3037
      %3054 = vst [vmem:[#allocation2 + $0x358] sm:$0xff] %v3038
      %3055 = vst [vmem:[#allocation2 + $0x360] sm:$0xff] %v3039
      %3056 = vst [vmem:[#allocation2 + $0x368] sm:$0xff] %v3040
      %3057 = vst [vmem:[#allocation2 + $0x370] sm:$0xff] %v3041
      %3058 = vst [vmem:[#allocation2 + $0x378] sm:$0xff] %v3042
      %3059 = vrot.lane.b32.xlu0 %v2511, 112
      %v3060 = vpop.permute.xlu0 %3059
      %3061 = vrot.lane.b32.xlu0 %v2513, 112
      %v3062 = vpop.permute.xlu0 %3061
      %3063 = vrot.lane.b32.xlu0 %v2515, 112
      %v3064 = vpop.permute.xlu0 %3063
      %3065 = vrot.lane.b32.xlu0 %v2517, 112
      %v3066 = vpop.permute.xlu0 %3065
      %3067 = vrot.lane.b32.xlu0 %v2519, 112
      %v3068 = vpop.permute.xlu0 %3067
      %3069 = vrot.lane.b32.xlu0 %v2521, 112
      %v3070 = vpop.permute.xlu0 %3069
      %3071 = vrot.lane.b32.xlu0 %v2523, 112
      %v3072 = vpop.permute.xlu0 %3071
      %3073 = vrot.lane.b32.xlu0 %v2525, 112
      %v3074 = vpop.permute.xlu0 %3073
      %3075 = vrot.lane.b32.xlu0 %v2512, 112
      %v3076 = vpop.permute.xlu0 %3075
      %3077 = vrot.lane.b32.xlu0 %v2514, 112
      %v3078 = vpop.permute.xlu0 %3077
      %3079 = vrot.lane.b32.xlu0 %v2516, 112
      %v3080 = vpop.permute.xlu0 %3079
      %3081 = vrot.lane.b32.xlu0 %v2518, 112
      %v3082 = vpop.permute.xlu0 %3081
      %3083 = vrot.lane.b32.xlu0 %v2520, 112
      %v3084 = vpop.permute.xlu0 %3083
      %3085 = vrot.lane.b32.xlu0 %v2522, 112
      %v3086 = vpop.permute.xlu0 %3085
      %3087 = vrot.lane.b32.xlu0 %v2524, 112
      %v3088 = vpop.permute.xlu0 %3087
      %3089 = vrot.lane.b32.xlu0 %v2526, 112
      %v3090 = vpop.permute.xlu0 %3089
      %v3091 = vsel %vm759, %v3060, %v3076
      %v3092 = vsel %vm759, %v3062, %v3078
      %v3093 = vsel %vm759, %v3064, %v3080
      %v3094 = vsel %vm759, %v3066, %v3082
      %v3095 = vsel %vm759, %v3068, %v3084
      %v3096 = vsel %vm759, %v3070, %v3086
      %v3097 = vsel %vm759, %v3072, %v3088
      %v3098 = vsel %vm759, %v3074, %v3090
      %v3099 = vsel %vm759, %v3076, %v3060
      %v3100 = vsel %vm759, %v3078, %v3062
      %v3101 = vsel %vm759, %v3080, %v3064
      %v3102 = vsel %vm759, %v3082, %v3066
      %v3103 = vsel %vm759, %v3084, %v3068
      %v3104 = vsel %vm759, %v3086, %v3070
      %v3105 = vsel %vm759, %v3088, %v3072
      %v3106 = vsel %vm759, %v3090, %v3074
      %v3107 = vld [vmem:[%s762] ss:$8 sm:$0x3]
      %v3109 = vperm.slane %v3107, 0
      %v3110 = vperm.slane %v3107, 1
      %v3113 = vmul.f32 %v3091, %v3109
      %v3114 = vmul.f32 %v3099, %v3110
      %v3115 = vmul.f32 %v3092, %v3109
      %v3116 = vmul.f32 %v3100, %v3110
      %v3117 = vmul.f32 %v3093, %v3109
      %v3118 = vmul.f32 %v3101, %v3110
      %v3119 = vmul.f32 %v3094, %v3109
      %v3120 = vmul.f32 %v3102, %v3110
      %v3121 = vmul.f32 %v3095, %v3109
      %v3122 = vmul.f32 %v3103, %v3110
      %v3123 = vmul.f32 %v3096, %v3109
      %v3124 = vmul.f32 %v3104, %v3110
      %v3125 = vmul.f32 %v3097, %v3109
      %v3126 = vmul.f32 %v3105, %v3110
      %v3127 = vmul.f32 %v3098, %v3109
      %v3128 = vmul.f32 %v3106, %v3110
      %3129 = vst [vmem:[#allocation2 + $0x380] sm:$0xff] %v3113
      %3130 = vst [vmem:[#allocation2 + $0x388] sm:$0xff] %v3114
      %3131 = vst [vmem:[#allocation2 + $0x390] sm:$0xff] %v3115
      %3132 = vst [vmem:[#allocation2 + $0x398] sm:$0xff] %v3116
      %3133 = vst [vmem:[#allocation2 + $0x3a0] sm:$0xff] %v3117
      %3134 = vst [vmem:[#allocation2 + $0x3a8] sm:$0xff] %v3118
      %3135 = vst [vmem:[#allocation2 + $0x3b0] sm:$0xff] %v3119
      %3136 = vst [vmem:[#allocation2 + $0x3b8] sm:$0xff] %v3120
      %3137 = vst [vmem:[#allocation2 + $0x3c0] sm:$0xff] %v3121
      %3138 = vst [vmem:[#allocation2 + $0x3c8] sm:$0xff] %v3122
      %3139 = vst [vmem:[#allocation2 + $0x3d0] sm:$0xff] %v3123
      %3140 = vst [vmem:[#allocation2 + $0x3d8] sm:$0xff] %v3124
      %3141 = vst [vmem:[#allocation2 + $0x3e0] sm:$0xff] %v3125
      %3142 = vst [vmem:[#allocation2 + $0x3e8] sm:$0xff] %v3126
      %3143 = vst [vmem:[#allocation2 + $0x3f0] sm:$0xff] %v3127
      %3144 = vst [vmem:[#allocation2 + $0x3f8] sm:$0xff] %v3128
      %3145 = vrot.lane.b32.xlu0 %v2511, 111
      %v3146 = vpop.permute.xlu0 %3145
      %3147 = vrot.lane.b32.xlu0 %v2513, 111
      %v3148 = vpop.permute.xlu0 %3147
      %3149 = vrot.lane.b32.xlu0 %v2515, 111
      %v3150 = vpop.permute.xlu0 %3149
      %3151 = vrot.lane.b32.xlu0 %v2517, 111
      %v3152 = vpop.permute.xlu0 %3151
      %3153 = vrot.lane.b32.xlu0 %v2519, 111
      %v3154 = vpop.permute.xlu0 %3153
      %3155 = vrot.lane.b32.xlu0 %v2521, 111
      %v3156 = vpop.permute.xlu0 %3155
      %3157 = vrot.lane.b32.xlu0 %v2523, 111
      %v3158 = vpop.permute.xlu0 %3157
      %3159 = vrot.lane.b32.xlu0 %v2525, 111
      %v3160 = vpop.permute.xlu0 %3159
      %3161 = vrot.lane.b32.xlu0 %v2512, 111
      %v3162 = vpop.permute.xlu0 %3161
      %3163 = vrot.lane.b32.xlu0 %v2514, 111
      %v3164 = vpop.permute.xlu0 %3163
      %3165 = vrot.lane.b32.xlu0 %v2516, 111
      %v3166 = vpop.permute.xlu0 %3165
      %3167 = vrot.lane.b32.xlu0 %v2518, 111
      %v3168 = vpop.permute.xlu0 %3167
      %3169 = vrot.lane.b32.xlu0 %v2520, 111
      %v3170 = vpop.permute.xlu0 %3169
      %3171 = vrot.lane.b32.xlu0 %v2522, 111
      %v3172 = vpop.permute.xlu0 %3171
      %3173 = vrot.lane.b32.xlu0 %v2524, 111
      %v3174 = vpop.permute.xlu0 %3173
      %3175 = vrot.lane.b32.xlu0 %v2526, 111
      %v3176 = vpop.permute.xlu0 %3175
      %v3177 = vsel %vm783, %v3146, %v3162
      %v3178 = vsel %vm783, %v3148, %v3164
      %v3179 = vsel %vm783, %v3150, %v3166
      %v3180 = vsel %vm783, %v3152, %v3168
      %v3181 = vsel %vm783, %v3154, %v3170
      %v3182 = vsel %vm783, %v3156, %v3172
      %v3183 = vsel %vm783, %v3158, %v3174
      %v3184 = vsel %vm783, %v3160, %v3176
      %v3185 = vsel %vm783, %v3162, %v3146
      %v3186 = vsel %vm783, %v3164, %v3148
      %v3187 = vsel %vm783, %v3166, %v3150
      %v3188 = vsel %vm783, %v3168, %v3152
      %v3189 = vsel %vm783, %v3170, %v3154
      %v3190 = vsel %vm783, %v3172, %v3156
      %v3191 = vsel %vm783, %v3174, %v3158
      %v3192 = vsel %vm783, %v3176, %v3160
      %v3193 = vld [vmem:[%s786] ss:$8 sm:$0x3]
      %v3195 = vperm.slane %v3193, 0
      %v3196 = vperm.slane %v3193, 1
      %v3199 = vmul.f32 %v3177, %v3195
      %v3200 = vmul.f32 %v3185, %v3196
      %v3201 = vmul.f32 %v3178, %v3195
      %v3202 = vmul.f32 %v3186, %v3196
      %v3203 = vmul.f32 %v3179, %v3195
      %v3204 = vmul.f32 %v3187, %v3196
      %v3205 = vmul.f32 %v3180, %v3195
      %v3206 = vmul.f32 %v3188, %v3196
      %v3207 = vmul.f32 %v3181, %v3195
      %v3208 = vmul.f32 %v3189, %v3196
      %v3209 = vmul.f32 %v3182, %v3195
      %v3210 = vmul.f32 %v3190, %v3196
      %v3211 = vmul.f32 %v3183, %v3195
      %v3212 = vmul.f32 %v3191, %v3196
      %v3213 = vmul.f32 %v3184, %v3195
      %v3214 = vmul.f32 %v3192, %v3196
      %3215 = vst [vmem:[#allocation2 + $0x400] sm:$0xff] %v3199
      %3216 = vst [vmem:[#allocation2 + $0x408] sm:$0xff] %v3200
      %3217 = vst [vmem:[#allocation2 + $0x410] sm:$0xff] %v3201
      %3218 = vst [vmem:[#allocation2 + $0x418] sm:$0xff] %v3202
      %3219 = vst [vmem:[#allocation2 + $0x420] sm:$0xff] %v3203
      %3220 = vst [vmem:[#allocation2 + $0x428] sm:$0xff] %v3204
      %3221 = vst [vmem:[#allocation2 + $0x430] sm:$0xff] %v3205
      %3222 = vst [vmem:[#allocation2 + $0x438] sm:$0xff] %v3206
      %3223 = vst [vmem:[#allocation2 + $0x440] sm:$0xff] %v3207
      %3224 = vst [vmem:[#allocation2 + $0x448] sm:$0xff] %v3208
      %3225 = vst [vmem:[#allocation2 + $0x450] sm:$0xff] %v3209
      %3226 = vst [vmem:[#allocation2 + $0x458] sm:$0xff] %v3210
      %3227 = vst [vmem:[#allocation2 + $0x460] sm:$0xff] %v3211
      %3228 = vst [vmem:[#allocation2 + $0x468] sm:$0xff] %v3212
      %3229 = vst [vmem:[#allocation2 + $0x470] sm:$0xff] %v3213
      %3230 = vst [vmem:[#allocation2 + $0x478] sm:$0xff] %v3214
      %v3231 = vld [vmem:[%s6] sm:$0xff]
      %v3232 = vld [vmem:[%s6 + $0x8] sm:$0xff]
      %v3233 = vld [vmem:[%s6 + $0x10] sm:$0xff]
      %v3234 = vld [vmem:[%s6 + $0x18] sm:$0xff]
      %v3235 = vld [vmem:[%s6 + $0x20] sm:$0xff]
      %v3236 = vld [vmem:[%s6 + $0x28] sm:$0xff]
      %v3237 = vld [vmem:[%s6 + $0x30] sm:$0xff]
      %v3238 = vld [vmem:[%s6 + $0x38] sm:$0xff]
      %v3239 = vld [vmem:[%s6 + $0x40] sm:$0xff]
      %v3240 = vld [vmem:[%s6 + $0x48] sm:$0xff]
      %v3241 = vld [vmem:[%s6 + $0x50] sm:$0xff]
      %v3242 = vld [vmem:[%s6 + $0x58] sm:$0xff]
      %v3243 = vld [vmem:[%s6 + $0x60] sm:$0xff]
      %v3244 = vld [vmem:[%s6 + $0x68] sm:$0xff]
      %v3245 = vld [vmem:[%s6 + $0x70] sm:$0xff]
      %v3246 = vld [vmem:[%s6 + $0x78] sm:$0xff]
      %v3247 = vld [vmem:[%s6 + $0x80] sm:$0xff]
      %v3248 = vld [vmem:[%s6 + $0x88] sm:$0xff]
      %v3249 = vld [vmem:[%s6 + $0x90] sm:$0xff]
      %v3250 = vld [vmem:[%s6 + $0x98] sm:$0xff]
      %v3251 = vld [vmem:[#allocation2] sm:$0xff]
      %v3252 = vld [vmem:[#allocation2 + $0x8] sm:$0xff]
      %v3253 = vld [vmem:[#allocation2 + $0x10] sm:$0xff]
      %v3254 = vld [vmem:[#allocation2 + $0x18] sm:$0xff]
      %v3255 = vld [vmem:[#allocation2 + $0x20] sm:$0xff]
      %v3256 = vld [vmem:[#allocation2 + $0x28] sm:$0xff]
      %v3257 = vld [vmem:[#allocation2 + $0x30] sm:$0xff]
      %v3258 = vld [vmem:[#allocation2 + $0x38] sm:$0xff]
      %v3259 = vld [vmem:[#allocation2 + $0x40] sm:$0xff]
      %v3260 = vld [vmem:[#allocation2 + $0x48] sm:$0xff]
      %v3261 = vld [vmem:[#allocation2 + $0x50] sm:$0xff]
      %v3262 = vld [vmem:[#allocation2 + $0x58] sm:$0xff]
      %v3263 = vld [vmem:[#allocation2 + $0x60] sm:$0xff]
      %v3264 = vld [vmem:[#allocation2 + $0x68] sm:$0xff]
      %v3265 = vld [vmem:[#allocation2 + $0x70] sm:$0xff]
      %v3266 = vld [vmem:[#allocation2 + $0x78] sm:$0xff]
      %v3267 = vld [vmem:[#allocation2 + $0x80] sm:$0xff]
      %v3268 = vld [vmem:[#allocation2 + $0x88] sm:$0xff]
      %v3269 = vld [vmem:[#allocation2 + $0x90] sm:$0xff]
      %v3270 = vld [vmem:[#allocation2 + $0x98] sm:$0xff]
      %v3271 = vld [vmem:[#allocation2 + $0xa0] sm:$0xff]
      %v3272 = vld [vmem:[#allocation2 + $0xa8] sm:$0xff]
      %v3273 = vld [vmem:[#allocation2 + $0xb0] sm:$0xff]
      %v3274 = vld [vmem:[#allocation2 + $0xb8] sm:$0xff]
      %v3275 = vld [vmem:[#allocation2 + $0xc0] sm:$0xff]
      %v3276 = vld [vmem:[#allocation2 + $0xc8] sm:$0xff]
      %v3277 = vld [vmem:[#allocation2 + $0xd0] sm:$0xff]
      %v3278 = vld [vmem:[#allocation2 + $0xd8] sm:$0xff]
      %v3279 = vld [vmem:[#allocation2 + $0xe0] sm:$0xff]
      %v3280 = vld [vmem:[#allocation2 + $0xe8] sm:$0xff]
      %v3281 = vld [vmem:[#allocation2 + $0xf0] sm:$0xff]
      %v3282 = vld [vmem:[#allocation2 + $0xf8] sm:$0xff]
      %v3283 = vld [vmem:[#allocation2 + $0x100] sm:$0xff]
      %v3284 = vld [vmem:[#allocation2 + $0x108] sm:$0xff]
      %v3285 = vld [vmem:[#allocation2 + $0x110] sm:$0xff]
      %v3286 = vld [vmem:[#allocation2 + $0x118] sm:$0xff]
      %v3287 = vld [vmem:[#allocation2 + $0x120] sm:$0xff]
      %v3288 = vld [vmem:[#allocation2 + $0x128] sm:$0xff]
      %v3289 = vld [vmem:[#allocation2 + $0x130] sm:$0xff]
      %v3290 = vld [vmem:[#allocation2 + $0x138] sm:$0xff]
      %v3291 = vld [vmem:[#allocation2 + $0x140] sm:$0xff]
      %v3292 = vld [vmem:[#allocation2 + $0x148] sm:$0xff]
      %v3293 = vld [vmem:[#allocation2 + $0x150] sm:$0xff]
      %v3294 = vld [vmem:[#allocation2 + $0x158] sm:$0xff]
      %v3295 = vld [vmem:[#allocation2 + $0x160] sm:$0xff]
      %v3296 = vld [vmem:[#allocation2 + $0x168] sm:$0xff]
      %v3297 = vld [vmem:[#allocation2 + $0x170] sm:$0xff]
      %v3298 = vld [vmem:[#allocation2 + $0x178] sm:$0xff]
      %v3299 = vld [vmem:[#allocation2 + $0x180] sm:$0xff]
      %v3300 = vld [vmem:[#allocation2 + $0x188] sm:$0xff]
      %v3301 = vld [vmem:[#allocation2 + $0x190] sm:$0xff]
      %v3302 = vld [vmem:[#allocation2 + $0x198] sm:$0xff]
      %v3303 = vld [vmem:[#allocation2 + $0x1a0] sm:$0xff]
      %v3304 = vld [vmem:[#allocation2 + $0x1a8] sm:$0xff]
      %v3305 = vld [vmem:[#allocation2 + $0x1b0] sm:$0xff]
      %v3306 = vld [vmem:[#allocation2 + $0x1b8] sm:$0xff]
      %v3307 = vld [vmem:[#allocation2 + $0x1c0] sm:$0xff]
      %v3308 = vld [vmem:[#allocation2 + $0x1c8] sm:$0xff]
      %v3309 = vld [vmem:[#allocation2 + $0x1d0] sm:$0xff]
      %v3310 = vld [vmem:[#allocation2 + $0x1d8] sm:$0xff]
      %v3311 = vld [vmem:[#allocation2 + $0x1e0] sm:$0xff]
      %v3312 = vld [vmem:[#allocation2 + $0x1e8] sm:$0xff]
      %v3313 = vld [vmem:[#allocation2 + $0x1f0] sm:$0xff]
      %v3314 = vld [vmem:[#allocation2 + $0x1f8] sm:$0xff]
      %v3315 = vld [vmem:[#allocation2 + $0x200] sm:$0xff]
      %v3316 = vld [vmem:[#allocation2 + $0x208] sm:$0xff]
      %v3317 = vld [vmem:[#allocation2 + $0x210] sm:$0xff]
      %v3318 = vld [vmem:[#allocation2 + $0x218] sm:$0xff]
      %v3319 = vld [vmem:[#allocation2 + $0x220] sm:$0xff]
      %v3320 = vld [vmem:[#allocation2 + $0x228] sm:$0xff]
      %v3321 = vld [vmem:[#allocation2 + $0x230] sm:$0xff]
      %v3322 = vld [vmem:[#allocation2 + $0x238] sm:$0xff]
      %v3323 = vld [vmem:[#allocation2 + $0x240] sm:$0xff]
      %v3324 = vld [vmem:[#allocation2 + $0x248] sm:$0xff]
      %v3325 = vld [vmem:[#allocation2 + $0x250] sm:$0xff]
      %v3326 = vld [vmem:[#allocation2 + $0x258] sm:$0xff]
      %v3327 = vld [vmem:[#allocation2 + $0x260] sm:$0xff]
      %v3328 = vld [vmem:[#allocation2 + $0x268] sm:$0xff]
      %v3329 = vld [vmem:[#allocation2 + $0x270] sm:$0xff]
      %v3330 = vld [vmem:[#allocation2 + $0x278] sm:$0xff]
      %v3331 = vld [vmem:[#allocation2 + $0x280] sm:$0xff]
      %v3332 = vld [vmem:[#allocation2 + $0x288] sm:$0xff]
      %v3333 = vld [vmem:[#allocation2 + $0x290] sm:$0xff]
      %v3334 = vld [vmem:[#allocation2 + $0x298] sm:$0xff]
      %v3335 = vld [vmem:[#allocation2 + $0x2a0] sm:$0xff]
      %v3336 = vld [vmem:[#allocation2 + $0x2a8] sm:$0xff]
      %v3337 = vld [vmem:[#allocation2 + $0x2b0] sm:$0xff]
      %v3338 = vld [vmem:[#allocation2 + $0x2b8] sm:$0xff]
      %v3339 = vld [vmem:[#allocation2 + $0x2c0] sm:$0xff]
      %v3340 = vld [vmem:[#allocation2 + $0x2c8] sm:$0xff]
      %v3341 = vld [vmem:[#allocation2 + $0x2d0] sm:$0xff]
      %v3342 = vld [vmem:[#allocation2 + $0x2d8] sm:$0xff]
      %v3343 = vld [vmem:[#allocation2 + $0x2e0] sm:$0xff]
      %v3344 = vld [vmem:[#allocation2 + $0x2e8] sm:$0xff]
      %v3345 = vld [vmem:[#allocation2 + $0x2f0] sm:$0xff]
      %v3346 = vld [vmem:[#allocation2 + $0x2f8] sm:$0xff]
      %v3347 = vld [vmem:[#allocation2 + $0x300] sm:$0xff]
      %v3348 = vld [vmem:[#allocation2 + $0x308] sm:$0xff]
      %v3349 = vld [vmem:[#allocation2 + $0x310] sm:$0xff]
      %v3350 = vld [vmem:[#allocation2 + $0x318] sm:$0xff]
      %v3351 = vld [vmem:[#allocation2 + $0x320] sm:$0xff]
      %v3352 = vld [vmem:[#allocation2 + $0x328] sm:$0xff]
      %v3353 = vld [vmem:[#allocation2 + $0x330] sm:$0xff]
      %v3354 = vld [vmem:[#allocation2 + $0x338] sm:$0xff]
      %v3355 = vld [vmem:[#allocation2 + $0x340] sm:$0xff]
      %v3356 = vld [vmem:[#allocation2 + $0x348] sm:$0xff]
      %v3357 = vld [vmem:[#allocation2 + $0x350] sm:$0xff]
      %v3358 = vld [vmem:[#allocation2 + $0x358] sm:$0xff]
      %v3359 = vld [vmem:[#allocation2 + $0x360] sm:$0xff]
      %v3360 = vld [vmem:[#allocation2 + $0x368] sm:$0xff]
      %v3361 = vld [vmem:[#allocation2 + $0x370] sm:$0xff]
      %v3362 = vld [vmem:[#allocation2 + $0x378] sm:$0xff]
      %v3363 = vld [vmem:[#allocation2 + $0x380] sm:$0xff]
      %v3364 = vld [vmem:[#allocation2 + $0x388] sm:$0xff]
      %v3365 = vld [vmem:[#allocation2 + $0x390] sm:$0xff]
      %v3366 = vld [vmem:[#allocation2 + $0x398] sm:$0xff]
      %v3367 = vld [vmem:[#allocation2 + $0x3a0] sm:$0xff]
      %v3368 = vld [vmem:[#allocation2 + $0x3a8] sm:$0xff]
      %v3369 = vld [vmem:[#allocation2 + $0x3b0] sm:$0xff]
      %v3370 = vld [vmem:[#allocation2 + $0x3b8] sm:$0xff]
      %v3371 = vld [vmem:[#allocation2 + $0x3c0] sm:$0xff]
      %v3372 = vld [vmem:[#allocation2 + $0x3c8] sm:$0xff]
      %v3373 = vld [vmem:[#allocation2 + $0x3d0] sm:$0xff]
      %v3374 = vld [vmem:[#allocation2 + $0x3d8] sm:$0xff]
      %v3375 = vld [vmem:[#allocation2 + $0x3e0] sm:$0xff]
      %v3376 = vld [vmem:[#allocation2 + $0x3e8] sm:$0xff]
      %v3377 = vld [vmem:[#allocation2 + $0x3f0] sm:$0xff]
      %v3378 = vld [vmem:[#allocation2 + $0x3f8] sm:$0xff]
      %v3379 = vld [vmem:[#allocation2 + $0x400] sm:$0xff]
      %v3380 = vld [vmem:[#allocation2 + $0x408] sm:$0xff]
      %v3381 = vld [vmem:[#allocation2 + $0x410] sm:$0xff]
      %v3382 = vld [vmem:[#allocation2 + $0x418] sm:$0xff]
      %v3383 = vld [vmem:[#allocation2 + $0x420] sm:$0xff]
      %v3384 = vld [vmem:[#allocation2 + $0x428] sm:$0xff]
      %v3385 = vld [vmem:[#allocation2 + $0x430] sm:$0xff]
      %v3386 = vld [vmem:[#allocation2 + $0x438] sm:$0xff]
      %v3387 = vld [vmem:[#allocation2 + $0x440] sm:$0xff]
      %v3388 = vld [vmem:[#allocation2 + $0x448] sm:$0xff]
      %v3389 = vld [vmem:[#allocation2 + $0x450] sm:$0xff]
      %v3390 = vld [vmem:[#allocation2 + $0x458] sm:$0xff]
      %v3391 = vld [vmem:[#allocation2 + $0x460] sm:$0xff]
      %v3392 = vld [vmem:[#allocation2 + $0x468] sm:$0xff]
      %v3393 = vld [vmem:[#allocation2 + $0x470] sm:$0xff]
      %v3394 = vld [vmem:[#allocation2 + $0x478] sm:$0xff]
      %v3395 = vld [vmem:[%s7] sm:$0xff]
      %v3396 = vld [vmem:[%s7 + $0x8] sm:$0xff]
      %v3397 = vld [vmem:[%s7 + $0x10] sm:$0xff]
      %v3398 = vld [vmem:[%s7 + $0x18] sm:$0xff]
      %3400 = vset.pattern.permute.xlu0 0
      %3401 = vperm.xlu0 %3400, %v3395
      %v3402 = vpop.permute.xlu0 %3401
      %3405 = vset.pattern.permute.xlu0 0
      %3406 = vperm.xlu0 %3405, %v3396
      %v3407 = vpop.permute.xlu0 %3406
      %3410 = vset.pattern.permute.xlu0 0
      %3411 = vperm.xlu0 %3410, %v3397
      %v3412 = vpop.permute.xlu0 %3411
      %3415 = vset.pattern.permute.xlu0 0
      %3416 = vperm.xlu0 %3415, %v3398
      %v3417 = vpop.permute.xlu0 %3416
      %v3420 = vsel %vm2076, %v3235, 0
      %v3423 = vsel %vm2076, %v3240, 0
      %v3426 = vsel %vm2076, %v3245, 0
      %v3429 = vsel %vm2076, %v3250, 0
      %3431 = vmatpush.msra.mxu0 %v3281
      %3432 = vmatpush.msra.mxu0 %v3279
      %3433 = vmatpush.msra.mxu0 %v3277
      %3434 = vmatpush.msra.mxu0 %v3275
      %3435 = vmatpush.msra.mxu0 %v3273
      %3436 = vmatpush.msra.mxu0 %v3271
      %3437 = vmatpush.msra.mxu0 %v3269
      %3438 = vmatpush.msra.mxu0 %v3267
      %3439 = vmatpush.msra.mxu0 %v3265
      %3440 = vmatpush.msra.mxu0 %v3263
      %3441 = vmatpush.msra.mxu0 %v3261
      %3442 = vmatpush.msra.mxu0 %v3259
      %3443 = vmatpush.msra.mxu0 %v3257
      %3444 = vmatpush.msra.mxu0 %v3255
      %3445 = vmatpush.msra.mxu0 %v3253
      %3446 = vmatpush.msra.mxu0 %v3251
      %3447 = vmatmul.f32.gmra.mxu0 %v3231
      %v3448 = vpop.f32.mrf.mxu0
      %v3449 = vadd.f32 %v3402, %v3448
      %3450 = vmatmul.f32.gmra.mxu0 %v3236
      %v3451 = vpop.f32.mrf.mxu0
      %v3452 = vadd.f32 %v3407, %v3451
      %3453 = vmatmul.f32.gmra.mxu0 %v3241
      %v3454 = vpop.f32.mrf.mxu0
      %v3455 = vadd.f32 %v3412, %v3454
      %3456 = vmatmul.f32.gmra.mxu0 %v3246
      %v3457 = vpop.f32.mrf.mxu0
      %v3458 = vadd.f32 %v3417, %v3457
      %3459 = vdwg.mxu0
      %3460 = vmatpush.msra.mxu0 %v3313
      %3461 = vmatpush.msra.mxu0 %v3311
      %3462 = vmatpush.msra.mxu0 %v3309
      %3463 = vmatpush.msra.mxu0 %v3307
      %3464 = vmatpush.msra.mxu0 %v3305
      %3465 = vmatpush.msra.mxu0 %v3303
      %3466 = vmatpush.msra.mxu0 %v3301
      %3467 = vmatpush.msra.mxu0 %v3299
      %3468 = vmatpush.msra.mxu0 %v3297
      %3469 = vmatpush.msra.mxu0 %v3295
      %3470 = vmatpush.msra.mxu0 %v3293
      %3471 = vmatpush.msra.mxu0 %v3291
      %3472 = vmatpush.msra.mxu0 %v3289
      %3473 = vmatpush.msra.mxu0 %v3287
      %3474 = vmatpush.msra.mxu0 %v3285
      %3475 = vmatpush.msra.mxu0 %v3283
      %3476 = vmatmul.f32.gmra.mxu0 %v3232
      %v3477 = vpop.f32.mrf.mxu0
      %v3478 = vadd.f32 %v3449, %v3477
      %3479 = vmatmul.f32.gmra.mxu0 %v3237
      %v3480 = vpop.f32.mrf.mxu0
      %v3481 = vadd.f32 %v3452, %v3480
      %3482 = vmatmul.f32.gmra.mxu0 %v3242
      %v3483 = vpop.f32.mrf.mxu0
      %v3484 = vadd.f32 %v3455, %v3483
      %3485 = vmatmul.f32.gmra.mxu0 %v3247
      %v3486 = vpop.f32.mrf.mxu0
      %v3487 = vadd.f32 %v3458, %v3486
      %3488 = vdwg.mxu0
      %3489 = vmatpush.msra.mxu0 %v3345
      %3490 = vmatpush.msra.mxu0 %v3343
      %3491 = vmatpush.msra.mxu0 %v3341
      %3492 = vmatpush.msra.mxu0 %v3339
      %3493 = vmatpush.msra.mxu0 %v3337
      %3494 = vmatpush.msra.mxu0 %v3335
      %3495 = vmatpush.msra.mxu0 %v3333
      %3496 = vmatpush.msra.mxu0 %v3331
      %3497 = vmatpush.msra.mxu0 %v3329
      %3498 = vmatpush.msra.mxu0 %v3327
      %3499 = vmatpush.msra.mxu0 %v3325
      %3500 = vmatpush.msra.mxu0 %v3323
      %3501 = vmatpush.msra.mxu0 %v3321
      %3502 = vmatpush.msra.mxu0 %v3319
      %3503 = vmatpush.msra.mxu0 %v3317
      %3504 = vmatpush.msra.mxu0 %v3315
      %3505 = vmatmul.f32.gmra.mxu0 %v3233
      %v3506 = vpop.f32.mrf.mxu0
      %v3507 = vadd.f32 %v3478, %v3506
      %3508 = vmatmul.f32.gmra.mxu0 %v3238
      %v3509 = vpop.f32.mrf.mxu0
      %v3510 = vadd.f32 %v3481, %v3509
      %3511 = vmatmul.f32.gmra.mxu0 %v3243
      %v3512 = vpop.f32.mrf.mxu0
      %v3513 = vadd.f32 %v3484, %v3512
      %3514 = vmatmul.f32.gmra.mxu0 %v3248
      %v3515 = vpop.f32.mrf.mxu0
      %v3516 = vadd.f32 %v3487, %v3515
      %3517 = vdwg.mxu0
      %3518 = vmatpush.msra.mxu0 %v3377
      %3519 = vmatpush.msra.mxu0 %v3375
      %3520 = vmatpush.msra.mxu0 %v3373
      %3521 = vmatpush.msra.mxu0 %v3371
      %3522 = vmatpush.msra.mxu0 %v3369
      %3523 = vmatpush.msra.mxu0 %v3367
      %3524 = vmatpush.msra.mxu0 %v3365
      %3525 = vmatpush.msra.mxu0 %v3363
      %3526 = vmatpush.msra.mxu0 %v3361
      %3527 = vmatpush.msra.mxu0 %v3359
      %3528 = vmatpush.msra.mxu0 %v3357
      %3529 = vmatpush.msra.mxu0 %v3355
      %3530 = vmatpush.msra.mxu0 %v3353
      %3531 = vmatpush.msra.mxu0 %v3351
      %3532 = vmatpush.msra.mxu0 %v3349
      %3533 = vmatpush.msra.mxu0 %v3347
      %3534 = vmatmul.f32.gmra.mxu0 %v3234
      %v3535 = vpop.f32.mrf.mxu0
      %v3536 = vadd.f32 %v3507, %v3535
      %3537 = vmatmul.f32.gmra.mxu0 %v3239
      %v3538 = vpop.f32.mrf.mxu0
      %v3539 = vadd.f32 %v3510, %v3538
      %3540 = vmatmul.f32.gmra.mxu0 %v3244
      %v3541 = vpop.f32.mrf.mxu0
      %v3542 = vadd.f32 %v3513, %v3541
      %3543 = vmatmul.f32.gmra.mxu0 %v3249
      %v3544 = vpop.f32.mrf.mxu0
      %v3545 = vadd.f32 %v3516, %v3544
      %3546 = vdwg.mxu0
      %3547 = vmatpush.msra.mxu0 0.0
      %3548 = vmatpush.msra.mxu0 0.0
      %3549 = vmatpush.msra.mxu0 0.0
      %3550 = vmatpush.msra.mxu0 0.0
      %3551 = vmatpush.msra.mxu0 0.0
      %3552 = vmatpush.msra.mxu0 0.0
      %3553 = vmatpush.msra.mxu0 0.0
      %3554 = vmatpush.msra.mxu0 0.0
      %3555 = vmatpush.msra.mxu0 %v3393
      %3556 = vmatpush.msra.mxu0 %v3391
      %3557 = vmatpush.msra.mxu0 %v3389
      %3558 = vmatpush.msra.mxu0 %v3387
      %3559 = vmatpush.msra.mxu0 %v3385
      %3560 = vmatpush.msra.mxu0 %v3383
      %3561 = vmatpush.msra.mxu0 %v3381
      %3562 = vmatpush.msra.mxu0 %v3379
      %3563 = vmatmul.f32.gmra.mxu0 %v3420
      %v3564 = vpop.f32.mrf.mxu0
      %v3565 = vadd.f32 %v3536, %v3564
      %3566 = vmatmul.f32.gmra.mxu0 %v3423
      %v3567 = vpop.f32.mrf.mxu0
      %v3568 = vadd.f32 %v3539, %v3567
      %3569 = vmatmul.f32.gmra.mxu0 %v3426
      %v3570 = vpop.f32.mrf.mxu0
      %v3571 = vadd.f32 %v3542, %v3570
      %3572 = vmatmul.f32.gmra.mxu0 %v3429
      %v3573 = vpop.f32.mrf.mxu0
      %v3574 = vadd.f32 %v3545, %v3573
      %3575 = vdwg.mxu0
      %3576 = vmatpush.msra.mxu0 %v3282
      %3577 = vmatpush.msra.mxu0 %v3280
      %3578 = vmatpush.msra.mxu0 %v3278
      %3579 = vmatpush.msra.mxu0 %v3276
      %3580 = vmatpush.msra.mxu0 %v3274
      %3581 = vmatpush.msra.mxu0 %v3272
      %3582 = vmatpush.msra.mxu0 %v3270
      %3583 = vmatpush.msra.mxu0 %v3268
      %3584 = vmatpush.msra.mxu0 %v3266
      %3585 = vmatpush.msra.mxu0 %v3264
      %3586 = vmatpush.msra.mxu0 %v3262
      %3587 = vmatpush.msra.mxu0 %v3260
      %3588 = vmatpush.msra.mxu0 %v3258
      %3589 = vmatpush.msra.mxu0 %v3256
      %3590 = vmatpush.msra.mxu0 %v3254
      %3591 = vmatpush.msra.mxu0 %v3252
      %3592 = vmatmul.f32.gmra.mxu0 %v3231
      %v3593 = vpop.f32.mrf.mxu0
      %v3594 = vadd.f32 %v3402, %v3593
      %3595 = vmatmul.f32.gmra.mxu0 %v3236
      %v3596 = vpop.f32.mrf.mxu0
      %v3597 = vadd.f32 %v3407, %v3596
      %3598 = vmatmul.f32.gmra.mxu0 %v3241
      %v3599 = vpop.f32.mrf.mxu0
      %v3600 = vadd.f32 %v3412, %v3599
      %3601 = vmatmul.f32.gmra.mxu0 %v3246
      %v3602 = vpop.f32.mrf.mxu0
      %v3603 = vadd.f32 %v3417, %v3602
      %3604 = vdwg.mxu0
      %3605 = vmatpush.msra.mxu0 %v3314
      %3606 = vmatpush.msra.mxu0 %v3312
      %3607 = vmatpush.msra.mxu0 %v3310
      %3608 = vmatpush.msra.mxu0 %v3308
      %3609 = vmatpush.msra.mxu0 %v3306
      %3610 = vmatpush.msra.mxu0 %v3304
      %3611 = vmatpush.msra.mxu0 %v3302
      %3612 = vmatpush.msra.mxu0 %v3300
      %3613 = vmatpush.msra.mxu0 %v3298
      %3614 = vmatpush.msra.mxu0 %v3296
      %3615 = vmatpush.msra.mxu0 %v3294
      %3616 = vmatpush.msra.mxu0 %v3292
      %3617 = vmatpush.msra.mxu0 %v3290
      %3618 = vmatpush.msra.mxu0 %v3288
      %3619 = vmatpush.msra.mxu0 %v3286
      %3620 = vmatpush.msra.mxu0 %v3284
      %3621 = vmatmul.f32.gmra.mxu0 %v3232
      %v3622 = vpop.f32.mrf.mxu0
      %v3623 = vadd.f32 %v3594, %v3622
      %3624 = vmatmul.f32.gmra.mxu0 %v3237
      %v3625 = vpop.f32.mrf.mxu0
      %v3626 = vadd.f32 %v3597, %v3625
      %3627 = vmatmul.f32.gmra.mxu0 %v3242
      %v3628 = vpop.f32.mrf.mxu0
      %v3629 = vadd.f32 %v3600, %v3628
      %3630 = vmatmul.f32.gmra.mxu0 %v3247
      %v3631 = vpop.f32.mrf.mxu0
      %v3632 = vadd.f32 %v3603, %v3631
      %3633 = vdwg.mxu0
      %3634 = vmatpush.msra.mxu0 %v3346
      %3635 = vmatpush.msra.mxu0 %v3344
      %3636 = vmatpush.msra.mxu0 %v3342
      %3637 = vmatpush.msra.mxu0 %v3340
      %3638 = vmatpush.msra.mxu0 %v3338
      %3639 = vmatpush.msra.mxu0 %v3336
      %3640 = vmatpush.msra.mxu0 %v3334
      %3641 = vmatpush.msra.mxu0 %v3332
      %3642 = vmatpush.msra.mxu0 %v3330
      %3643 = vmatpush.msra.mxu0 %v3328
      %3644 = vmatpush.msra.mxu0 %v3326
      %3645 = vmatpush.msra.mxu0 %v3324
      %3646 = vmatpush.msra.mxu0 %v3322
      %3647 = vmatpush.msra.mxu0 %v3320
      %3648 = vmatpush.msra.mxu0 %v3318
      %3649 = vmatpush.msra.mxu0 %v3316
      %3650 = vmatmul.f32.gmra.mxu0 %v3233
      %v3651 = vpop.f32.mrf.mxu0
      %v3652 = vadd.f32 %v3623, %v3651
      %3653 = vmatmul.f32.gmra.mxu0 %v3238
      %v3654 = vpop.f32.mrf.mxu0
      %v3655 = vadd.f32 %v3626, %v3654
      %3656 = vmatmul.f32.gmra.mxu0 %v3243
      %v3657 = vpop.f32.mrf.mxu0
      %v3658 = vadd.f32 %v3629, %v3657
      %3659 = vmatmul.f32.gmra.mxu0 %v3248
      %v3660 = vpop.f32.mrf.mxu0
      %v3661 = vadd.f32 %v3632, %v3660
      %3662 = vdwg.mxu0
      %3663 = vmatpush.msra.mxu0 %v3378
      %3664 = vmatpush.msra.mxu0 %v3376
      %3665 = vmatpush.msra.mxu0 %v3374
      %3666 = vmatpush.msra.mxu0 %v3372
      %3667 = vmatpush.msra.mxu0 %v3370
      %3668 = vmatpush.msra.mxu0 %v3368
      %3669 = vmatpush.msra.mxu0 %v3366
      %3670 = vmatpush.msra.mxu0 %v3364
      %3671 = vmatpush.msra.mxu0 %v3362
      %3672 = vmatpush.msra.mxu0 %v3360
      %3673 = vmatpush.msra.mxu0 %v3358
      %3674 = vmatpush.msra.mxu0 %v3356
      %3675 = vmatpush.msra.mxu0 %v3354
      %3676 = vmatpush.msra.mxu0 %v3352
      %3677 = vmatpush.msra.mxu0 %v3350
      %3678 = vmatpush.msra.mxu0 %v3348
      %3679 = vmatmul.f32.gmra.mxu0 %v3234
      %v3680 = vpop.f32.mrf.mxu0
      %v3681 = vadd.f32 %v3652, %v3680
      %3682 = vmatmul.f32.gmra.mxu0 %v3239
      %v3683 = vpop.f32.mrf.mxu0
      %v3684 = vadd.f32 %v3655, %v3683
      %3685 = vmatmul.f32.gmra.mxu0 %v3244
      %v3686 = vpop.f32.mrf.mxu0
      %v3687 = vadd.f32 %v3658, %v3686
      %3688 = vmatmul.f32.gmra.mxu0 %v3249
      %v3689 = vpop.f32.mrf.mxu0
      %v3690 = vadd.f32 %v3661, %v3689
      %3691 = vdwg.mxu0
      %3692 = vmatpush.msra.mxu0 0.0
      %3693 = vmatpush.msra.mxu0 0.0
      %3694 = vmatpush.msra.mxu0 0.0
      %3695 = vmatpush.msra.mxu0 0.0
      %3696 = vmatpush.msra.mxu0 0.0
      %3697 = vmatpush.msra.mxu0 0.0
      %3698 = vmatpush.msra.mxu0 0.0
      %3699 = vmatpush.msra.mxu0 0.0
      %3700 = vmatpush.msra.mxu0 %v3394
      %3701 = vmatpush.msra.mxu0 %v3392
      %3702 = vmatpush.msra.mxu0 %v3390
      %3703 = vmatpush.msra.mxu0 %v3388
      %3704 = vmatpush.msra.mxu0 %v3386
      %3705 = vmatpush.msra.mxu0 %v3384
      %3706 = vmatpush.msra.mxu0 %v3382
      %3707 = vmatpush.msra.mxu0 %v3380
      %3708 = vmatmul.f32.gmra.mxu0 %v3420
      %v3709 = vpop.f32.mrf.mxu0
      %v3710 = vadd.f32 %v3681, %v3709
      %3711 = vmatmul.f32.gmra.mxu0 %v3423
      %v3712 = vpop.f32.mrf.mxu0
      %v3713 = vadd.f32 %v3684, %v3712
      %3714 = vmatmul.f32.gmra.mxu0 %v3426
      %v3715 = vpop.f32.mrf.mxu0
      %v3716 = vadd.f32 %v3687, %v3715
      %3717 = vmatmul.f32.gmra.mxu0 %v3429
      %v3718 = vpop.f32.mrf.mxu0
      %v3719 = vadd.f32 %v3690, %v3718
      %3720 = vdwg.mxu0
      %v3721 = vmax.f32 %v3565, 0.0
      %v3722 = vmax.f32 %v3710, 0.0
      %v3723 = vmax.f32 %v3568, 0.0
      %v3724 = vmax.f32 %v3713, 0.0
      %v3725 = vmax.f32 %v3571, 0.0
      %v3726 = vmax.f32 %v3716, 0.0
      %v3727 = vmax.f32 %v3574, 0.0
      %v3728 = vmax.f32 %v3719, 0.0
      %3729 = vrot.lane.b32.xlu0 %v3721, 17
      %v3730 = vpop.permute.xlu0 %3729
      %3731 = vrot.lane.b32.xlu0 %v3723, 17
      %v3732 = vpop.permute.xlu0 %3731
      %3733 = vrot.lane.b32.xlu0 %v3725, 17
      %v3734 = vpop.permute.xlu0 %3733
      %3735 = vrot.lane.b32.xlu0 %v3727, 17
      %v3736 = vpop.permute.xlu0 %3735
      %3737 = vrot.lane.b32.xlu0 %v3722, 17
      %v3738 = vpop.permute.xlu0 %3737
      %3739 = vrot.lane.b32.xlu0 %v3724, 17
      %v3740 = vpop.permute.xlu0 %3739
      %3741 = vrot.lane.b32.xlu0 %v3726, 17
      %v3742 = vpop.permute.xlu0 %3741
      %3743 = vrot.lane.b32.xlu0 %v3728, 17
      %v3744 = vpop.permute.xlu0 %3743
      %v3745 = vsel %vm516, %v3730, %v3738
      %v3746 = vsel %vm516, %v3732, %v3740
      %v3747 = vsel %vm516, %v3734, %v3742
      %v3748 = vsel %vm516, %v3736, %v3744
      %v3749 = vsel %vm516, %v3738, %v3730
      %v3750 = vsel %vm516, %v3740, %v3732
      %v3751 = vsel %vm516, %v3742, %v3734
      %v3752 = vsel %vm516, %v3744, %v3736
      %v3753 = vld [vmem:[%s519] ss:$8 sm:$0x3]
      %v3755 = vperm.slane %v3753, 0
      %v3756 = vperm.slane %v3753, 1
      %v3759 = vmul.f32 %v3749, %v3755
      %v3760 = vmul.f32 %v3745, %v3756
      %v3761 = vmul.f32 %v3750, %v3755
      %v3762 = vmul.f32 %v3746, %v3756
      %v3763 = vmul.f32 %v3751, %v3755
      %v3764 = vmul.f32 %v3747, %v3756
      %v3765 = vmul.f32 %v3752, %v3755
      %v3766 = vmul.f32 %v3748, %v3756
      %3767 = vst [vmem:[#allocation2] sm:$0xff] %v3759
      %3768 = vst [vmem:[#allocation2 + $0x8] sm:$0xff] %v3760
      %3769 = vst [vmem:[#allocation2 + $0x10] sm:$0xff] %v3761
      %3770 = vst [vmem:[#allocation2 + $0x18] sm:$0xff] %v3762
      %3771 = vst [vmem:[#allocation2 + $0x20] sm:$0xff] %v3763
      %3772 = vst [vmem:[#allocation2 + $0x28] sm:$0xff] %v3764
      %3773 = vst [vmem:[#allocation2 + $0x30] sm:$0xff] %v3765
      %3774 = vst [vmem:[#allocation2 + $0x38] sm:$0xff] %v3766
      %3775 = vrot.lane.b32.xlu0 %v3721, 16
      %v3776 = vpop.permute.xlu0 %3775
      %3777 = vrot.lane.b32.xlu0 %v3723, 16
      %v3778 = vpop.permute.xlu0 %3777
      %3779 = vrot.lane.b32.xlu0 %v3725, 16
      %v3780 = vpop.permute.xlu0 %3779
      %3781 = vrot.lane.b32.xlu0 %v3727, 16
      %v3782 = vpop.permute.xlu0 %3781
      %3783 = vrot.lane.b32.xlu0 %v3722, 16
      %v3784 = vpop.permute.xlu0 %3783
      %3785 = vrot.lane.b32.xlu0 %v3724, 16
      %v3786 = vpop.permute.xlu0 %3785
      %3787 = vrot.lane.b32.xlu0 %v3726, 16
      %v3788 = vpop.permute.xlu0 %3787
      %3789 = vrot.lane.b32.xlu0 %v3728, 16
      %v3790 = vpop.permute.xlu0 %3789
      %v3791 = vsel %vm540, %v3776, %v3784
      %v3792 = vsel %vm540, %v3778, %v3786
      %v3793 = vsel %vm540, %v3780, %v3788
      %v3794 = vsel %vm540, %v3782, %v3790
      %v3795 = vsel %vm540, %v3784, %v3776
      %v3796 = vsel %vm540, %v3786, %v3778
      %v3797 = vsel %vm540, %v3788, %v3780
      %v3798 = vsel %vm540, %v3790, %v3782
      %v3799 = vld [vmem:[%s543] ss:$8 sm:$0x3]
      %v3801 = vperm.slane %v3799, 0
      %v3802 = vperm.slane %v3799, 1
      %v3805 = vmul.f32 %v3795, %v3801
      %v3806 = vmul.f32 %v3791, %v3802
      %v3807 = vmul.f32 %v3796, %v3801
      %v3808 = vmul.f32 %v3792, %v3802
      %v3809 = vmul.f32 %v3797, %v3801
      %v3810 = vmul.f32 %v3793, %v3802
      %v3811 = vmul.f32 %v3798, %v3801
      %v3812 = vmul.f32 %v3794, %v3802
      %3813 = vst [vmem:[#allocation2 + $0x40] sm:$0xff] %v3805
      %3814 = vst [vmem:[#allocation2 + $0x48] sm:$0xff] %v3806
      %3815 = vst [vmem:[#allocation2 + $0x50] sm:$0xff] %v3807
      %3816 = vst [vmem:[#allocation2 + $0x58] sm:$0xff] %v3808
      %3817 = vst [vmem:[#allocation2 + $0x60] sm:$0xff] %v3809
      %3818 = vst [vmem:[#allocation2 + $0x68] sm:$0xff] %v3810
      %3819 = vst [vmem:[#allocation2 + $0x70] sm:$0xff] %v3811
      %3820 = vst [vmem:[#allocation2 + $0x78] sm:$0xff] %v3812
      %3821 = vrot.lane.b32.xlu0 %v3721, 15
      %v3822 = vpop.permute.xlu0 %3821
      %3823 = vrot.lane.b32.xlu0 %v3723, 15
      %v3824 = vpop.permute.xlu0 %3823
      %3825 = vrot.lane.b32.xlu0 %v3725, 15
      %v3826 = vpop.permute.xlu0 %3825
      %3827 = vrot.lane.b32.xlu0 %v3727, 15
      %v3828 = vpop.permute.xlu0 %3827
      %3829 = vrot.lane.b32.xlu0 %v3722, 15
      %v3830 = vpop.permute.xlu0 %3829
      %3831 = vrot.lane.b32.xlu0 %v3724, 15
      %v3832 = vpop.permute.xlu0 %3831
      %3833 = vrot.lane.b32.xlu0 %v3726, 15
      %v3834 = vpop.permute.xlu0 %3833
      %3835 = vrot.lane.b32.xlu0 %v3728, 15
      %v3836 = vpop.permute.xlu0 %3835
      %v3837 = vsel %vm564, %v3822, %v3830
      %v3838 = vsel %vm564, %v3824, %v3832
      %v3839 = vsel %vm564, %v3826, %v3834
      %v3840 = vsel %vm564, %v3828, %v3836
      %v3841 = vsel %vm564, %v3830, %v3822
      %v3842 = vsel %vm564, %v3832, %v3824
      %v3843 = vsel %vm564, %v3834, %v3826
      %v3844 = vsel %vm564, %v3836, %v3828
      %v3845 = vld [vmem:[%s567] ss:$8 sm:$0x3]
      %v3847 = vperm.slane %v3845, 0
      %v3848 = vperm.slane %v3845, 1
      %v3851 = vmul.f32 %v3841, %v3847
      %v3852 = vmul.f32 %v3837, %v3848
      %v3853 = vmul.f32 %v3842, %v3847
      %v3854 = vmul.f32 %v3838, %v3848
      %v3855 = vmul.f32 %v3843, %v3847
      %v3856 = vmul.f32 %v3839, %v3848
      %v3857 = vmul.f32 %v3844, %v3847
      %v3858 = vmul.f32 %v3840, %v3848
      %3859 = vst [vmem:[#allocation2 + $0x80] sm:$0xff] %v3851
      %3860 = vst [vmem:[#allocation2 + $0x88] sm:$0xff] %v3852
      %3861 = vst [vmem:[#allocation2 + $0x90] sm:$0xff] %v3853
      %3862 = vst [vmem:[#allocation2 + $0x98] sm:$0xff] %v3854
      %3863 = vst [vmem:[#allocation2 + $0xa0] sm:$0xff] %v3855
      %3864 = vst [vmem:[#allocation2 + $0xa8] sm:$0xff] %v3856
      %3865 = vst [vmem:[#allocation2 + $0xb0] sm:$0xff] %v3857
      %3866 = vst [vmem:[#allocation2 + $0xb8] sm:$0xff] %v3858
      %3867 = vrot.lane.b32.xlu0 %v3721, 1
      %v3868 = vpop.permute.xlu0 %3867
      %3869 = vrot.lane.b32.xlu0 %v3723, 1
      %v3870 = vpop.permute.xlu0 %3869
      %3871 = vrot.lane.b32.xlu0 %v3725, 1
      %v3872 = vpop.permute.xlu0 %3871
      %3873 = vrot.lane.b32.xlu0 %v3727, 1
      %v3874 = vpop.permute.xlu0 %3873
      %3875 = vrot.lane.b32.xlu0 %v3722, 1
      %v3876 = vpop.permute.xlu0 %3875
      %3877 = vrot.lane.b32.xlu0 %v3724, 1
      %v3878 = vpop.permute.xlu0 %3877
      %3879 = vrot.lane.b32.xlu0 %v3726, 1
      %v3880 = vpop.permute.xlu0 %3879
      %3881 = vrot.lane.b32.xlu0 %v3728, 1
      %v3882 = vpop.permute.xlu0 %3881
      %v3883 = vsel %vm636, %v3868, %v3876
      %v3884 = vsel %vm636, %v3870, %v3878
      %v3885 = vsel %vm636, %v3872, %v3880
      %v3886 = vsel %vm636, %v3874, %v3882
      %v3887 = vsel %vm636, %v3876, %v3868
      %v3888 = vsel %vm636, %v3878, %v3870
      %v3889 = vsel %vm636, %v3880, %v3872
      %v3890 = vsel %vm636, %v3882, %v3874
      %v3891 = vld [vmem:[%s639] ss:$8 sm:$0x3]
      %v3893 = vperm.slane %v3891, 0
      %v3894 = vperm.slane %v3891, 1
      %v3897 = vmul.f32 %v3887, %v3893
      %v3898 = vmul.f32 %v3883, %v3894
      %v3899 = vmul.f32 %v3888, %v3893
      %v3900 = vmul.f32 %v3884, %v3894
      %v3901 = vmul.f32 %v3889, %v3893
      %v3902 = vmul.f32 %v3885, %v3894
      %v3903 = vmul.f32 %v3890, %v3893
      %v3904 = vmul.f32 %v3886, %v3894
      %3905 = vst [vmem:[#allocation2 + $0xc0] sm:$0xff] %v3897
      %3906 = vst [vmem:[#allocation2 + $0xc8] sm:$0xff] %v3898
      %3907 = vst [vmem:[#allocation2 + $0xd0] sm:$0xff] %v3899
      %3908 = vst [vmem:[#allocation2 + $0xd8] sm:$0xff] %v3900
      %3909 = vst [vmem:[#allocation2 + $0xe0] sm:$0xff] %v3901
      %3910 = vst [vmem:[#allocation2 + $0xe8] sm:$0xff] %v3902
      %3911 = vst [vmem:[#allocation2 + $0xf0] sm:$0xff] %v3903
      %3912 = vst [vmem:[#allocation2 + $0xf8] sm:$0xff] %v3904
      %3913 = vst [vmem:[#allocation2 + $0x100] sm:$0xff] %v3721
      %3914 = vst [vmem:[#allocation2 + $0x108] sm:$0xff] %v3722
      %3915 = vst [vmem:[#allocation2 + $0x110] sm:$0xff] %v3723
      %3916 = vst [vmem:[#allocation2 + $0x118] sm:$0xff] %v3724
      %3917 = vst [vmem:[#allocation2 + $0x120] sm:$0xff] %v3725
      %3918 = vst [vmem:[#allocation2 + $0x128] sm:$0xff] %v3726
      %3919 = vst [vmem:[#allocation2 + $0x130] sm:$0xff] %v3727
      %3920 = vst [vmem:[#allocation2 + $0x138] sm:$0xff] %v3728
      %3921 = vrot.lane.b32.xlu0 %v3721, 127
      %v3922 = vpop.permute.xlu0 %3921
      %3923 = vrot.lane.b32.xlu0 %v3723, 127
      %v3924 = vpop.permute.xlu0 %3923
      %3925 = vrot.lane.b32.xlu0 %v3725, 127
      %v3926 = vpop.permute.xlu0 %3925
      %3927 = vrot.lane.b32.xlu0 %v3727, 127
      %v3928 = vpop.permute.xlu0 %3927
      %3929 = vrot.lane.b32.xlu0 %v3722, 127
      %v3930 = vpop.permute.xlu0 %3929
      %3931 = vrot.lane.b32.xlu0 %v3724, 127
      %v3932 = vpop.permute.xlu0 %3931
      %3933 = vrot.lane.b32.xlu0 %v3726, 127
      %v3934 = vpop.permute.xlu0 %3933
      %3935 = vrot.lane.b32.xlu0 %v3728, 127
      %v3936 = vpop.permute.xlu0 %3935
      %v3937 = vsel %vm663, %v3922, %v3930
      %v3938 = vsel %vm663, %v3924, %v3932
      %v3939 = vsel %vm663, %v3926, %v3934
      %v3940 = vsel %vm663, %v3928, %v3936
      %v3941 = vsel %vm663, %v3930, %v3922
      %v3942 = vsel %vm663, %v3932, %v3924
      %v3943 = vsel %vm663, %v3934, %v3926
      %v3944 = vsel %vm663, %v3936, %v3928
      %v3945 = vld [vmem:[%s666] ss:$8 sm:$0x3]
      %v3947 = vperm.slane %v3945, 0
      %v3948 = vperm.slane %v3945, 1
      %v3951 = vmul.f32 %v3937, %v3947
      %v3952 = vmul.f32 %v3941, %v3948
      %v3953 = vmul.f32 %v3938, %v3947
      %v3954 = vmul.f32 %v3942, %v3948
      %v3955 = vmul.f32 %v3939, %v3947
      %v3956 = vmul.f32 %v3943, %v3948
      %v3957 = vmul.f32 %v3940, %v3947
      %v3958 = vmul.f32 %v3944, %v3948
      %3959 = vst [vmem:[#allocation2 + $0x140] sm:$0xff] %v3951
      %3960 = vst [vmem:[#allocation2 + $0x148] sm:$0xff] %v3952
      %3961 = vst [vmem:[#allocation2 + $0x150] sm:$0xff] %v3953
      %3962 = vst [vmem:[#allocation2 + $0x158] sm:$0xff] %v3954
      %3963 = vst [vmem:[#allocation2 + $0x160] sm:$0xff] %v3955
      %3964 = vst [vmem:[#allocation2 + $0x168] sm:$0xff] %v3956
      %3965 = vst [vmem:[#allocation2 + $0x170] sm:$0xff] %v3957
      %3966 = vst [vmem:[#allocation2 + $0x178] sm:$0xff] %v3958
      %3967 = vrot.lane.b32.xlu0 %v3721, 113
      %v3968 = vpop.permute.xlu0 %3967
      %3969 = vrot.lane.b32.xlu0 %v3723, 113
      %v3970 = vpop.permute.xlu0 %3969
      %3971 = vrot.lane.b32.xlu0 %v3725, 113
      %v3972 = vpop.permute.xlu0 %3971
      %3973 = vrot.lane.b32.xlu0 %v3727, 113
      %v3974 = vpop.permute.xlu0 %3973
      %3975 = vrot.lane.b32.xlu0 %v3722, 113
      %v3976 = vpop.permute.xlu0 %3975
      %3977 = vrot.lane.b32.xlu0 %v3724, 113
      %v3978 = vpop.permute.xlu0 %3977
      %3979 = vrot.lane.b32.xlu0 %v3726, 113
      %v3980 = vpop.permute.xlu0 %3979
      %3981 = vrot.lane.b32.xlu0 %v3728, 113
      %v3982 = vpop.permute.xlu0 %3981
      %v3983 = vsel %vm735, %v3968, %v3976
      %v3984 = vsel %vm735, %v3970, %v3978
      %v3985 = vsel %vm735, %v3972, %v3980
      %v3986 = vsel %vm735, %v3974, %v3982
      %v3987 = vsel %vm735, %v3976, %v3968
      %v3988 = vsel %vm735, %v3978, %v3970
      %v3989 = vsel %vm735, %v3980, %v3972
      %v3990 = vsel %vm735, %v3982, %v3974
      %v3991 = vld [vmem:[%s738] ss:$8 sm:$0x3]
      %v3993 = vperm.slane %v3991, 0
      %v3994 = vperm.slane %v3991, 1
      %v3997 = vmul.f32 %v3983, %v3993
      %v3998 = vmul.f32 %v3987, %v3994
      %v3999 = vmul.f32 %v3984, %v3993
      %v4000 = vmul.f32 %v3988, %v3994
      %v4001 = vmul.f32 %v3985, %v3993
      %v4002 = vmul.f32 %v3989, %v3994
      %v4003 = vmul.f32 %v3986, %v3993
      %v4004 = vmul.f32 %v3990, %v3994
      %4005 = vst [vmem:[#allocation2 + $0x180] sm:$0xff] %v3997
      %4006 = vst [vmem:[#allocation2 + $0x188] sm:$0xff] %v3998
      %4007 = vst [vmem:[#allocation2 + $0x190] sm:$0xff] %v3999
      %4008 = vst [vmem:[#allocation2 + $0x198] sm:$0xff] %v4000
      %4009 = vst [vmem:[#allocation2 + $0x1a0] sm:$0xff] %v4001
      %4010 = vst [vmem:[#allocation2 + $0x1a8] sm:$0xff] %v4002
      %4011 = vst [vmem:[#allocation2 + $0x1b0] sm:$0xff] %v4003
      %4012 = vst [vmem:[#allocation2 + $0x1b8] sm:$0xff] %v4004
      %4013 = vrot.lane.b32.xlu0 %v3721, 112
      %v4014 = vpop.permute.xlu0 %4013
      %4015 = vrot.lane.b32.xlu0 %v3723, 112
      %v4016 = vpop.permute.xlu0 %4015
      %4017 = vrot.lane.b32.xlu0 %v3725, 112
      %v4018 = vpop.permute.xlu0 %4017
      %4019 = vrot.lane.b32.xlu0 %v3727, 112
      %v4020 = vpop.permute.xlu0 %4019
      %4021 = vrot.lane.b32.xlu0 %v3722, 112
      %v4022 = vpop.permute.xlu0 %4021
      %4023 = vrot.lane.b32.xlu0 %v3724, 112
      %v4024 = vpop.permute.xlu0 %4023
      %4025 = vrot.lane.b32.xlu0 %v3726, 112
      %v4026 = vpop.permute.xlu0 %4025
      %4027 = vrot.lane.b32.xlu0 %v3728, 112
      %v4028 = vpop.permute.xlu0 %4027
      %v4029 = vsel %vm759, %v4014, %v4022
      %v4030 = vsel %vm759, %v4016, %v4024
      %v4031 = vsel %vm759, %v4018, %v4026
      %v4032 = vsel %vm759, %v4020, %v4028
      %v4033 = vsel %vm759, %v4022, %v4014
      %v4034 = vsel %vm759, %v4024, %v4016
      %v4035 = vsel %vm759, %v4026, %v4018
      %v4036 = vsel %vm759, %v4028, %v4020
      %v4037 = vld [vmem:[%s762] ss:$8 sm:$0x3]
      %v4039 = vperm.slane %v4037, 0
      %v4040 = vperm.slane %v4037, 1
      %v4043 = vmul.f32 %v4029, %v4039
      %v4044 = vmul.f32 %v4033, %v4040
      %v4045 = vmul.f32 %v4030, %v4039
      %v4046 = vmul.f32 %v4034, %v4040
      %v4047 = vmul.f32 %v4031, %v4039
      %v4048 = vmul.f32 %v4035, %v4040
      %v4049 = vmul.f32 %v4032, %v4039
      %v4050 = vmul.f32 %v4036, %v4040
      %4051 = vst [vmem:[#allocation2 + $0x1c0] sm:$0xff] %v4043
      %4052 = vst [vmem:[#allocation2 + $0x1c8] sm:$0xff] %v4044
      %4053 = vst [vmem:[#allocation2 + $0x1d0] sm:$0xff] %v4045
      %4054 = vst [vmem:[#allocation2 + $0x1d8] sm:$0xff] %v4046
      %4055 = vst [vmem:[#allocation2 + $0x1e0] sm:$0xff] %v4047
      %4056 = vst [vmem:[#allocation2 + $0x1e8] sm:$0xff] %v4048
      %4057 = vst [vmem:[#allocation2 + $0x1f0] sm:$0xff] %v4049
      %4058 = vst [vmem:[#allocation2 + $0x1f8] sm:$0xff] %v4050
      %4059 = vrot.lane.b32.xlu0 %v3721, 111
      %v4060 = vpop.permute.xlu0 %4059
      %4061 = vrot.lane.b32.xlu0 %v3723, 111
      %v4062 = vpop.permute.xlu0 %4061
      %4063 = vrot.lane.b32.xlu0 %v3725, 111
      %v4064 = vpop.permute.xlu0 %4063
      %4065 = vrot.lane.b32.xlu0 %v3727, 111
      %v4066 = vpop.permute.xlu0 %4065
      %4067 = vrot.lane.b32.xlu0 %v3722, 111
      %v4068 = vpop.permute.xlu0 %4067
      %4069 = vrot.lane.b32.xlu0 %v3724, 111
      %v4070 = vpop.permute.xlu0 %4069
      %4071 = vrot.lane.b32.xlu0 %v3726, 111
      %v4072 = vpop.permute.xlu0 %4071
      %4073 = vrot.lane.b32.xlu0 %v3728, 111
      %v4074 = vpop.permute.xlu0 %4073
      %v4075 = vsel %vm783, %v4060, %v4068
      %v4076 = vsel %vm783, %v4062, %v4070
      %v4077 = vsel %vm783, %v4064, %v4072
      %v4078 = vsel %vm783, %v4066, %v4074
      %v4079 = vsel %vm783, %v4068, %v4060
      %v4080 = vsel %vm783, %v4070, %v4062
      %v4081 = vsel %vm783, %v4072, %v4064
      %v4082 = vsel %vm783, %v4074, %v4066
      %v4083 = vld [vmem:[%s786] ss:$8 sm:$0x3]
      %v4085 = vperm.slane %v4083, 0
      %v4086 = vperm.slane %v4083, 1
      %v4089 = vmul.f32 %v4075, %v4085
      %v4090 = vmul.f32 %v4079, %v4086
      %v4091 = vmul.f32 %v4076, %v4085
      %v4092 = vmul.f32 %v4080, %v4086
      %v4093 = vmul.f32 %v4077, %v4085
      %v4094 = vmul.f32 %v4081, %v4086
      %v4095 = vmul.f32 %v4078, %v4085
      %v4096 = vmul.f32 %v4082, %v4086
      %4097 = vst [vmem:[#allocation2 + $0x200] sm:$0xff] %v4089
      %4098 = vst [vmem:[#allocation2 + $0x208] sm:$0xff] %v4090
      %4099 = vst [vmem:[#allocation2 + $0x210] sm:$0xff] %v4091
      %4100 = vst [vmem:[#allocation2 + $0x218] sm:$0xff] %v4092
      %4101 = vst [vmem:[#allocation2 + $0x220] sm:$0xff] %v4093
      %4102 = vst [vmem:[#allocation2 + $0x228] sm:$0xff] %v4094
      %4103 = vst [vmem:[#allocation2 + $0x230] sm:$0xff] %v4095
      %4104 = vst [vmem:[#allocation2 + $0x238] sm:$0xff] %v4096
      %v4105 = vld [vmem:[%s8] sm:$0xff]
      %v4106 = vld [vmem:[%s8 + $0x8] sm:$0xff]
      %v4107 = vld [vmem:[%s8 + $0x10] sm:$0xff]
      %v4108 = vld [vmem:[%s8 + $0x18] sm:$0x1]
      %v4109 = vld [vmem:[%s8 + $0x20] sm:$0x1]
      %v4110 = vld [vmem:[%s8 + $0x28] sm:$0x1]
      %v4111 = vld [vmem:[#allocation2] sm:$0xff]
      %v4112 = vld [vmem:[#allocation2 + $0x8] sm:$0xff]
      %v4113 = vld [vmem:[#allocation2 + $0x10] sm:$0xff]
      %v4114 = vld [vmem:[#allocation2 + $0x18] sm:$0xff]
      %v4115 = vld [vmem:[#allocation2 + $0x20] sm:$0xff]
      %v4116 = vld [vmem:[#allocation2 + $0x28] sm:$0xff]
      %v4117 = vld [vmem:[#allocation2 + $0x30] sm:$0xff]
      %v4118 = vld [vmem:[#allocation2 + $0x38] sm:$0xff]
      %v4119 = vld [vmem:[#allocation2 + $0x40] sm:$0xff]
      %v4120 = vld [vmem:[#allocation2 + $0x48] sm:$0xff]
      %v4121 = vld [vmem:[#allocation2 + $0x50] sm:$0xff]
      %v4122 = vld [vmem:[#allocation2 + $0x58] sm:$0xff]
      %v4123 = vld [vmem:[#allocation2 + $0x60] sm:$0xff]
      %v4124 = vld [vmem:[#allocation2 + $0x68] sm:$0xff]
      %v4125 = vld [vmem:[#allocation2 + $0x70] sm:$0xff]
      %v4126 = vld [vmem:[#allocation2 + $0x78] sm:$0xff]
      %v4127 = vld [vmem:[#allocation2 + $0x80] sm:$0xff]
      %v4128 = vld [vmem:[#allocation2 + $0x88] sm:$0xff]
      %v4129 = vld [vmem:[#allocation2 + $0x90] sm:$0xff]
      %v4130 = vld [vmem:[#allocation2 + $0x98] sm:$0xff]
      %v4131 = vld [vmem:[#allocation2 + $0xa0] sm:$0xff]
      %v4132 = vld [vmem:[#allocation2 + $0xa8] sm:$0xff]
      %v4133 = vld [vmem:[#allocation2 + $0xb0] sm:$0xff]
      %v4134 = vld [vmem:[#allocation2 + $0xb8] sm:$0xff]
      %v4135 = vld [vmem:[#allocation2 + $0xc0] sm:$0xff]
      %v4136 = vld [vmem:[#allocation2 + $0xc8] sm:$0xff]
      %v4137 = vld [vmem:[#allocation2 + $0xd0] sm:$0xff]
      %v4138 = vld [vmem:[#allocation2 + $0xd8] sm:$0xff]
      %v4139 = vld [vmem:[#allocation2 + $0xe0] sm:$0xff]
      %v4140 = vld [vmem:[#allocation2 + $0xe8] sm:$0xff]
      %v4141 = vld [vmem:[#allocation2 + $0xf0] sm:$0xff]
      %v4142 = vld [vmem:[#allocation2 + $0xf8] sm:$0xff]
      %v4143 = vld [vmem:[#allocation2 + $0x100] sm:$0xff]
      %v4144 = vld [vmem:[#allocation2 + $0x108] sm:$0xff]
      %v4145 = vld [vmem:[#allocation2 + $0x110] sm:$0xff]
      %v4146 = vld [vmem:[#allocation2 + $0x118] sm:$0xff]
      %v4147 = vld [vmem:[#allocation2 + $0x120] sm:$0xff]
      %v4148 = vld [vmem:[#allocation2 + $0x128] sm:$0xff]
      %v4149 = vld [vmem:[#allocation2 + $0x130] sm:$0xff]
      %v4150 = vld [vmem:[#allocation2 + $0x138] sm:$0xff]
      %v4151 = vld [vmem:[#allocation2 + $0x140] sm:$0xff]
      %v4152 = vld [vmem:[#allocation2 + $0x148] sm:$0xff]
      %v4153 = vld [vmem:[#allocation2 + $0x150] sm:$0xff]
      %v4154 = vld [vmem:[#allocation2 + $0x158] sm:$0xff]
      %v4155 = vld [vmem:[#allocation2 + $0x160] sm:$0xff]
      %v4156 = vld [vmem:[#allocation2 + $0x168] sm:$0xff]
      %v4157 = vld [vmem:[#allocation2 + $0x170] sm:$0xff]
      %v4158 = vld [vmem:[#allocation2 + $0x178] sm:$0xff]
      %v4159 = vld [vmem:[#allocation2 + $0x180] sm:$0xff]
      %v4160 = vld [vmem:[#allocation2 + $0x188] sm:$0xff]
      %v4161 = vld [vmem:[#allocation2 + $0x190] sm:$0xff]
      %v4162 = vld [vmem:[#allocation2 + $0x198] sm:$0xff]
      %v4163 = vld [vmem:[#allocation2 + $0x1a0] sm:$0xff]
      %v4164 = vld [vmem:[#allocation2 + $0x1a8] sm:$0xff]
      %v4165 = vld [vmem:[#allocation2 + $0x1b0] sm:$0xff]
      %v4166 = vld [vmem:[#allocation2 + $0x1b8] sm:$0xff]
      %v4167 = vld [vmem:[#allocation2 + $0x1c0] sm:$0xff]
      %v4168 = vld [vmem:[#allocation2 + $0x1c8] sm:$0xff]
      %v4169 = vld [vmem:[#allocation2 + $0x1d0] sm:$0xff]
      %v4170 = vld [vmem:[#allocation2 + $0x1d8] sm:$0xff]
      %v4171 = vld [vmem:[#allocation2 + $0x1e0] sm:$0xff]
      %v4172 = vld [vmem:[#allocation2 + $0x1e8] sm:$0xff]
      %v4173 = vld [vmem:[#allocation2 + $0x1f0] sm:$0xff]
      %v4174 = vld [vmem:[#allocation2 + $0x1f8] sm:$0xff]
      %v4175 = vld [vmem:[#allocation2 + $0x200] sm:$0xff]
      %v4176 = vld [vmem:[#allocation2 + $0x208] sm:$0xff]
      %v4177 = vld [vmem:[#allocation2 + $0x210] sm:$0xff]
      %v4178 = vld [vmem:[#allocation2 + $0x218] sm:$0xff]
      %v4179 = vld [vmem:[#allocation2 + $0x220] sm:$0xff]
      %v4180 = vld [vmem:[#allocation2 + $0x228] sm:$0xff]
      %v4181 = vld [vmem:[#allocation2 + $0x230] sm:$0xff]
      %v4182 = vld [vmem:[#allocation2 + $0x238] sm:$0xff]
      %v4183 = vld [vmem:[%s9] sm:$0xff]
      %v4184 = vld [vmem:[%s9 + $0x8] sm:$0x1]
      %4186 = vset.pattern.permute.xlu0 0
      %4187 = vperm.xlu0 %4186, %v4183
      %v4188 = vpop.permute.xlu0 %4187
      %4191 = vset.pattern.permute.xlu0 0
      %4192 = vperm.xlu0 %4191, %v4184
      %v4193 = vpop.permute.xlu0 %4192
      %vm4195 = vcmask 261120
      %v4197 = vsel %vm4195, %v4107, 0
      %v4200 = vsel %vm4195, %v4110, 0
      %4202 = vmatpush.msra.mxu0 %v4141
      %4203 = vmatpush.msra.mxu0 %v4139
      %4204 = vmatpush.msra.mxu0 %v4137
      %4205 = vmatpush.msra.mxu0 %v4135
      %4206 = vmatpush.msra.mxu0 %v4133
      %4207 = vmatpush.msra.mxu0 %v4131
      %4208 = vmatpush.msra.mxu0 %v4129
      %4209 = vmatpush.msra.mxu0 %v4127
      %4210 = vmatpush.msra.mxu0 %v4125
      %4211 = vmatpush.msra.mxu0 %v4123
      %4212 = vmatpush.msra.mxu0 %v4121
      %4213 = vmatpush.msra.mxu0 %v4119
      %4214 = vmatpush.msra.mxu0 %v4117
      %4215 = vmatpush.msra.mxu0 %v4115
      %4216 = vmatpush.msra.mxu0 %v4113
      %4217 = vmatpush.msra.mxu0 %v4111
      %4218 = vmatmul.f32.gmra.mxu0 %v4105
      %v4219 = vpop.f32.mrf.mxu0
      %v4220 = vadd.f32 %v4188, %v4219
      %4221 = vmatmul.f32.gmra.mxu0 %v4108
      %v4222 = vpop.f32.mrf.mxu0
      %v4223 = vadd.f32 %v4193, %v4222
      %4224 = vdwg.mxu0
      %4225 = vmatpush.msra.mxu0 %v4173
      %4226 = vmatpush.msra.mxu0 %v4171
      %4227 = vmatpush.msra.mxu0 %v4169
      %4228 = vmatpush.msra.mxu0 %v4167
      %4229 = vmatpush.msra.mxu0 %v4165
      %4230 = vmatpush.msra.mxu0 %v4163
      %4231 = vmatpush.msra.mxu0 %v4161
      %4232 = vmatpush.msra.mxu0 %v4159
      %4233 = vmatpush.msra.mxu0 %v4157
      %4234 = vmatpush.msra.mxu0 %v4155
      %4235 = vmatpush.msra.mxu0 %v4153
      %4236 = vmatpush.msra.mxu0 %v4151
      %4237 = vmatpush.msra.mxu0 %v4149
      %4238 = vmatpush.msra.mxu0 %v4147
      %4239 = vmatpush.msra.mxu0 %v4145
      %4240 = vmatpush.msra.mxu0 %v4143
      %4241 = vmatmul.f32.gmra.mxu0 %v4106
      %v4242 = vpop.f32.mrf.mxu0
      %v4243 = vadd.f32 %v4220, %v4242
      %4244 = vmatmul.f32.gmra.mxu0 %v4109
      %v4245 = vpop.f32.mrf.mxu0
      %v4246 = vadd.f32 %v4223, %v4245
      %4247 = vdwg.mxu0
      %4248 = vmatpush.msra.mxu0 0.0
      %4249 = vmatpush.msra.mxu0 0.0
      %4250 = vmatpush.msra.mxu0 0.0
      %4251 = vmatpush.msra.mxu0 0.0
      %4252 = vmatpush.msra.mxu0 0.0
      %4253 = vmatpush.msra.mxu0 0.0
      %4254 = vmatpush.msra.mxu0 0.0
      %4255 = vmatpush.msra.mxu0 0.0
      %4256 = vmatpush.msra.mxu0 0.0
      %4257 = vmatpush.msra.mxu0 0.0
      %4258 = vmatpush.msra.mxu0 0.0
      %4259 = vmatpush.msra.mxu0 0.0
      %4260 = vmatpush.msra.mxu0 %v4181
      %4261 = vmatpush.msra.mxu0 %v4179
      %4262 = vmatpush.msra.mxu0 %v4177
      %4263 = vmatpush.msra.mxu0 %v4175
      %4264 = vmatmul.f32.gmra.mxu0 %v4197
      %v4265 = vpop.f32.mrf.mxu0
      %v4266 = vadd.f32 %v4243, %v4265
      %4267 = vmatmul.f32.gmra.mxu0 %v4200
      %v4268 = vpop.f32.mrf.mxu0
      %v4269 = vadd.f32 %v4246, %v4268
      %4270 = vdwg.mxu0
      %4271 = vmatpush.msra.mxu0 %v4142
      %4272 = vmatpush.msra.mxu0 %v4140
      %4273 = vmatpush.msra.mxu0 %v4138
      %4274 = vmatpush.msra.mxu0 %v4136
      %4275 = vmatpush.msra.mxu0 %v4134
      %4276 = vmatpush.msra.mxu0 %v4132
      %4277 = vmatpush.msra.mxu0 %v4130
      %4278 = vmatpush.msra.mxu0 %v4128
      %4279 = vmatpush.msra.mxu0 %v4126
      %4280 = vmatpush.msra.mxu0 %v4124
      %4281 = vmatpush.msra.mxu0 %v4122
      %4282 = vmatpush.msra.mxu0 %v4120
      %4283 = vmatpush.msra.mxu0 %v4118
      %4284 = vmatpush.msra.mxu0 %v4116
      %4285 = vmatpush.msra.mxu0 %v4114
      %4286 = vmatpush.msra.mxu0 %v4112
      %4287 = vmatmul.f32.gmra.mxu0 %v4105
      %v4288 = vpop.f32.mrf.mxu0
      %v4289 = vadd.f32 %v4188, %v4288
      %4290 = vmatmul.f32.gmra.mxu0 %v4108
      %v4291 = vpop.f32.mrf.mxu0
      %v4292 = vadd.f32 %v4193, %v4291
      %4293 = vdwg.mxu0
      %4294 = vmatpush.msra.mxu0 %v4174
      %4295 = vmatpush.msra.mxu0 %v4172
      %4296 = vmatpush.msra.mxu0 %v4170
      %4297 = vmatpush.msra.mxu0 %v4168
      %4298 = vmatpush.msra.mxu0 %v4166
      %4299 = vmatpush.msra.mxu0 %v4164
      %4300 = vmatpush.msra.mxu0 %v4162
      %4301 = vmatpush.msra.mxu0 %v4160
      %4302 = vmatpush.msra.mxu0 %v4158
      %4303 = vmatpush.msra.mxu0 %v4156
      %4304 = vmatpush.msra.mxu0 %v4154
      %4305 = vmatpush.msra.mxu0 %v4152
      %4306 = vmatpush.msra.mxu0 %v4150
      %4307 = vmatpush.msra.mxu0 %v4148
      %4308 = vmatpush.msra.mxu0 %v4146
      %4309 = vmatpush.msra.mxu0 %v4144
      %4310 = vmatmul.f32.gmra.mxu0 %v4106
      %v4311 = vpop.f32.mrf.mxu0
      %v4312 = vadd.f32 %v4289, %v4311
      %4313 = vmatmul.f32.gmra.mxu0 %v4109
      %v4314 = vpop.f32.mrf.mxu0
      %v4315 = vadd.f32 %v4292, %v4314
      %4316 = vdwg.mxu0
      %4317 = vmatpush.msra.mxu0 0.0
      %4318 = vmatpush.msra.mxu0 0.0
      %4319 = vmatpush.msra.mxu0 0.0
      %4320 = vmatpush.msra.mxu0 0.0
      %4321 = vmatpush.msra.mxu0 0.0
      %4322 = vmatpush.msra.mxu0 0.0
      %4323 = vmatpush.msra.mxu0 0.0
      %4324 = vmatpush.msra.mxu0 0.0
      %4325 = vmatpush.msra.mxu0 0.0
      %4326 = vmatpush.msra.mxu0 0.0
      %4327 = vmatpush.msra.mxu0 0.0
      %4328 = vmatpush.msra.mxu0 0.0
      %4329 = vmatpush.msra.mxu0 %v4182
      %4330 = vmatpush.msra.mxu0 %v4180
      %4331 = vmatpush.msra.mxu0 %v4178
      %4332 = vmatpush.msra.mxu0 %v4176
      %4333 = vmatmul.f32.gmra.mxu0 %v4197
      %v4334 = vpop.f32.mrf.mxu0
      %v4335 = vadd.f32 %v4312, %v4334
      %4336 = vmatmul.f32.gmra.mxu0 %v4200
      %v4337 = vpop.f32.mrf.mxu0
      %v4338 = vadd.f32 %v4315, %v4337
      %4339 = vdwg.mxu0
      %4340 = vst [vmem:[%s356] sm:$0xff] %v4266
      %4341 = vst [vmem:[%s356 + $0x8] sm:$0xff] %v4335
      %4342 = vst [vmem:[%s356 + $0x10] sm:$0x1] %v4269
      %4343 = vst [vmem:[%s356 + $0x18] sm:$0x1] %v4338
      %p4344 = scmp.lt.s32.totalorder %s21, 1
      %s4345 = scalar_select %p4344, %s21, 1
      %s4346 = smul.addr %s4345, 4
      %s4347 = smul.addr %s4346, 8
      %s4348 = scalar_lea.vmem %s10, %s4347
      // Predicated region
      $region61: #{_lambda_.1} parent=59 // pred_check
        %p4349 = pneg %p254
      $region62: #{_lambda_.1} parent=59 // pred_check_branch
        %4351 = sbr.rel (%p4349) target = $region64
      $region63: #{_lambda_.1} parent=59 // pred_region
        _
      $region64: #{_lambda_.1} parent=59 // pred_fallthru
        _
    $region60: #{_lambda_.1} parent=5 // pred_fallthru
      _
    %p4352 = scmp.le.s32.totalorder 2, %s16
    // Predicated region
    $region65: #{_lambda_.1} parent=5 // pred_check
      %p4353 = pneg %p4352
    $region66: #{_lambda_.1} parent=5 // pred_check_branch
      %4355 = sbr.rel (%p4353) target = $region68
    $region67: #{_lambda_.1} parent=5 // pred_region
      %s4356 = ssub.s32 %s16, 2
      // Predicated region
      $region69: #{_lambda_.1} parent=67 // pred_check
        %p4357 = pneg %p260
      $region70: #{_lambda_.1} parent=67 // pred_check_branch
        %4359 = sbr.rel (%p4357) target = $region72
      $region71: #{_lambda_.1} parent=67 // pred_region
        %p4360 = scmp.lt.s32.totalorder %s22, 1
        %s4361 = scalar_select %p4360, %s22, 1
        %s4362 = smul.addr %s4361, 4
        %s4363 = smul.addr %s4362, 8
        %s4364 = scalar_lea.vmem %s10, %s4363
      $region72: #{_lambda_.1} parent=67 // pred_fallthru
        _
    $region68: #{_lambda_.1} parent=5 // pred_fallthru
      _
  $region6: #{_lambda_.1} parent=0 // loop_footer
    %s20 = sadd.s32 1, %s16
  $region7: #{_lambda_.1} parent=0 // loop_footer_branch
    %15 = sbr.rel target = $region3
  $region8: #{_lambda_.1} parent=0 // loop_exit
    _

</llo_original>
